<compile_context>
chip_gen: v7x
topology: tpu7x:2x2x1
jax: 0.10.0
libtpu: 0.0.40
codegen_flags: <defaults>
</compile_context>

<pallas_src>
import functools

import jax
import jax.numpy as jnp
from jax import lax
from jax.experimental import pallas as pl
from jax.experimental.pallas import tpu as pltpu


def _round_up(x, m):
    return ((x + m - 1) // m) * m


def _cdiv(a, b):
    return (a + b - 1) // b


def _lane_multiple_for_cout(cout):
    """Cout padding granularity: 256 fills the 256-wide MXU on v6e/v7x, 128 elsewhere."""
    if cout <= 128:
        return 128
    try:
        kind = jax.devices()[0].device_kind.lower()
    except Exception:
        return 128
    if "v6" in kind or "v7" in kind:
        return 256
    return 128


def _conv_bn_kernel(x_ref, w_ref, b_ref, o_ref, acc_ref, *,
                    kh, kw, stride, dilation, th, w_out):
    """One (batch, row-tile) grid step: fused im2col + matmul + folded-BN bias.

    x_ref:   (1, Hp, Wp, Cin)        whole padded bf16 image (fetched once per batch elem)
    w_ref:   (kh*kw, Cin, Coutp)     bf16 conv weights with BN scale folded in
    b_ref:   (1, Coutp)              f32 folded BN bias
    o_ref:   (1, 1, th*w_out, Coutp) f32 lane-dense output tile
    acc_ref: (th*w_out, Coutp)       f32 accumulator scratch
    """
    r = pl.program_id(1)
    row0 = r * (th * stride)          # first padded-input row of this row tile

    acc_ref[...] = jnp.zeros_like(acc_ref)
    for i in range(kh):               # static unroll over kernel taps
        for j in range(kw):
            if stride == 1:
                x_tap = x_ref[0, pl.ds(row0 + i * dilation, th),
                              pl.ds(j * dilation, w_out), :]
            else:
                x_tap = x_ref[0, pl.ds(row0 + i * dilation, th, stride),
                              pl.ds(j * dilation, w_out, stride), :]
            x_mat = x_tap.reshape(th * w_out, x_tap.shape[-1])
            acc_ref[...] += jnp.dot(x_mat, w_ref[i * kw + j],
                                    preferred_element_type=jnp.float32)

    o_ref[0, 0] = (acc_ref[...] + b_ref[...]).astype(o_ref.dtype)


def basic_conv2d(x, weight, gamma, beta, running_mean, running_var, *,
                 stride=1, padding=0, dilation=1, eps=1e-5, th=None):
    """x: (N, Cin, H, W) NCHW f32, weight: (Cout, Cin, KH, KW) OIHW (PyTorch layout)."""
    n, cin, h, w = x.shape
    cout, _, kh, kw = weight.shape

    hp = h + 2 * padding
    wp = w + 2 * padding
    h_out = (hp - dilation * (kh - 1) - 1) // stride + 1
    w_out = (wp - dilation * (kw - 1) - 1) // stride + 1

    # ---- row-tile selection: ~<=1024 output pixels per tile, >=4 grid steps ----
    if th is None:
        th = max(1, min(h_out, 1024 // max(w_out, 1)))
        while n * _cdiv(h_out, th) < 4 and th > 1:
            th = (th + 1) // 2
    n_rt = _cdiv(h_out, th)
    m_tile = th * w_out

    coutp = _round_up(cout, _lane_multiple_for_cout(cout))

    # ---- glue (plain JAX): layout, spatial pad, BN folding; compute in bf16 ----
    # TODO(synk): in a full network keep activations NHWC end-to-end and drop this transpose.
    x_nhwc = jnp.transpose(x, (0, 2, 3, 1)).astype(jnp.bfloat16)
    rows_needed = (n_rt * th - 1) * stride + (kh - 1) * dilation + 1
    extra_rows = max(0, rows_needed - hp)      # zero rows so the last tile never reads OOB
    x_pad = jnp.pad(x_nhwc, ((0, 0), (padding, padding + extra_rows),
                             (padding, padding), (0, 0)))
    hp_tot = hp + extra_rows

    # Fold eval-mode BN: y = conv(x) * scale + bias  (scale folded into weights).
    scale = (gamma / jnp.sqrt(running_var + eps)).astype(jnp.float32)   # (Cout,)
    bias = (beta - running_mean * scale).astype(jnp.float32)            # (Cout,)
    w_k = jnp.transpose(weight, (2, 3, 1, 0)).reshape(kh * kw, cin, cout)
    w_k = w_k.astype(jnp.float32) * scale[None, None, :]
    w_k = jnp.pad(w_k, ((0, 0), (0, 0), (0, coutp - cout))).astype(jnp.bfloat16)
    bias_p = jnp.pad(bias, (0, coutp - cout)).reshape(1, coutp)

    kernel = functools.partial(_conv_bn_kernel, kh=kh, kw=kw, stride=stride,
                               dilation=dilation, th=th, w_out=w_out)

    # ---- scheduling hints: cost estimate + explicit VMEM budget ----
    flops = 2 * n * n_rt * m_tile * cin * kh * kw * coutp
    bytes_accessed = (x_pad.size * 2 + w_k.size * 2 + bias_p.size * 4
                      + n * n_rt * m_tile * coutp * 4)
    x_blk = hp_tot * _round_up(wp, 16) * _round_up(cin, 128) * 2   # bf16, layout padded
    w_blk = kh * kw * _round_up(cin, 16) * coutp * 2               # single-buffered
    b_blk = 8 * coutp * 4
    o_blk = _round_up(m_tile, 8) * coutp * 4
    vmem_est = 2 * x_blk + w_blk + b_blk + 3 * o_blk               # out x2 bufs + acc scratch
    vmem_limit = int(min(64 * 1024 * 1024, max(16 * 1024 * 1024, 2 * vmem_est)))

    out_mat = pl.pallas_call(
        kernel,
        out_shape=jax.ShapeDtypeStruct((n, n_rt, m_tile, coutp), jnp.float32),
        grid_spec=pltpu.PrefetchScalarGridSpec(
            num_scalar_prefetch=0,
            grid=(n, n_rt),
            in_specs=[
                # whole padded image; block index depends only on b -> fetched once per batch elem
                pl.BlockSpec((1, hp_tot, wp, cin), lambda b, r: (b, 0, 0, 0)),
                # grid-invariant weights / bias -> single-buffered (no wasted VMEM)
                pl.BlockSpec((kh * kw, cin, coutp), lambda b, r: (0, 0, 0),
                             pipeline_mode=pl.Buffered(1)),
                pl.BlockSpec((1, coutp), lambda b, r: (0, 0),
                             pipeline_mode=pl.Buffered(1)),
            ],
            out_specs=pl.BlockSpec((1, 1, m_tile, coutp),
                                   lambda b, r: (b, r, 0, 0)),
            scratch_shapes=[pltpu.VMEM((m_tile, coutp), jnp.float32)],
        ),
        compiler_params=pltpu.CompilerParams(
            dimension_semantics=("parallel", "parallel"),
            vmem_limit_bytes=vmem_limit),
        cost_estimate=pl.CostEstimate(flops=flops, transcendentals=0,
                                      bytes_accessed=bytes_accessed),
    )(x_pad, w_k, bias_p)

    # TODO(synk): for very large feature maps (whole image > VMEM) a halo'd row-slab
    # manual-DMA variant would be needed; not required at these shapes.
    out = out_mat.reshape(n, n_rt * th, w_out, coutp)[:, :h_out, :, :cout]
    return jnp.transpose(out, (0, 3, 1, 2))   # back to NCHW f32


def _reference(x, weight, gamma, beta, running_mean, running_var,
               *, stride, padding, dilation, eps=1e-5):
    y = lax.conv_general_dilated(
        x, weight, window_strides=(stride, stride),
        padding=[(padding, padding), (padding, padding)],
        rhs_dilation=(dilation, dilation),
        dimension_numbers=("NCHW", "OIHW", "NCHW"))
    s = (gamma / jnp.sqrt(running_var + eps)).reshape(1, -1, 1, 1)
    b = (beta - running_mean * gamma / jnp.sqrt(running_var + eps)).reshape(1, -1, 1, 1)
    return y * s + b


if __name__ == "__main__":
    # BasicConv2d(in_planes=4, out_planes=8, kernel_size=3, stride=1, padding=1)
    N, CIN, H, W = 2, 4, 16, 16
    COUT, KH, KW = 8, 3, 3
    STRIDE, PAD, DIL = 1, 1, 1

    key = jax.random.PRNGKey(0)
    k_x, k_w, k_g, k_b, k_m, k_v = jax.random.split(key, 6)
    x = jax.random.normal(k_x, (N, CIN, H, W), dtype=jnp.float32)
    weight = jax.random.normal(k_w, (COUT, CIN, KH, KW), dtype=jnp.float32) * 0.1
    gamma = jax.random.uniform(k_g, (COUT,), minval=0.5, maxval=1.5, dtype=jnp.float32)
    beta = jax.random.normal(k_b, (COUT,), dtype=jnp.float32) * 0.1
    running_mean = jax.random.normal(k_m, (COUT,), dtype=jnp.float32) * 0.1
    running_var = jax.random.uniform(k_v, (COUT,), minval=0.5, maxval=1.5,
                                     dtype=jnp.float32)

    out = basic_conv2d(x, weight, gamma, beta, running_mean, running_var,
                       stride=STRIDE, padding=PAD, dilation=DIL)
    out = jax.block_until_ready(out)

    ref = _reference(x, weight, gamma, beta, running_mean, running_var,
                     stride=STRIDE, padding=PAD, dilation=DIL)
    assert out.shape == (N, COUT, H, W), out.shape
    # bf16 inputs / f32 accumulation -> relaxed tolerance (per perf review).
    assert jnp.allclose(out, ref, atol=2e-2, rtol=2e-2), \
        float(jnp.max(jnp.abs(out - ref)))

    # TODO(synk): training-mode BatchNorm (batch statistics + running-stat update)
    # is not reproduced; eval-mode (running-stats) semantics are used.
    print("KERNEL_OK")
</pallas_src>

<mosaic_0001>
module attributes {stable_mosaic.version = 11 : i64} {
  func.func @_conv_bn_kernel(%arg0: i32, %arg1: i32, %arg2: memref<1x18x18x4xbf16, #tpu.memory_space<vmem>>, %arg3: memref<9x4x128xbf16, #tpu.memory_space<vmem>>, %arg4: memref<1x128xf32, #tpu.memory_space<vmem>>, %arg5: memref<1x1x128x128xf32, #tpu.memory_space<vmem>>, %arg6: memref<128x128xf32, #tpu.memory_space<vmem>>) attributes {dimension_semantics = [#tpu.dimension_semantics<parallel>, #tpu.dimension_semantics<parallel>], iteration_bounds = array<i64: 2, 2>, scalar_prefetch = 0 : i64, scratch_operands = 1 : i64, tpu.core_type = #tpu.core_type<tc>, window_params = [{transform_indices = @transform_0, window_bounds = array<i64: 1, 18, 18, 4>}, {pipeline_mode = #tpu.pipeline_mode<synchronous>, transform_indices = @transform_1, window_bounds = array<i64: 9, 4, 128>}, {pipeline_mode = #tpu.pipeline_mode<synchronous>, transform_indices = @transform_2, window_bounds = array<i64: 1, 128>}, {transform_indices = @transform_3, window_bounds = array<i64: 1, 1, 128, 128>}]} {
    %c8_i32 = arith.constant 8 : i32
    %0 = arith.muli %arg1, %c8_i32 : i32
    %cst = arith.constant 0.000000e+00 : f32
    %1 = vector.broadcast %cst : f32 to vector<128x128xf32>
    %c0 = arith.constant 0 : index
    %c0_0 = arith.constant 0 : index
    %2 = vector.load %arg6[%c0, %c0_0] : memref<128x128xf32, #tpu.memory_space<vmem>>, vector<128x128xf32>
    tpu.vector_store %arg6[%c0, %c0_0], %1 {strides = array<i32>} : memref<128x128xf32, #tpu.memory_space<vmem>>, vector<128x128xf32>,
    %c0_i32 = arith.constant 0 : i32
    %3 = arith.addi %0, %c0_i32 : i32
    %c0_1 = arith.constant 0 : index
    %4 = arith.index_cast %3 : i32 to index
    %c0_2 = arith.constant 0 : index
    %c0_3 = arith.constant 0 : index
    %5 = vector.load %arg2[%c0_1, %4, %c0_2, %c0_3] : memref<1x18x18x4xbf16, #tpu.memory_space<vmem>>, vector<1x8x16x4xbf16>
    %6 = vector.shape_cast %5 : vector<1x8x16x4xbf16> to vector<8x16x4xbf16>
    %7 = vector.shape_cast %6 : vector<8x16x4xbf16> to vector<128x4xbf16>
    %c0_4 = arith.constant 0 : index
    %c0_5 = arith.constant 0 : index
    %8 = vector.load %arg6[%c0_4, %c0_5] : memref<128x128xf32, #tpu.memory_space<vmem>>, vector<128x128xf32>
    %c0_6 = arith.constant 0 : index
    %c0_7 = arith.constant 0 : index
    %c0_8 = arith.constant 0 : index
    %9 = vector.load %arg3[%c0_6, %c0_7, %c0_8] : memref<9x4x128xbf16, #tpu.memory_space<vmem>>, vector<1x4x128xbf16>
    %10 = vector.shape_cast %9 : vector<1x4x128xbf16> to vector<4x128xbf16>
    %cst_9 = arith.constant dense<0.000000e+00> : vector<128x128xf32>
    %11 = tpu.matmul %7, %10, %cst_9 {dimension_numbers = #tpu.dot_dimension_numbers<[1], [0], [0], [1], [0, 0, 1, 1], [], []>} : vector<128x4xbf16>, vector<4x128xbf16>, vector<128x128xf32> -> vector<128x128xf32>
    %12 = arith.addf %8, %11 : vector<128x128xf32>
    %c0_10 = arith.constant 0 : index
    %c0_11 = arith.constant 0 : index
    %13 = vector.load %arg6[%c0_10, %c0_11] : memref<128x128xf32, #tpu.memory_space<vmem>>, vector<128x128xf32>
    tpu.vector_store %arg6[%c0_10, %c0_11], %12 {strides = array<i32>} : memref<128x128xf32, #tpu.memory_space<vmem>>, vector<128x128xf32>,
    %c0_i32_12 = arith.constant 0 : i32
    %14 = arith.addi %0, %c0_i32_12 : i32
    %c0_13 = arith.constant 0 : index
    %15 = arith.index_cast %14 : i32 to index
    %c1 = arith.constant 1 : index
    %c0_14 = arith.constant 0 : index
    %16 = vector.load %arg2[%c0_13, %15, %c1, %c0_14] : memref<1x18x18x4xbf16, #tpu.memory_space<vmem>>, vector<1x8x16x4xbf16>
    %17 = vector.shape_cast %16 : vector<1x8x16x4xbf16> to vector<8x16x4xbf16>
    %18 = vector.shape_cast %17 : vector<8x16x4xbf16> to vector<128x4xbf16>
    %c0_15 = arith.constant 0 : index
    %c0_16 = arith.constant 0 : index
    %19 = vector.load %arg6[%c0_15, %c0_16] : memref<128x128xf32, #tpu.memory_space<vmem>>, vector<128x128xf32>
    %c1_17 = arith.constant 1 : index
    %c0_18 = arith.constant 0 : index
    %c0_19 = arith.constant 0 : index
    %20 = vector.load %arg3[%c1_17, %c0_18, %c0_19] : memref<9x4x128xbf16, #tpu.memory_space<vmem>>, vector<1x4x128xbf16>
    %21 = vector.shape_cast %20 : vector<1x4x128xbf16> to vector<4x128xbf16>
    %cst_20 = arith.constant dense<0.000000e+00> : vector<128x128xf32>
    %22 = tpu.matmul %18, %21, %cst_20 {dimension_numbers = #tpu.dot_dimension_numbers<[1], [0], [0], [1], [0, 0, 1, 1], [], []>} : vector<128x4xbf16>, vector<4x128xbf16>, vector<128x128xf32> -> vector<128x128xf32>
    %23 = arith.addf %19, %22 : vector<128x128xf32>
    %c0_21 = arith.constant 0 : index
    %c0_22 = arith.constant 0 : index
    %24 = vector.load %arg6[%c0_21, %c0_22] : memref<128x128xf32, #tpu.memory_space<vmem>>, vector<128x128xf32>
    tpu.vector_store %arg6[%c0_21, %c0_22], %23 {strides = array<i32>} : memref<128x128xf32, #tpu.memory_space<vmem>>, vector<128x128xf32>,
    %c0_i32_23 = arith.constant 0 : i32
    %25 = arith.addi %0, %c0_i32_23 : i32
    %c0_24 = arith.constant 0 : index
    %26 = arith.index_cast %25 : i32 to index
    %c2 = arith.constant 2 : index
    %c0_25 = arith.constant 0 : index
    %27 = vector.load %arg2[%c0_24, %26, %c2, %c0_25] : memref<1x18x18x4xbf16, #tpu.memory_space<vmem>>, vector<1x8x16x4xbf16>
    %28 = vector.shape_cast %27 : vector<1x8x16x4xbf16> to vector<8x16x4xbf16>
    %29 = vector.shape_cast %28 : vector<8x16x4xbf16> to vector<128x4xbf16>
    %c0_26 = arith.constant 0 : index
    %c0_27 = arith.constant 0 : index
    %30 = vector.load %arg6[%c0_26, %c0_27] : memref<128x128xf32, #tpu.memory_space<vmem>>, vector<128x128xf32>
    %c2_28 = arith.constant 2 : index
    %c0_29 = arith.constant 0 : index
    %c0_30 = arith.constant 0 : index
    %31 = vector.load %arg3[%c2_28, %c0_29, %c0_30] : memref<9x4x128xbf16, #tpu.memory_space<vmem>>, vector<1x4x128xbf16>
    %32 = vector.shape_cast %31 : vector<1x4x128xbf16> to vector<4x128xbf16>
    %cst_31 = arith.constant dense<0.000000e+00> : vector<128x128xf32>
    %33 = tpu.matmul %29, %32, %cst_31 {dimension_numbers = #tpu.dot_dimension_numbers<[1], [0], [0], [1], [0, 0, 1, 1], [], []>} : vector<128x4xbf16>, vector<4x128xbf16>, vector<128x128xf32> -> vector<128x128xf32>
    %34 = arith.addf %30, %33 : vector<128x128xf32>
    %c0_32 = arith.constant 0 : index
    %c0_33 = arith.constant 0 : index
    %35 = vector.load %arg6[%c0_32, %c0_33] : memref<128x128xf32, #tpu.memory_space<vmem>>, vector<128x128xf32>
    tpu.vector_store %arg6[%c0_32, %c0_33], %34 {strides = array<i32>} : memref<128x128xf32, #tpu.memory_space<vmem>>, vector<128x128xf32>,
    %c1_i32 = arith.constant 1 : i32
    %36 = arith.addi %0, %c1_i32 : i32
    %c0_34 = arith.constant 0 : index
    %37 = arith.index_cast %36 : i32 to index
    %c0_35 = arith.constant 0 : index
    %c0_36 = arith.constant 0 : index
    %38 = vector.load %arg2[%c0_34, %37, %c0_35, %c0_36] : memref<1x18x18x4xbf16, #tpu.memory_space<vmem>>, vector<1x8x16x4xbf16>
    %39 = vector.shape_cast %38 : vector<1x8x16x4xbf16> to vector<8x16x4xbf16>
    %40 = vector.shape_cast %39 : vector<8x16x4xbf16> to vector<128x4xbf16>
    %c0_37 = arith.constant 0 : index
    %c0_38 = arith.constant 0 : index
    %41 = vector.load %arg6[%c0_37, %c0_38] : memref<128x128xf32, #tpu.memory_space<vmem>>, vector<128x128xf32>
    %c3 = arith.constant 3 : index
    %c0_39 = arith.constant 0 : index
    %c0_40 = arith.constant 0 : index
    %42 = vector.load %arg3[%c3, %c0_39, %c0_40] : memref<9x4x128xbf16, #tpu.memory_space<vmem>>, vector<1x4x128xbf16>
    %43 = vector.shape_cast %42 : vector<1x4x128xbf16> to vector<4x128xbf16>
    %cst_41 = arith.constant dense<0.000000e+00> : vector<128x128xf32>
    %44 = tpu.matmul %40, %43, %cst_41 {dimension_numbers = #tpu.dot_dimension_numbers<[1], [0], [0], [1], [0, 0, 1, 1], [], []>} : vector<128x4xbf16>, vector<4x128xbf16>, vector<128x128xf32> -> vector<128x128xf32>
    %45 = arith.addf %41, %44 : vector<128x128xf32>
    %c0_42 = arith.constant 0 : index
    %c0_43 = arith.constant 0 : index
    %46 = vector.load %arg6[%c0_42, %c0_43] : memref<128x128xf32, #tpu.memory_space<vmem>>, vector<128x128xf32>
    tpu.vector_store %arg6[%c0_42, %c0_43], %45 {strides = array<i32>} : memref<128x128xf32, #tpu.memory_space<vmem>>, vector<128x128xf32>,
    %c1_i32_44 = arith.constant 1 : i32
    %47 = arith.addi %0, %c1_i32_44 : i32
    %c0_45 = arith.constant 0 : index
    %48 = arith.index_cast %47 : i32 to index
    %c1_46 = arith.constant 1 : index
    %c0_47 = arith.constant 0 : index
    %49 = vector.load %arg2[%c0_45, %48, %c1_46, %c0_47] : memref<1x18x18x4xbf16, #tpu.memory_space<vmem>>, vector<1x8x16x4xbf16>
    %50 = vector.shape_cast %49 : vector<1x8x16x4xbf16> to vector<8x16x4xbf16>
    %51 = vector.shape_cast %50 : vector<8x16x4xbf16> to vector<128x4xbf16>
    %c0_48 = arith.constant 0 : index
    %c0_49 = arith.constant 0 : index
    %52 = vector.load %arg6[%c0_48, %c0_49] : memref<128x128xf32, #tpu.memory_space<vmem>>, vector<128x128xf32>
    %c4 = arith.constant 4 : index
    %c0_50 = arith.constant 0 : index
    %c0_51 = arith.constant 0 : index
    %53 = vector.load %arg3[%c4, %c0_50, %c0_51] : memref<9x4x128xbf16, #tpu.memory_space<vmem>>, vector<1x4x128xbf16>
    %54 = vector.shape_cast %53 : vector<1x4x128xbf16> to vector<4x128xbf16>
    %cst_52 = arith.constant dense<0.000000e+00> : vector<128x128xf32>
    %55 = tpu.matmul %51, %54, %cst_52 {dimension_numbers = #tpu.dot_dimension_numbers<[1], [0], [0], [1], [0, 0, 1, 1], [], []>} : vector<128x4xbf16>, vector<4x128xbf16>, vector<128x128xf32> -> vector<128x128xf32>
    %56 = arith.addf %52, %55 : vector<128x128xf32>
    %c0_53 = arith.constant 0 : index
    %c0_54 = arith.constant 0 : index
    %57 = vector.load %arg6[%c0_53, %c0_54] : memref<128x128xf32, #tpu.memory_space<vmem>>, vector<128x128xf32>
    tpu.vector_store %arg6[%c0_53, %c0_54], %56 {strides = array<i32>} : memref<128x128xf32, #tpu.memory_space<vmem>>, vector<128x128xf32>,
    %c1_i32_55 = arith.constant 1 : i32
    %58 = arith.addi %0, %c1_i32_55 : i32
    %c0_56 = arith.constant 0 : index
    %59 = arith.index_cast %58 : i32 to index
    %c2_57 = arith.constant 2 : index
    %c0_58 = arith.constant 0 : index
    %60 = vector.load %arg2[%c0_56, %59, %c2_57, %c0_58] : memref<1x18x18x4xbf16, #tpu.memory_space<vmem>>, vector<1x8x16x4xbf16>
    %61 = vector.shape_cast %60 : vector<1x8x16x4xbf16> to vector<8x16x4xbf16>
    %62 = vector.shape_cast %61 : vector<8x16x4xbf16> to vector<128x4xbf16>
    %c0_59 = arith.constant 0 : index
    %c0_60 = arith.constant 0 : index
    %63 = vector.load %arg6[%c0_59, %c0_60] : memref<128x128xf32, #tpu.memory_space<vmem>>, vector<128x128xf32>
    %c5 = arith.constant 5 : index
    %c0_61 = arith.constant 0 : index
    %c0_62 = arith.constant 0 : index
    %64 = vector.load %arg3[%c5, %c0_61, %c0_62] : memref<9x4x128xbf16, #tpu.memory_space<vmem>>, vector<1x4x128xbf16>
    %65 = vector.shape_cast %64 : vector<1x4x128xbf16> to vector<4x128xbf16>
    %cst_63 = arith.constant dense<0.000000e+00> : vector<128x128xf32>
    %66 = tpu.matmul %62, %65, %cst_63 {dimension_numbers = #tpu.dot_dimension_numbers<[1], [0], [0], [1], [0, 0, 1, 1], [], []>} : vector<128x4xbf16>, vector<4x128xbf16>, vector<128x128xf32> -> vector<128x128xf32>
    %67 = arith.addf %63, %66 : vector<128x128xf32>
    %c0_64 = arith.constant 0 : index
    %c0_65 = arith.constant 0 : index
    %68 = vector.load %arg6[%c0_64, %c0_65] : memref<128x128xf32, #tpu.memory_space<vmem>>, vector<128x128xf32>
    tpu.vector_store %arg6[%c0_64, %c0_65], %67 {strides = array<i32>} : memref<128x128xf32, #tpu.memory_space<vmem>>, vector<128x128xf32>,
    %c2_i32 = arith.constant 2 : i32
    %69 = arith.addi %0, %c2_i32 : i32
    %c0_66 = arith.constant 0 : index
    %70 = arith.index_cast %69 : i32 to index
    %c0_67 = arith.constant 0 : index
    %c0_68 = arith.constant 0 : index
    %71 = vector.load %arg2[%c0_66, %70, %c0_67, %c0_68] : memref<1x18x18x4xbf16, #tpu.memory_space<vmem>>, vector<1x8x16x4xbf16>
    %72 = vector.shape_cast %71 : vector<1x8x16x4xbf16> to vector<8x16x4xbf16>
    %73 = vector.shape_cast %72 : vector<8x16x4xbf16> to vector<128x4xbf16>
    %c0_69 = arith.constant 0 : index
    %c0_70 = arith.constant 0 : index
    %74 = vector.load %arg6[%c0_69, %c0_70] : memref<128x128xf32, #tpu.memory_space<vmem>>, vector<128x128xf32>
    %c6 = arith.constant 6 : index
    %c0_71 = arith.constant 0 : index
    %c0_72 = arith.constant 0 : index
    %75 = vector.load %arg3[%c6, %c0_71, %c0_72] : memref<9x4x128xbf16, #tpu.memory_space<vmem>>, vector<1x4x128xbf16>
    %76 = vector.shape_cast %75 : vector<1x4x128xbf16> to vector<4x128xbf16>
    %cst_73 = arith.constant dense<0.000000e+00> : vector<128x128xf32>
    %77 = tpu.matmul %73, %76, %cst_73 {dimension_numbers = #tpu.dot_dimension_numbers<[1], [0], [0], [1], [0, 0, 1, 1], [], []>} : vector<128x4xbf16>, vector<4x128xbf16>, vector<128x128xf32> -> vector<128x128xf32>
    %78 = arith.addf %74, %77 : vector<128x128xf32>
    %c0_74 = arith.constant 0 : index
    %c0_75 = arith.constant 0 : index
    %79 = vector.load %arg6[%c0_74, %c0_75] : memref<128x128xf32, #tpu.memory_space<vmem>>, vector<128x128xf32>
    tpu.vector_store %arg6[%c0_74, %c0_75], %78 {strides = array<i32>} : memref<128x128xf32, #tpu.memory_space<vmem>>, vector<128x128xf32>,
    %c2_i32_76 = arith.constant 2 : i32
    %80 = arith.addi %0, %c2_i32_76 : i32
    %c0_77 = arith.constant 0 : index
    %81 = arith.index_cast %80 : i32 to index
    %c1_78 = arith.constant 1 : index
    %c0_79 = arith.constant 0 : index
    %82 = vector.load %arg2[%c0_77, %81, %c1_78, %c0_79] : memref<1x18x18x4xbf16, #tpu.memory_space<vmem>>, vector<1x8x16x4xbf16>
    %83 = vector.shape_cast %82 : vector<1x8x16x4xbf16> to vector<8x16x4xbf16>
    %84 = vector.shape_cast %83 : vector<8x16x4xbf16> to vector<128x4xbf16>
    %c0_80 = arith.constant 0 : index
    %c0_81 = arith.constant 0 : index
    %85 = vector.load %arg6[%c0_80, %c0_81] : memref<128x128xf32, #tpu.memory_space<vmem>>, vector<128x128xf32>
    %c7 = arith.constant 7 : index
    %c0_82 = arith.constant 0 : index
    %c0_83 = arith.constant 0 : index
    %86 = vector.load %arg3[%c7, %c0_82, %c0_83] : memref<9x4x128xbf16, #tpu.memory_space<vmem>>, vector<1x4x128xbf16>
    %87 = vector.shape_cast %86 : vector<1x4x128xbf16> to vector<4x128xbf16>
    %cst_84 = arith.constant dense<0.000000e+00> : vector<128x128xf32>
    %88 = tpu.matmul %84, %87, %cst_84 {dimension_numbers = #tpu.dot_dimension_numbers<[1], [0], [0], [1], [0, 0, 1, 1], [], []>} : vector<128x4xbf16>, vector<4x128xbf16>, vector<128x128xf32> -> vector<128x128xf32>
    %89 = arith.addf %85, %88 : vector<128x128xf32>
    %c0_85 = arith.constant 0 : index
    %c0_86 = arith.constant 0 : index
    %90 = vector.load %arg6[%c0_85, %c0_86] : memref<128x128xf32, #tpu.memory_space<vmem>>, vector<128x128xf32>
    tpu.vector_store %arg6[%c0_85, %c0_86], %89 {strides = array<i32>} : memref<128x128xf32, #tpu.memory_space<vmem>>, vector<128x128xf32>,
    %c2_i32_87 = arith.constant 2 : i32
    %91 = arith.addi %0, %c2_i32_87 : i32
    %c0_88 = arith.constant 0 : index
    %92 = arith.index_cast %91 : i32 to index
    %c2_89 = arith.constant 2 : index
    %c0_90 = arith.constant 0 : index
    %93 = vector.load %arg2[%c0_88, %92, %c2_89, %c0_90] : memref<1x18x18x4xbf16, #tpu.memory_space<vmem>>, vector<1x8x16x4xbf16>
    %94 = vector.shape_cast %93 : vector<1x8x16x4xbf16> to vector<8x16x4xbf16>
    %95 = vector.shape_cast %94 : vector<8x16x4xbf16> to vector<128x4xbf16>
    %c0_91 = arith.constant 0 : index
    %c0_92 = arith.constant 0 : index
    %96 = vector.load %arg6[%c0_91, %c0_92] : memref<128x128xf32, #tpu.memory_space<vmem>>, vector<128x128xf32>
    %c8 = arith.constant 8 : index
    %c0_93 = arith.constant 0 : index
    %c0_94 = arith.constant 0 : index
    %97 = vector.load %arg3[%c8, %c0_93, %c0_94] : memref<9x4x128xbf16, #tpu.memory_space<vmem>>, vector<1x4x128xbf16>
    %98 = vector.shape_cast %97 : vector<1x4x128xbf16> to vector<4x128xbf16>
    %cst_95 = arith.constant dense<0.000000e+00> : vector<128x128xf32>
    %99 = tpu.matmul %95, %98, %cst_95 {dimension_numbers = #tpu.dot_dimension_numbers<[1], [0], [0], [1], [0, 0, 1, 1], [], []>} : vector<128x4xbf16>, vector<4x128xbf16>, vector<128x128xf32> -> vector<128x128xf32>
    %100 = arith.addf %96, %99 : vector<128x128xf32>
    %c0_96 = arith.constant 0 : index
    %c0_97 = arith.constant 0 : index
    %101 = vector.load %arg6[%c0_96, %c0_97] : memref<128x128xf32, #tpu.memory_space<vmem>>, vector<128x128xf32>
    tpu.vector_store %arg6[%c0_96, %c0_97], %100 {strides = array<i32>} : memref<128x128xf32, #tpu.memory_space<vmem>>, vector<128x128xf32>,
    %c0_98 = arith.constant 0 : index
    %c0_99 = arith.constant 0 : index
    %102 = vector.load %arg6[%c0_98, %c0_99] : memref<128x128xf32, #tpu.memory_space<vmem>>, vector<128x128xf32>
    %c0_100 = arith.constant 0 : index
    %c0_101 = arith.constant 0 : index
    %103 = vector.load %arg4[%c0_100, %c0_101] : memref<1x128xf32, #tpu.memory_space<vmem>>, vector<1x128xf32>
    %104 = vector.broadcast %103 : vector<1x128xf32> to vector<128x128xf32>
    %105 = arith.addf %102, %104 : vector<128x128xf32>
    %c0_102 = arith.constant 0 : index
    %c0_103 = arith.constant 0 : index
    %c0_104 = arith.constant 0 : index
    %c0_105 = arith.constant 0 : index
    %106 = vector.load %arg5[%c0_102, %c0_103, %c0_104, %c0_105] : memref<1x1x128x128xf32, #tpu.memory_space<vmem>>, vector<1x1x128x128xf32>
    %107 = vector.shape_cast %106 : vector<1x1x128x128xf32> to vector<128x128xf32>
    %108 = vector.shape_cast %105 : vector<128x128xf32> to vector<1x1x128x128xf32>
    tpu.vector_store %arg5[%c0_102, %c0_103, %c0_104, %c0_105], %108 {strides = array<i32>} : memref<1x1x128x128xf32, #tpu.memory_space<vmem>>, vector<1x1x128x128xf32>,
    return
  }
  func.func @transform_0(%arg0: i32, %arg1: i32) -> (i32, i32, i32, i32) {
    %c0_i32 = arith.constant 0 : i32
    %c0_i32_0 = arith.constant 0 : i32
    %c0_i32_1 = arith.constant 0 : i32
    %c0_i32_2 = arith.constant 0 : i32
    return %arg0, %c0_i32, %c0_i32_0, %c0_i32_1 : i32, i32, i32, i32
  }
  func.func @transform_1(%arg0: i32, %arg1: i32) -> (i32, i32, i32) {
    %c0_i32 = arith.constant 0 : i32
    %c0_i32_0 = arith.constant 0 : i32
    %c0_i32_1 = arith.constant 0 : i32
    %c0_i32_2 = arith.constant 0 : i32
    return %c0_i32, %c0_i32_0, %c0_i32_1 : i32, i32, i32
  }
  func.func @transform_2(%arg0: i32, %arg1: i32) -> (i32, i32) {
    %c0_i32 = arith.constant 0 : i32
    %c0_i32_0 = arith.constant 0 : i32
    %c0_i32_1 = arith.constant 0 : i32
    return %c0_i32, %c0_i32_0 : i32, i32
  }
  func.func @transform_3(%arg0: i32, %arg1: i32) -> (i32, i32, i32, i32) {
    %c0_i32 = arith.constant 0 : i32
    %c0_i32_0 = arith.constant 0 : i32
    %c0_i32_1 = arith.constant 0 : i32
    return %arg0, %arg1, %c0_i32, %c0_i32_0 : i32, i32, i32, i32
  }
}

</mosaic_0001>

<llo_original>
// kernel: tpu_custom_call.1
$region0: #{tpu_custom_call.1}
  #allocation0 [shape = 'u32[]', space=smem, size = 0x4, offset = 0x4, fixed_abs, tag = 'smem constant byte address 0x4 - core index']
  #allocation1 [shape = 'u32[144,128]{1,0:T(1,128)}', space=vmem, size = 0x12000, scoped, tag = 'internal scratch']
  #allocation2 [shape = 'f32[128,128]{1,0:T(8,128)}', space=vmem, size = 0x10000, scoped, tag = 'scratch operand']
  %s0 = inlined_call_operand.vmem [shape: bf16[2,18,18,4], index: 0, kind: input, shape index: {}]
  %s1 = inlined_call_operand.vmem [shape: bf16[9,4,128], index: 1, kind: input, shape index: {}]
  %s2 = inlined_call_operand.vmem [shape: f32[1,128], index: 2, kind: input, shape index: {}]
  %s3 = inlined_call_operand.hbm [shape: f32[2,2,128,128], index: 3, kind: output, shape index: {}]
  %s4 = sld [smem:[#allocation0]]
  $region45: #{tpu_custom_call.1} parent=0
    _
  %s6 = ssub.s32 1, %s4
  %s7 = scalar_select 0, %s6, %s4
  $region1: #{tpu_custom_call.1} parent=0
    #allocation3 [shape = 'u8[131072]{0}', space=vmem, size = 0x20000, scoped, tag = 'output window, operand 0']
    #allocation4 [shape = 's32[2]{0}', space=sflag, size = 0x8, scoped, tag = 'scoped memory for tpu_custom_call.1']
    %8 = vsyncpa [#allocation4], 0
    %s9 = scalar_lea.sflag [#allocation4], 1
    %10 = vsyncpa %s9, 0
    loop: start=0, step=1, limit=6
    $region2: #{tpu_custom_call.1} parent=1 // loop_pre_header
      _
    $region3: #{tpu_custom_call.1} parent=1 // loop_header
      %s12 = sphi 0, %s16
      %p13 = scmp.ge.s32.totalorder %s12, 6
      %s19 = sphi 0, %s31
      %s20 = sphi 0, %s27
      %s21 = sphi 0, %s19
      %s22 = sphi 0, %s20
      %s23 = sphi 0, %s21
      %s24 = sphi 0, %s22
      %s34 = sphi 0, %s36
      %s37 = sphi 0, %s34
      %s38 = sphi 0, %s37
      %s54 = sphi 0, %s38
      %s58 = sphi 0, %s58
      %s60 = sphi 0, %s58
      %s61 = sphi 0, %s60
      %s75 = sphi 0, %s61
      %s79 = sphi 0, %s79
      %s81 = sphi 0, %s79
      %s82 = sphi 0, %s81
      %s96 = sphi 0, %s82
      %s104 = sphi 0, %s106
      %s107 = sphi 0, %s104
      %s108 = sphi 0, %s107
      %s124 = sphi 0, %s108
    $region4: #{tpu_custom_call.1} parent=1 // loop_header_branch
      %15 = sbr.rel (%p13) target = $region8
    $region5: #{tpu_custom_call.1} parent=1 // loop_body
      %s17 = ssub.s32 %s12, 1
      %s18 = ssub.s32 %s12, 2
      %s25 = sadd.s32 1, %s20
      %p26 = scmp.ge.s32.totalorder %s25, 2
      %s27 = scalar_select %p26, 0, %s25
      %s28 = sadd.s32 1, %s19
      %s29 = scalar_select %p26, %s28, %s19
      %p30 = scmp.ge.s32.totalorder %s29, 2
      %s31 = scalar_select %p30, 0, %s29
      %s32 = ssub.s32 %s19, %s31
      %p33 = scmp.eq.s32.totalorder %s32, 0
      %s35 = sadd.s32 %s34, 1
      %s36 = scalar_select %p33, %s34, %s35
      %p39 = pneg %p33
      %p40 = scmp.eq.s32.totalorder %s12, 3
      %p41 = por %p39, %p40
      %p42 = scmp.ne.s32.totalorder %s34, %s37
      %p43 = scmp.eq.s32.totalorder %s12, 0
      %p44 = por %p42, %p43
      %p45 = scmp.ne.s32.totalorder %s34, %s37
      %p46 = scmp.eq.s32.totalorder %s17, 3
      %p47 = por %p45, %p46
      %p48 = scmp.ne.s32.totalorder %s37, %s38
      %p49 = scmp.eq.s32.totalorder %s17, 0
      %p50 = por %p48, %p49
      %p51 = scmp.ne.s32.totalorder %s37, %s38
      %p52 = scmp.eq.s32.totalorder %s18, 3
      %p53 = por %p51, %p52
      %p55 = scmp.ne.s32.totalorder %s38, %s54
      %p56 = scmp.eq.s32.totalorder %s18, 0
      %p57 = por %p55, %p56
      %s59 = sadd.s32 %s58, 1
      %p62 = scmp.eq.s32.totalorder %s12, 3
      %p63 = scmp.ne.s32.totalorder %s58, %s60
      %p64 = scmp.eq.s32.totalorder %s12, 0
      %p65 = por %p63, %p64
      %p66 = scmp.ne.s32.totalorder %s58, %s60
      %p67 = scmp.eq.s32.totalorder %s17, 3
      %p68 = por %p66, %p67
      %p69 = scmp.ne.s32.totalorder %s60, %s61
      %p70 = scmp.eq.s32.totalorder %s17, 0
      %p71 = por %p69, %p70
      %p72 = scmp.ne.s32.totalorder %s60, %s61
      %p73 = scmp.eq.s32.totalorder %s18, 3
      %p74 = por %p72, %p73
      %p76 = scmp.ne.s32.totalorder %s61, %s75
      %p77 = scmp.eq.s32.totalorder %s18, 0
      %p78 = por %p76, %p77
      %s80 = sadd.s32 %s79, 1
      %p83 = scmp.eq.s32.totalorder %s12, 3
      %p84 = scmp.ne.s32.totalorder %s79, %s81
      %p85 = scmp.eq.s32.totalorder %s12, 0
      %p86 = por %p84, %p85
      %p87 = scmp.ne.s32.totalorder %s79, %s81
      %p88 = scmp.eq.s32.totalorder %s17, 3
      %p89 = por %p87, %p88
      %p90 = scmp.ne.s32.totalorder %s81, %s82
      %p91 = scmp.eq.s32.totalorder %s17, 0
      %p92 = por %p90, %p91
      %p93 = scmp.ne.s32.totalorder %s81, %s82
      %p94 = scmp.eq.s32.totalorder %s18, 3
      %p95 = por %p93, %p94
      %p97 = scmp.ne.s32.totalorder %s82, %s96
      %p98 = scmp.eq.s32.totalorder %s18, 0
      %p99 = por %p97, %p98
      %s100 = ssub.s32 %s19, %s31
      %s101 = ssub.s32 %s20, %s27
      %s102 = sor.u32 %s100, %s101
      %p103 = scmp.eq.s32.totalorder %s102, 0
      %s105 = sadd.s32 %s104, 1
      %s106 = scalar_select %p103, %s104, %s105
      %p109 = pneg %p103
      %p110 = scmp.eq.s32.totalorder %s12, 3
      %p111 = por %p109, %p110
      %p112 = scmp.ne.s32.totalorder %s104, %s107
      %p113 = scmp.eq.s32.totalorder %s12, 0
      %p114 = por %p112, %p113
      %p115 = scmp.ne.s32.totalorder %s104, %s107
      %p116 = scmp.eq.s32.totalorder %s17, 3
      %p117 = por %p115, %p116
      %p118 = scmp.ne.s32.totalorder %s107, %s108
      %p119 = scmp.eq.s32.totalorder %s17, 0
      %p120 = por %p118, %p119
      %p121 = scmp.ne.s32.totalorder %s107, %s108
      %p122 = scmp.eq.s32.totalorder %s18, 3
      %p123 = por %p121, %p122
      %p125 = scmp.ne.s32.totalorder %s108, %s124
      %p126 = scmp.eq.s32.totalorder %s18, 0
      %p127 = por %p125, %p126
      %p128 = scmp.le.s32.totalorder 1, %s12
      %p129 = scmp.lt.s32.totalorder %s12, 5
      %p130 = pnand %p128, %p129
      %p131 = pneg %p130
      // Predicated region
      $region9: #{tpu_custom_call.1} parent=5 // pred_check
        _
      $region10: #{tpu_custom_call.1} parent=5 // pred_check_branch
        %133 = sbr.rel (%p130) target = $region12
      $region11: #{tpu_custom_call.1} parent=5 // pred_region
        %s134 = ssub.s32 %s12, 1
        // Predicated region
        $region13: #{tpu_custom_call.1} parent=11 // pred_check
          %p135 = pneg %p71
        $region14: #{tpu_custom_call.1} parent=11 // pred_check_branch
          %137 = sbr.rel (%p135) target = $region16
        $region15: #{tpu_custom_call.1} parent=11 // pred_region
          _
        $region16: #{tpu_custom_call.1} parent=11 // pred_fallthru
          _
        // Predicated region
        $region17: #{tpu_custom_call.1} parent=11 // pred_check
          %p138 = pneg %p92
        $region18: #{tpu_custom_call.1} parent=11 // pred_check_branch
          %140 = sbr.rel (%p138) target = $region20
        $region19: #{tpu_custom_call.1} parent=11 // pred_region
          _
        $region20: #{tpu_custom_call.1} parent=11 // pred_fallthru
          _
      $region12: #{tpu_custom_call.1} parent=5 // pred_fallthru
        _
      %p141 = scmp.lt.s32.totalorder %s12, 4
      // Predicated region
      $region21: #{tpu_custom_call.1} parent=5 // pred_check
        %p142 = pneg %p141
      $region22: #{tpu_custom_call.1} parent=5 // pred_check_branch
        %144 = sbr.rel (%p142) target = $region24
      $region23: #{tpu_custom_call.1} parent=5 // pred_region
        // Predicated region
        $region25: #{tpu_custom_call.1} parent=23 // pred_check
          %p145 = pneg %p44
        $region26: #{tpu_custom_call.1} parent=23 // pred_check_branch
          %147 = sbr.rel (%p145) target = $region28
        $region27: #{tpu_custom_call.1} parent=23 // pred_region
          %p148 = scmp.lt.s32.totalorder %s19, 1
          %s149 = scalar_select %p148, %s19, 1
          %s150 = smul.addr %s149, 54
          %s151 = smul.addr %s150, 4
          %s152 = scalar_lea.vmem %s0, %s151
        $region28: #{tpu_custom_call.1} parent=23 // pred_fallthru
          _
      $region24: #{tpu_custom_call.1} parent=5 // pred_fallthru
        _
      %p153 = scmp.le.s32.totalorder 1, %s12
      %p154 = scmp.lt.s32.totalorder %s12, 5
      %p155 = pnand %p153, %p154
      %p156 = pneg %p155
      // Predicated region
      $region29: #{tpu_custom_call.1} parent=5 // pred_check
        _
      $region30: #{tpu_custom_call.1} parent=5 // pred_check_branch
        %158 = sbr.rel (%p155) target = $region32
      $region31: #{tpu_custom_call.1} parent=5 // pred_region
        %s159 = ssub.s32 %s12, 1
        %p160 = scmp.lt.s32.totalorder %s21, 1
        %s161 = scalar_select %p160, %s21, 1
        %s162 = smul.addr %s161, 54
        %s163 = smul.addr %s162, 4
        %s164 = scalar_lea.vmem %s0, %s163
        %p165 = pneg %p50
        %p166 = pneg %p47
        %p167 = pneg %p71
        %p168 = pneg %p68
        %p169 = pneg %p92
        %p170 = pneg %p89
        %p171 = pneg %p120
        %p172 = pneg %p117
        %s173 = sand.u32 %s107, 1
        %s174 = scalar_lea.sflag [#allocation4], %s173
        %s175 = sand.u32 %s107, 1
        %s176 = smul.addr %s175, 128
        %s177 = scalar_lea.vmem [#allocation3], %s176
        %p178 = scmp.lt.s32.totalorder %s21, 1
        %s179 = scalar_select %p178, %s21, 1
        %s180 = smul.addr %s179, 54
        %s181 = smul.addr %s180, 4
        %s182 = scalar_lea.vmem %s0, %s181
        %s184 = smul.u32 %s22, 8
        %185 = vst [vmem:[#allocation2] sm:$0xff] 0.0
        %186 = vst [vmem:[#allocation2 + $0x8] sm:$0xff] 0.0
        %187 = vst [vmem:[#allocation2 + $0x10] sm:$0xff] 0.0
        %188 = vst [vmem:[#allocation2 + $0x18] sm:$0xff] 0.0
        %189 = vst [vmem:[#allocation2 + $0x20] sm:$0xff] 0.0
        %190 = vst [vmem:[#allocation2 + $0x28] sm:$0xff] 0.0
        %191 = vst [vmem:[#allocation2 + $0x30] sm:$0xff] 0.0
        %192 = vst [vmem:[#allocation2 + $0x38] sm:$0xff] 0.0
        %193 = vst [vmem:[#allocation2 + $0x40] sm:$0xff] 0.0
        %194 = vst [vmem:[#allocation2 + $0x48] sm:$0xff] 0.0
        %195 = vst [vmem:[#allocation2 + $0x50] sm:$0xff] 0.0
        %196 = vst [vmem:[#allocation2 + $0x58] sm:$0xff] 0.0
        %197 = vst [vmem:[#allocation2 + $0x60] sm:$0xff] 0.0
        %198 = vst [vmem:[#allocation2 + $0x68] sm:$0xff] 0.0
        %199 = vst [vmem:[#allocation2 + $0x70] sm:$0xff] 0.0
        %200 = vst [vmem:[#allocation2 + $0x78] sm:$0xff] 0.0
        %s201 = smul.u32 %s184, 3
        %s202 = smul.addr %s201, 4
        %s203 = scalar_lea.vmem %s182, %s202
        %v204 = vld [vmem:[%s203] sm:$0xf]
        %v205 = vld [vmem:[%s203 + $0x4] sm:$0xf]
        %v206 = vld [vmem:[%s203 + $0xc] sm:$0xf]
        %v207 = vld [vmem:[%s203 + $0x10] sm:$0xf]
        %v208 = vld [vmem:[%s203 + $0x18] sm:$0xf]
        %v209 = vld [vmem:[%s203 + $0x1c] sm:$0xf]
        %v210 = vld [vmem:[%s203 + $0x24] sm:$0xf]
        %v211 = vld [vmem:[%s203 + $0x28] sm:$0xf]
        %v212 = vld [vmem:[%s203 + $0x30] sm:$0xf]
        %v213 = vld [vmem:[%s203 + $0x34] sm:$0xf]
        %v214 = vld [vmem:[%s203 + $0x3c] sm:$0xf]
        %v215 = vld [vmem:[%s203 + $0x40] sm:$0xf]
        %v216 = vld [vmem:[%s203 + $0x48] sm:$0xf]
        %v217 = vld [vmem:[%s203 + $0x4c] sm:$0xf]
        %v218 = vld [vmem:[%s203 + $0x54] sm:$0xf]
        %v219 = vld [vmem:[%s203 + $0x58] sm:$0xf]
        %v220 = vld [vmem:[#allocation2] sm:$0xff]
        %v221 = vld [vmem:[#allocation2 + $0x8] sm:$0xff]
        %v222 = vld [vmem:[#allocation2 + $0x10] sm:$0xff]
        %v223 = vld [vmem:[#allocation2 + $0x18] sm:$0xff]
        %v224 = vld [vmem:[#allocation2 + $0x20] sm:$0xff]
        %v225 = vld [vmem:[#allocation2 + $0x28] sm:$0xff]
        %v226 = vld [vmem:[#allocation2 + $0x30] sm:$0xff]
        %v227 = vld [vmem:[#allocation2 + $0x38] sm:$0xff]
        %v228 = vld [vmem:[#allocation2 + $0x40] sm:$0xff]
        %v229 = vld [vmem:[#allocation2 + $0x48] sm:$0xff]
        %v230 = vld [vmem:[#allocation2 + $0x50] sm:$0xff]
        %v231 = vld [vmem:[#allocation2 + $0x58] sm:$0xff]
        %v232 = vld [vmem:[#allocation2 + $0x60] sm:$0xff]
        %v233 = vld [vmem:[#allocation2 + $0x68] sm:$0xff]
        %v234 = vld [vmem:[#allocation2 + $0x70] sm:$0xff]
        %v235 = vld [vmem:[#allocation2 + $0x78] sm:$0xff]
        %v236 = vld [vmem:[%s1] sm:$0x3]
        %v253 = vunpack.c.l.b16 %v204
        %v254 = vunpack.c.l.b16 %v205
        %v255 = vunpack.c.l.b16 %v206
        %v256 = vunpack.c.l.b16 %v207
        %v257 = vunpack.c.l.b16 %v208
        %v258 = vunpack.c.l.b16 %v209
        %v259 = vunpack.c.l.b16 %v210
        %v260 = vunpack.c.l.b16 %v211
        %v261 = vunpack.c.l.b16 %v212
        %v262 = vunpack.c.l.b16 %v213
        %v263 = vunpack.c.l.b16 %v214
        %v264 = vunpack.c.l.b16 %v215
        %v265 = vunpack.c.l.b16 %v216
        %v266 = vunpack.c.l.b16 %v217
        %v267 = vunpack.c.l.b16 %v218
        %v268 = vunpack.c.l.b16 %v219
        %v269 = vpack.c.b16 %v254, %v253
        %v270 = vpack.c.b16 %v256, %v255
        %v271 = vpack.c.b16 %v258, %v257
        %v272 = vpack.c.b16 %v260, %v259
        %v273 = vpack.c.b16 %v262, %v261
        %v274 = vpack.c.b16 %v264, %v263
        %v275 = vpack.c.b16 %v266, %v265
        %v276 = vpack.c.b16 %v268, %v267
        %vm277 = vcmask 31744
        %v279 = vsel %vm277, %v269, 0
        %v282 = vsel %vm277, %v270, 0
        %v285 = vsel %vm277, %v271, 0
        %v288 = vsel %vm277, %v272, 0
        %v291 = vsel %vm277, %v273, 0
        %v294 = vsel %vm277, %v274, 0
        %v297 = vsel %vm277, %v275, 0
        %v300 = vsel %vm277, %v276, 0
        %vm302 = vcmask 1041408
        %v304 = vsel %vm302, %v236, 0
        %306 = vmatprep.subr.bf16.mxu0 0
        %307 = vmatpush1.bf16.msra.mxu0 %v304
        %308 = vmatprep.subr.bf16.mxu0 0
        %309 = vmatpush1.bf16.msra.mxu0 0
        %310 = vmatprep.subr.bf16.mxu0 0
        %311 = vmatpush1.bf16.msra.mxu0 0
        %312 = vmatprep.subr.bf16.mxu0 0
        %313 = vmatpush1.bf16.msra.mxu0 0
        %314 = vmatprep.subr.bf16.mxu0 0
        %315 = vmatpush1.bf16.msra.mxu0 0
        %316 = vmatprep.subr.bf16.mxu0 0
        %317 = vmatpush1.bf16.msra.mxu0 0
        %318 = vmatprep.subr.bf16.mxu0 0
        %319 = vmatpush1.bf16.msra.mxu0 0
        %320 = vmatprep.subr.bf16.mxu0 0
        %321 = vmatpush1.bf16.msra.mxu0 0
        %322 = vmatprep.subr.bf16.mxu0 0
        %323 = vmatpush1.bf16.msra.mxu0 0
        %324 = vmatprep.subr.bf16.mxu0 0
        %325 = vmatpush1.bf16.msra.mxu0 0
        %326 = vmatprep.subr.bf16.mxu0 0
        %327 = vmatpush1.bf16.msra.mxu0 0
        %328 = vmatprep.subr.bf16.mxu0 0
        %329 = vmatpush1.bf16.msra.mxu0 0
        %330 = vmatprep.subr.bf16.mxu0 0
        %331 = vmatpush1.bf16.msra.mxu0 0
        %332 = vmatprep.subr.bf16.mxu0 0
        %333 = vmatpush1.bf16.msra.mxu0 0
        %334 = vmatprep.subr.bf16.mxu0 0
        %335 = vmatpush1.bf16.msra.mxu0 0
        %336 = vmatprep.subr.bf16.mxu0 0
        %337 = vmatpush1.bf16.msra.mxu0 0
        %338 = vmatprep.mubr.bf16.mxu0 0
        %339 = vmatmul.mubr.bf16.gmra.mrb[0].mxu0 %v279
        %v340 = vpop.f32.mrb[0].mxu0
        %v341 = vadd.f32 0.0, %v340
        %v342 = vpop.f32.mrb[0].mxu0
        %v343 = vpop.f32.mrb[0].mxu0
        %v344 = vadd.f32 0.0, %v343
        %v345 = vpop.f32.mrb[0].mxu0
        %346 = vmatprep.mubr.bf16.mxu0 0
        %347 = vmatmul.mubr.bf16.gmra.mrb[0].mxu0 %v282
        %v348 = vpop.f32.mrb[0].mxu0
        %v349 = vadd.f32 0.0, %v348
        %v350 = vpop.f32.mrb[0].mxu0
        %v351 = vpop.f32.mrb[0].mxu0
        %v352 = vadd.f32 0.0, %v351
        %v353 = vpop.f32.mrb[0].mxu0
        %354 = vmatprep.mubr.bf16.mxu0 0
        %355 = vmatmul.mubr.bf16.gmra.mrb[0].mxu0 %v285
        %v356 = vpop.f32.mrb[0].mxu0
        %v357 = vadd.f32 0.0, %v356
        %v358 = vpop.f32.mrb[0].mxu0
        %v359 = vpop.f32.mrb[0].mxu0
        %v360 = vadd.f32 0.0, %v359
        %v361 = vpop.f32.mrb[0].mxu0
        %362 = vmatprep.mubr.bf16.mxu0 0
        %363 = vmatmul.mubr.bf16.gmra.mrb[0].mxu0 %v288
        %v364 = vpop.f32.mrb[0].mxu0
        %v365 = vadd.f32 0.0, %v364
        %v366 = vpop.f32.mrb[0].mxu0
        %v367 = vpop.f32.mrb[0].mxu0
        %v368 = vadd.f32 0.0, %v367
        %v369 = vpop.f32.mrb[0].mxu0
        %370 = vmatprep.mubr.bf16.mxu0 0
        %371 = vmatmul.mubr.bf16.gmra.mrb[0].mxu0 %v291
        %v372 = vpop.f32.mrb[0].mxu0
        %v373 = vadd.f32 0.0, %v372
        %v374 = vpop.f32.mrb[0].mxu0
        %v375 = vpop.f32.mrb[0].mxu0
        %v376 = vadd.f32 0.0, %v375
        %v377 = vpop.f32.mrb[0].mxu0
        %378 = vmatprep.mubr.bf16.mxu0 0
        %379 = vmatmul.mubr.bf16.gmra.mrb[0].mxu0 %v294
        %v380 = vpop.f32.mrb[0].mxu0
        %v381 = vadd.f32 0.0, %v380
        %v382 = vpop.f32.mrb[0].mxu0
        %v383 = vpop.f32.mrb[0].mxu0
        %v384 = vadd.f32 0.0, %v383
        %v385 = vpop.f32.mrb[0].mxu0
        %386 = vmatprep.mubr.bf16.mxu0 0
        %387 = vmatmul.mubr.bf16.gmra.mrb[0].mxu0 %v297
        %v388 = vpop.f32.mrb[0].mxu0
        %v389 = vadd.f32 0.0, %v388
        %v390 = vpop.f32.mrb[0].mxu0
        %v391 = vpop.f32.mrb[0].mxu0
        %v392 = vadd.f32 0.0, %v391
        %v393 = vpop.f32.mrb[0].mxu0
        %394 = vmatprep.mubr.bf16.mxu0 0
        %395 = vmatmul.mubr.bf16.gmra.mrb[0].mxu0 %v300
        %v396 = vpop.f32.mrb[0].mxu0
        %v397 = vadd.f32 0.0, %v396
        %v398 = vpop.f32.mrb[0].mxu0
        %v399 = vpop.f32.mrb[0].mxu0
        %v400 = vadd.f32 0.0, %v399
        %v401 = vpop.f32.mrb[0].mxu0
        %402 = vdwg.mxu0
        %v403 = vadd.f32 %v220, %v341
        %v404 = vadd.f32 %v221, %v344
        %v405 = vadd.f32 %v222, %v349
        %v406 = vadd.f32 %v223, %v352
        %v407 = vadd.f32 %v224, %v357
        %v408 = vadd.f32 %v225, %v360
        %v409 = vadd.f32 %v226, %v365
        %v410 = vadd.f32 %v227, %v368
        %v411 = vadd.f32 %v228, %v373
        %v412 = vadd.f32 %v229, %v376
        %v413 = vadd.f32 %v230, %v381
        %v414 = vadd.f32 %v231, %v384
        %v415 = vadd.f32 %v232, %v389
        %v416 = vadd.f32 %v233, %v392
        %v417 = vadd.f32 %v234, %v397
        %v418 = vadd.f32 %v235, %v400
        %419 = vst [vmem:[#allocation2] sm:$0xff] %v403
        %420 = vst [vmem:[#allocation2 + $0x8] sm:$0xff] %v404
        %421 = vst [vmem:[#allocation2 + $0x10] sm:$0xff] %v405
        %422 = vst [vmem:[#allocation2 + $0x18] sm:$0xff] %v406
        %423 = vst [vmem:[#allocation2 + $0x20] sm:$0xff] %v407
        %424 = vst [vmem:[#allocation2 + $0x28] sm:$0xff] %v408
        %425 = vst [vmem:[#allocation2 + $0x30] sm:$0xff] %v409
        %426 = vst [vmem:[#allocation2 + $0x38] sm:$0xff] %v410
        %427 = vst [vmem:[#allocation2 + $0x40] sm:$0xff] %v411
        %428 = vst [vmem:[#allocation2 + $0x48] sm:$0xff] %v412
        %429 = vst [vmem:[#allocation2 + $0x50] sm:$0xff] %v413
        %430 = vst [vmem:[#allocation2 + $0x58] sm:$0xff] %v414
        %431 = vst [vmem:[#allocation2 + $0x60] sm:$0xff] %v415
        %432 = vst [vmem:[#allocation2 + $0x68] sm:$0xff] %v416
        %433 = vst [vmem:[#allocation2 + $0x70] sm:$0xff] %v417
        %434 = vst [vmem:[#allocation2 + $0x78] sm:$0xff] %v418
        %v435 = vld [vmem:[%s203] sm:$0xf]
        %v436 = vld [vmem:[%s203 + $0x4] sm:$0xf]
        %v437 = vld [vmem:[%s203 + $0x8] sm:$0x1]
        %v438 = vld [vmem:[%s203 + $0xc] sm:$0xf]
        %v439 = vld [vmem:[%s203 + $0x10] sm:$0xf]
        %v440 = vld [vmem:[%s203 + $0x14] sm:$0x1]
        %v441 = vld [vmem:[%s203 + $0x18] sm:$0xf]
        %v442 = vld [vmem:[%s203 + $0x1c] sm:$0xf]
        %v443 = vld [vmem:[%s203 + $0x20] sm:$0x1]
        %v444 = vld [vmem:[%s203 + $0x24] sm:$0xf]
        %v445 = vld [vmem:[%s203 + $0x28] sm:$0xf]
        %v446 = vld [vmem:[%s203 + $0x2c] sm:$0x1]
        %v447 = vld [vmem:[%s203 + $0x30] sm:$0xf]
        %v448 = vld [vmem:[%s203 + $0x34] sm:$0xf]
        %v449 = vld [vmem:[%s203 + $0x38] sm:$0x1]
        %v450 = vld [vmem:[%s203 + $0x3c] sm:$0xf]
        %v451 = vld [vmem:[%s203 + $0x40] sm:$0xf]
        %v452 = vld [vmem:[%s203 + $0x44] sm:$0x1]
        %v453 = vld [vmem:[%s203 + $0x48] sm:$0xf]
        %v454 = vld [vmem:[%s203 + $0x4c] sm:$0xf]
        %v455 = vld [vmem:[%s203 + $0x50] sm:$0x1]
        %v456 = vld [vmem:[%s203 + $0x54] sm:$0xf]
        %v457 = vld [vmem:[%s203 + $0x58] sm:$0xf]
        %v458 = vld [vmem:[%s203 + $0x5c] sm:$0x1]
        %vm459 = vsmask.f32 3328
        %vm460 = vsmask.f32 7440
        %vm461 = vmor %vm459, %vm460
        %v463 = vshrl.u32 %v435, 16
        %v465 = vrot.slane %v463, 4
        %v466 = vshll.u32 %v435, 16
        %v468 = vrot.slane %v466, 5
        %v469 = vor.u32 %v465, %v468
        %v470 = vrot.slane %v469, 4
        %v472 = vshll.u32 %v436, 16
        %v474 = vrot.slane %v472, 5
        %v475 = vsel %vm461, %v470, %v474
        %v476 = vshrl.u32 %v436, 16
        %v478 = vrot.slane %v476, 4
        %v479 = vor.u32 %v478, %v474
        %v480 = vrot.slane %v479, 4
        %v482 = vshll.u32 %v437, 16
        %v484 = vrot.slane %v482, 5
        %v485 = vsel %vm461, %v480, %v484
        %v487 = vshrl.u32 %v438, 16
        %v489 = vrot.slane %v487, 4
        %v490 = vshll.u32 %v438, 16
        %v492 = vrot.slane %v490, 5
        %v493 = vor.u32 %v489, %v492
        %v494 = vrot.slane %v493, 4
        %v496 = vshll.u32 %v439, 16
        %v498 = vrot.slane %v496, 5
        %v499 = vsel %vm461, %v494, %v498
        %v500 = vshrl.u32 %v439, 16
        %v502 = vrot.slane %v500, 4
        %v503 = vor.u32 %v502, %v498
        %v504 = vrot.slane %v503, 4
        %v506 = vshll.u32 %v440, 16
        %v508 = vrot.slane %v506, 5
        %v509 = vsel %vm461, %v504, %v508
        %v511 = vshrl.u32 %v441, 16
        %v513 = vrot.slane %v511, 4
        %v514 = vshll.u32 %v441, 16
        %v516 = vrot.slane %v514, 5
        %v517 = vor.u32 %v513, %v516
        %v518 = vrot.slane %v517, 4
        %v520 = vshll.u32 %v442, 16
        %v522 = vrot.slane %v520, 5
        %v523 = vsel %vm461, %v518, %v522
        %v524 = vshrl.u32 %v442, 16
        %v526 = vrot.slane %v524, 4
        %v527 = vor.u32 %v526, %v522
        %v528 = vrot.slane %v527, 4
        %v530 = vshll.u32 %v443, 16
        %v532 = vrot.slane %v530, 5
        %v533 = vsel %vm461, %v528, %v532
        %v535 = vshrl.u32 %v444, 16
        %v537 = vrot.slane %v535, 4
        %v538 = vshll.u32 %v444, 16
        %v540 = vrot.slane %v538, 5
        %v541 = vor.u32 %v537, %v540
        %v542 = vrot.slane %v541, 4
        %v544 = vshll.u32 %v445, 16
        %v546 = vrot.slane %v544, 5
        %v547 = vsel %vm461, %v542, %v546
        %v548 = vshrl.u32 %v445, 16
        %v550 = vrot.slane %v548, 4
        %v551 = vor.u32 %v550, %v546
        %v552 = vrot.slane %v551, 4
        %v554 = vshll.u32 %v446, 16
        %v556 = vrot.slane %v554, 5
        %v557 = vsel %vm461, %v552, %v556
        %v559 = vshrl.u32 %v447, 16
        %v561 = vrot.slane %v559, 4
        %v562 = vshll.u32 %v447, 16
        %v564 = vrot.slane %v562, 5
        %v565 = vor.u32 %v561, %v564
        %v566 = vrot.slane %v565, 4
        %v568 = vshll.u32 %v448, 16
        %v570 = vrot.slane %v568, 5
        %v571 = vsel %vm461, %v566, %v570
        %v572 = vshrl.u32 %v448, 16
        %v574 = vrot.slane %v572, 4
        %v575 = vor.u32 %v574, %v570
        %v576 = vrot.slane %v575, 4
        %v578 = vshll.u32 %v449, 16
        %v580 = vrot.slane %v578, 5
        %v581 = vsel %vm461, %v576, %v580
        %v583 = vshrl.u32 %v450, 16
        %v585 = vrot.slane %v583, 4
        %v586 = vshll.u32 %v450, 16
        %v588 = vrot.slane %v586, 5
        %v589 = vor.u32 %v585, %v588
        %v590 = vrot.slane %v589, 4
        %v592 = vshll.u32 %v451, 16
        %v594 = vrot.slane %v592, 5
        %v595 = vsel %vm461, %v590, %v594
        %v596 = vshrl.u32 %v451, 16
        %v598 = vrot.slane %v596, 4
        %v599 = vor.u32 %v598, %v594
        %v600 = vrot.slane %v599, 4
        %v602 = vshll.u32 %v452, 16
        %v604 = vrot.slane %v602, 5
        %v605 = vsel %vm461, %v600, %v604
        %v607 = vshrl.u32 %v453, 16
        %v609 = vrot.slane %v607, 4
        %v610 = vshll.u32 %v453, 16
        %v612 = vrot.slane %v610, 5
        %v613 = vor.u32 %v609, %v612
        %v614 = vrot.slane %v613, 4
        %v616 = vshll.u32 %v454, 16
        %v618 = vrot.slane %v616, 5
        %v619 = vsel %vm461, %v614, %v618
        %v620 = vshrl.u32 %v454, 16
        %v622 = vrot.slane %v620, 4
        %v623 = vor.u32 %v622, %v618
        %v624 = vrot.slane %v623, 4
        %v626 = vshll.u32 %v455, 16
        %v628 = vrot.slane %v626, 5
        %v629 = vsel %vm461, %v624, %v628
        %v631 = vshrl.u32 %v456, 16
        %v633 = vrot.slane %v631, 4
        %v634 = vshll.u32 %v456, 16
        %v636 = vrot.slane %v634, 5
        %v637 = vor.u32 %v633, %v636
        %v638 = vrot.slane %v637, 4
        %v640 = vshll.u32 %v457, 16
        %v642 = vrot.slane %v640, 5
        %v643 = vsel %vm461, %v638, %v642
        %v644 = vshrl.u32 %v457, 16
        %v646 = vrot.slane %v644, 4
        %v647 = vor.u32 %v646, %v642
        %v648 = vrot.slane %v647, 4
        %v650 = vshll.u32 %v458, 16
        %v652 = vrot.slane %v650, 5
        %v653 = vsel %vm461, %v648, %v652
        %v654 = vld [vmem:[#allocation2] sm:$0xff]
        %v655 = vld [vmem:[#allocation2 + $0x8] sm:$0xff]
        %v656 = vld [vmem:[#allocation2 + $0x10] sm:$0xff]
        %v657 = vld [vmem:[#allocation2 + $0x18] sm:$0xff]
        %v658 = vld [vmem:[#allocation2 + $0x20] sm:$0xff]
        %v659 = vld [vmem:[#allocation2 + $0x28] sm:$0xff]
        %v660 = vld [vmem:[#allocation2 + $0x30] sm:$0xff]
        %v661 = vld [vmem:[#allocation2 + $0x38] sm:$0xff]
        %v662 = vld [vmem:[#allocation2 + $0x40] sm:$0xff]
        %v663 = vld [vmem:[#allocation2 + $0x48] sm:$0xff]
        %v664 = vld [vmem:[#allocation2 + $0x50] sm:$0xff]
        %v665 = vld [vmem:[#allocation2 + $0x58] sm:$0xff]
        %v666 = vld [vmem:[#allocation2 + $0x60] sm:$0xff]
        %v667 = vld [vmem:[#allocation2 + $0x68] sm:$0xff]
        %v668 = vld [vmem:[#allocation2 + $0x70] sm:$0xff]
        %v669 = vld [vmem:[#allocation2 + $0x78] sm:$0xff]
        %s670 = scalar_lea.vmem %s1, 2
        %v671 = vld [vmem:[%s670] sm:$0x3]
        %v672 = vunpack.c.l.b16 %v475
        %v673 = vunpack.c.l.b16 %v485
        %v674 = vunpack.c.l.b16 %v499
        %v675 = vunpack.c.l.b16 %v509
        %v676 = vunpack.c.l.b16 %v523
        %v677 = vunpack.c.l.b16 %v533
        %v678 = vunpack.c.l.b16 %v547
        %v679 = vunpack.c.l.b16 %v557
        %v680 = vunpack.c.l.b16 %v571
        %v681 = vunpack.c.l.b16 %v581
        %v682 = vunpack.c.l.b16 %v595
        %v683 = vunpack.c.l.b16 %v605
        %v684 = vunpack.c.l.b16 %v619
        %v685 = vunpack.c.l.b16 %v629
        %v686 = vunpack.c.l.b16 %v643
        %v687 = vunpack.c.l.b16 %v653
        %v688 = vpack.c.b16 %v673, %v672
        %v689 = vpack.c.b16 %v675, %v674
        %v690 = vpack.c.b16 %v677, %v676
        %v691 = vpack.c.b16 %v679, %v678
        %v692 = vpack.c.b16 %v681, %v680
        %v693 = vpack.c.b16 %v683, %v682
        %v694 = vpack.c.b16 %v685, %v684
        %v695 = vpack.c.b16 %v687, %v686
        %v697 = vsel %vm277, %v688, 0
        %v700 = vsel %vm277, %v689, 0
        %v703 = vsel %vm277, %v690, 0
        %v706 = vsel %vm277, %v691, 0
        %v709 = vsel %vm277, %v692, 0
        %v712 = vsel %vm277, %v693, 0
        %v715 = vsel %vm277, %v694, 0
        %v718 = vsel %vm277, %v695, 0
        %v721 = vsel %vm302, %v671, 0
        %723 = vmatprep.subr.bf16.mxu0 0
        %724 = vmatpush1.bf16.msra.mxu0 %v721
        %725 = vmatprep.subr.bf16.mxu0 0
        %726 = vmatpush1.bf16.msra.mxu0 0
        %727 = vmatprep.subr.bf16.mxu0 0
        %728 = vmatpush1.bf16.msra.mxu0 0
        %729 = vmatprep.subr.bf16.mxu0 0
        %730 = vmatpush1.bf16.msra.mxu0 0
        %731 = vmatprep.subr.bf16.mxu0 0
        %732 = vmatpush1.bf16.msra.mxu0 0
        %733 = vmatprep.subr.bf16.mxu0 0
        %734 = vmatpush1.bf16.msra.mxu0 0
        %735 = vmatprep.subr.bf16.mxu0 0
        %736 = vmatpush1.bf16.msra.mxu0 0
        %737 = vmatprep.subr.bf16.mxu0 0
        %738 = vmatpush1.bf16.msra.mxu0 0
        %739 = vmatprep.subr.bf16.mxu0 0
        %740 = vmatpush1.bf16.msra.mxu0 0
        %741 = vmatprep.subr.bf16.mxu0 0
        %742 = vmatpush1.bf16.msra.mxu0 0
        %743 = vmatprep.subr.bf16.mxu0 0
        %744 = vmatpush1.bf16.msra.mxu0 0
        %745 = vmatprep.subr.bf16.mxu0 0
        %746 = vmatpush1.bf16.msra.mxu0 0
        %747 = vmatprep.subr.bf16.mxu0 0
        %748 = vmatpush1.bf16.msra.mxu0 0
        %749 = vmatprep.subr.bf16.mxu0 0
        %750 = vmatpush1.bf16.msra.mxu0 0
        %751 = vmatprep.subr.bf16.mxu0 0
        %752 = vmatpush1.bf16.msra.mxu0 0
        %753 = vmatprep.subr.bf16.mxu0 0
        %754 = vmatpush1.bf16.msra.mxu0 0
        %755 = vmatprep.mubr.bf16.mxu0 0
        %756 = vmatmul.mubr.bf16.gmra.mrb[0].mxu0 %v697
        %v757 = vpop.f32.mrb[0].mxu0
        %v758 = vadd.f32 0.0, %v757
        %v759 = vpop.f32.mrb[0].mxu0
        %v760 = vpop.f32.mrb[0].mxu0
        %v761 = vadd.f32 0.0, %v760
        %v762 = vpop.f32.mrb[0].mxu0
        %763 = vmatprep.mubr.bf16.mxu0 0
        %764 = vmatmul.mubr.bf16.gmra.mrb[0].mxu0 %v700
        %v765 = vpop.f32.mrb[0].mxu0
        %v766 = vadd.f32 0.0, %v765
        %v767 = vpop.f32.mrb[0].mxu0
        %v768 = vpop.f32.mrb[0].mxu0
        %v769 = vadd.f32 0.0, %v768
        %v770 = vpop.f32.mrb[0].mxu0
        %771 = vmatprep.mubr.bf16.mxu0 0
        %772 = vmatmul.mubr.bf16.gmra.mrb[0].mxu0 %v703
        %v773 = vpop.f32.mrb[0].mxu0
        %v774 = vadd.f32 0.0, %v773
        %v775 = vpop.f32.mrb[0].mxu0
        %v776 = vpop.f32.mrb[0].mxu0
        %v777 = vadd.f32 0.0, %v776
        %v778 = vpop.f32.mrb[0].mxu0
        %779 = vmatprep.mubr.bf16.mxu0 0
        %780 = vmatmul.mubr.bf16.gmra.mrb[0].mxu0 %v706
        %v781 = vpop.f32.mrb[0].mxu0
        %v782 = vadd.f32 0.0, %v781
        %v783 = vpop.f32.mrb[0].mxu0
        %v784 = vpop.f32.mrb[0].mxu0
        %v785 = vadd.f32 0.0, %v784
        %v786 = vpop.f32.mrb[0].mxu0
        %787 = vmatprep.mubr.bf16.mxu0 0
        %788 = vmatmul.mubr.bf16.gmra.mrb[0].mxu0 %v709
        %v789 = vpop.f32.mrb[0].mxu0
        %v790 = vadd.f32 0.0, %v789
        %v791 = vpop.f32.mrb[0].mxu0
        %v792 = vpop.f32.mrb[0].mxu0
        %v793 = vadd.f32 0.0, %v792
        %v794 = vpop.f32.mrb[0].mxu0
        %795 = vmatprep.mubr.bf16.mxu0 0
        %796 = vmatmul.mubr.bf16.gmra.mrb[0].mxu0 %v712
        %v797 = vpop.f32.mrb[0].mxu0
        %v798 = vadd.f32 0.0, %v797
        %v799 = vpop.f32.mrb[0].mxu0
        %v800 = vpop.f32.mrb[0].mxu0
        %v801 = vadd.f32 0.0, %v800
        %v802 = vpop.f32.mrb[0].mxu0
        %803 = vmatprep.mubr.bf16.mxu0 0
        %804 = vmatmul.mubr.bf16.gmra.mrb[0].mxu0 %v715
        %v805 = vpop.f32.mrb[0].mxu0
        %v806 = vadd.f32 0.0, %v805
        %v807 = vpop.f32.mrb[0].mxu0
        %v808 = vpop.f32.mrb[0].mxu0
        %v809 = vadd.f32 0.0, %v808
        %v810 = vpop.f32.mrb[0].mxu0
        %811 = vmatprep.mubr.bf16.mxu0 0
        %812 = vmatmul.mubr.bf16.gmra.mrb[0].mxu0 %v718
        %v813 = vpop.f32.mrb[0].mxu0
        %v814 = vadd.f32 0.0, %v813
        %v815 = vpop.f32.mrb[0].mxu0
        %v816 = vpop.f32.mrb[0].mxu0
        %v817 = vadd.f32 0.0, %v816
        %v818 = vpop.f32.mrb[0].mxu0
        %819 = vdwg.mxu0
        %v820 = vadd.f32 %v654, %v758
        %v821 = vadd.f32 %v655, %v761
        %v822 = vadd.f32 %v656, %v766
        %v823 = vadd.f32 %v657, %v769
        %v824 = vadd.f32 %v658, %v774
        %v825 = vadd.f32 %v659, %v777
        %v826 = vadd.f32 %v660, %v782
        %v827 = vadd.f32 %v661, %v785
        %v828 = vadd.f32 %v662, %v790
        %v829 = vadd.f32 %v663, %v793
        %v830 = vadd.f32 %v664, %v798
        %v831 = vadd.f32 %v665, %v801
        %v832 = vadd.f32 %v666, %v806
        %v833 = vadd.f32 %v667, %v809
        %v834 = vadd.f32 %v668, %v814
        %v835 = vadd.f32 %v669, %v817
        %836 = vst [vmem:[#allocation2] sm:$0xff] %v820
        %837 = vst [vmem:[#allocation2 + $0x8] sm:$0xff] %v821
        %838 = vst [vmem:[#allocation2 + $0x10] sm:$0xff] %v822
        %839 = vst [vmem:[#allocation2 + $0x18] sm:$0xff] %v823
        %840 = vst [vmem:[#allocation2 + $0x20] sm:$0xff] %v824
        %841 = vst [vmem:[#allocation2 + $0x28] sm:$0xff] %v825
        %842 = vst [vmem:[#allocation2 + $0x30] sm:$0xff] %v826
        %843 = vst [vmem:[#allocation2 + $0x38] sm:$0xff] %v827
        %844 = vst [vmem:[#allocation2 + $0x40] sm:$0xff] %v828
        %845 = vst [vmem:[#allocation2 + $0x48] sm:$0xff] %v829
        %846 = vst [vmem:[#allocation2 + $0x50] sm:$0xff] %v830
        %847 = vst [vmem:[#allocation2 + $0x58] sm:$0xff] %v831
        %848 = vst [vmem:[#allocation2 + $0x60] sm:$0xff] %v832
        %849 = vst [vmem:[#allocation2 + $0x68] sm:$0xff] %v833
        %850 = vst [vmem:[#allocation2 + $0x70] sm:$0xff] %v834
        %851 = vst [vmem:[#allocation2 + $0x78] sm:$0xff] %v835
        %v852 = vld [vmem:[%s203] sm:$0xe]
        %v853 = vld [vmem:[%s203 + $0x4] sm:$0xf]
        %v854 = vld [vmem:[%s203 + $0x8] sm:$0x1]
        %v855 = vld [vmem:[%s203 + $0xc] sm:$0xe]
        %v856 = vld [vmem:[%s203 + $0x10] sm:$0xf]
        %v857 = vld [vmem:[%s203 + $0x14] sm:$0x1]
        %v858 = vld [vmem:[%s203 + $0x18] sm:$0xe]
        %v859 = vld [vmem:[%s203 + $0x1c] sm:$0xf]
        %v860 = vld [vmem:[%s203 + $0x20] sm:$0x1]
        %v861 = vld [vmem:[%s203 + $0x24] sm:$0xe]
        %v862 = vld [vmem:[%s203 + $0x28] sm:$0xf]
        %v863 = vld [vmem:[%s203 + $0x2c] sm:$0x1]
        %v864 = vld [vmem:[%s203 + $0x30] sm:$0xe]
        %v865 = vld [vmem:[%s203 + $0x34] sm:$0xf]
        %v866 = vld [vmem:[%s203 + $0x38] sm:$0x1]
        %v867 = vld [vmem:[%s203 + $0x3c] sm:$0xe]
        %v868 = vld [vmem:[%s203 + $0x40] sm:$0xf]
        %v869 = vld [vmem:[%s203 + $0x44] sm:$0x1]
        %v870 = vld [vmem:[%s203 + $0x48] sm:$0xe]
        %v871 = vld [vmem:[%s203 + $0x4c] sm:$0xf]
        %v872 = vld [vmem:[%s203 + $0x50] sm:$0x1]
        %v873 = vld [vmem:[%s203 + $0x54] sm:$0xe]
        %v874 = vld [vmem:[%s203 + $0x58] sm:$0xf]
        %v875 = vld [vmem:[%s203 + $0x5c] sm:$0x1]
        %vm900 = vcmask 1042432
        %vm901 = vcmask 1046532
        %vm902 = vmor %vm900, %vm901
        %v903 = vrot.slane %v852, 5
        %v904 = vrot.slane %v903, 4
        %v905 = vrot.slane %v853, 5
        %v906 = vsel %vm902, %v904, %v905
        %v907 = vrot.slane %v905, 4
        %v908 = vrot.slane %v854, 5
        %v909 = vsel %vm902, %v907, %v908
        %v910 = vrot.slane %v855, 5
        %v911 = vrot.slane %v910, 4
        %v912 = vrot.slane %v856, 5
        %v913 = vsel %vm902, %v911, %v912
        %v914 = vrot.slane %v912, 4
        %v915 = vrot.slane %v857, 5
        %v916 = vsel %vm902, %v914, %v915
        %v917 = vrot.slane %v858, 5
        %v918 = vrot.slane %v917, 4
        %v919 = vrot.slane %v859, 5
        %v920 = vsel %vm902, %v918, %v919
        %v921 = vrot.slane %v919, 4
        %v922 = vrot.slane %v860, 5
        %v923 = vsel %vm902, %v921, %v922
        %v924 = vrot.slane %v861, 5
        %v925 = vrot.slane %v924, 4
        %v926 = vrot.slane %v862, 5
        %v927 = vsel %vm902, %v925, %v926
        %v928 = vrot.slane %v926, 4
        %v929 = vrot.slane %v863, 5
        %v930 = vsel %vm902, %v928, %v929
        %v931 = vrot.slane %v864, 5
        %v932 = vrot.slane %v931, 4
        %v933 = vrot.slane %v865, 5
        %v934 = vsel %vm902, %v932, %v933
        %v935 = vrot.slane %v933, 4
        %v936 = vrot.slane %v866, 5
        %v937 = vsel %vm902, %v935, %v936
        %v938 = vrot.slane %v867, 5
        %v939 = vrot.slane %v938, 4
        %v940 = vrot.slane %v868, 5
        %v941 = vsel %vm902, %v939, %v940
        %v942 = vrot.slane %v940, 4
        %v943 = vrot.slane %v869, 5
        %v944 = vsel %vm902, %v942, %v943
        %v945 = vrot.slane %v870, 5
        %v946 = vrot.slane %v945, 4
        %v947 = vrot.slane %v871, 5
        %v948 = vsel %vm902, %v946, %v947
        %v949 = vrot.slane %v947, 4
        %v950 = vrot.slane %v872, 5
        %v951 = vsel %vm902, %v949, %v950
        %v952 = vrot.slane %v873, 5
        %v953 = vrot.slane %v952, 4
        %v954 = vrot.slane %v874, 5
        %v955 = vsel %vm902, %v953, %v954
        %v956 = vrot.slane %v954, 4
        %v957 = vrot.slane %v875, 5
        %v958 = vsel %vm902, %v956, %v957
        %v959 = vld [vmem:[#allocation2] sm:$0xff]
        %v960 = vld [vmem:[#allocation2 + $0x8] sm:$0xff]
        %v961 = vld [vmem:[#allocation2 + $0x10] sm:$0xff]
        %v962 = vld [vmem:[#allocation2 + $0x18] sm:$0xff]
        %v963 = vld [vmem:[#allocation2 + $0x20] sm:$0xff]
        %v964 = vld [vmem:[#allocation2 + $0x28] sm:$0xff]
        %v965 = vld [vmem:[#allocation2 + $0x30] sm:$0xff]
        %v966 = vld [vmem:[#allocation2 + $0x38] sm:$0xff]
        %v967 = vld [vmem:[#allocation2 + $0x40] sm:$0xff]
        %v968 = vld [vmem:[#allocation2 + $0x48] sm:$0xff]
        %v969 = vld [vmem:[#allocation2 + $0x50] sm:$0xff]
        %v970 = vld [vmem:[#allocation2 + $0x58] sm:$0xff]
        %v971 = vld [vmem:[#allocation2 + $0x60] sm:$0xff]
        %v972 = vld [vmem:[#allocation2 + $0x68] sm:$0xff]
        %v973 = vld [vmem:[#allocation2 + $0x70] sm:$0xff]
        %v974 = vld [vmem:[#allocation2 + $0x78] sm:$0xff]
        %s975 = scalar_lea.vmem %s1, 4
        %v976 = vld [vmem:[%s975] sm:$0x3]
        %v977 = vunpack.c.l.b16 %v906
        %v978 = vunpack.c.l.b16 %v909
        %v979 = vunpack.c.l.b16 %v913
        %v980 = vunpack.c.l.b16 %v916
        %v981 = vunpack.c.l.b16 %v920
        %v982 = vunpack.c.l.b16 %v923
        %v983 = vunpack.c.l.b16 %v927
        %v984 = vunpack.c.l.b16 %v930
        %v985 = vunpack.c.l.b16 %v934
        %v986 = vunpack.c.l.b16 %v937
        %v987 = vunpack.c.l.b16 %v941
        %v988 = vunpack.c.l.b16 %v944
        %v989 = vunpack.c.l.b16 %v948
        %v990 = vunpack.c.l.b16 %v951
        %v991 = vunpack.c.l.b16 %v955
        %v992 = vunpack.c.l.b16 %v958
        %v993 = vpack.c.b16 %v978, %v977
        %v994 = vpack.c.b16 %v980, %v979
        %v995 = vpack.c.b16 %v982, %v981
        %v996 = vpack.c.b16 %v984, %v983
        %v997 = vpack.c.b16 %v986, %v985
        %v998 = vpack.c.b16 %v988, %v987
        %v999 = vpack.c.b16 %v990, %v989
        %v1000 = vpack.c.b16 %v992, %v991
        %v1002 = vsel %vm277, %v993, 0
        %v1005 = vsel %vm277, %v994, 0
        %v1008 = vsel %vm277, %v995, 0
        %v1011 = vsel %vm277, %v996, 0
        %v1014 = vsel %vm277, %v997, 0
        %v1017 = vsel %vm277, %v998, 0
        %v1020 = vsel %vm277, %v999, 0
        %v1023 = vsel %vm277, %v1000, 0
        %v1026 = vsel %vm302, %v976, 0
        %1028 = vmatprep.subr.bf16.mxu0 0
        %1029 = vmatpush1.bf16.msra.mxu0 %v1026
        %1030 = vmatprep.subr.bf16.mxu0 0
        %1031 = vmatpush1.bf16.msra.mxu0 0
        %1032 = vmatprep.subr.bf16.mxu0 0
        %1033 = vmatpush1.bf16.msra.mxu0 0
        %1034 = vmatprep.subr.bf16.mxu0 0
        %1035 = vmatpush1.bf16.msra.mxu0 0
        %1036 = vmatprep.subr.bf16.mxu0 0
        %1037 = vmatpush1.bf16.msra.mxu0 0
        %1038 = vmatprep.subr.bf16.mxu0 0
        %1039 = vmatpush1.bf16.msra.mxu0 0
        %1040 = vmatprep.subr.bf16.mxu0 0
        %1041 = vmatpush1.bf16.msra.mxu0 0
        %1042 = vmatprep.subr.bf16.mxu0 0
        %1043 = vmatpush1.bf16.msra.mxu0 0
        %1044 = vmatprep.subr.bf16.mxu0 0
        %1045 = vmatpush1.bf16.msra.mxu0 0
        %1046 = vmatprep.subr.bf16.mxu0 0
        %1047 = vmatpush1.bf16.msra.mxu0 0
        %1048 = vmatprep.subr.bf16.mxu0 0
        %1049 = vmatpush1.bf16.msra.mxu0 0
        %1050 = vmatprep.subr.bf16.mxu0 0
        %1051 = vmatpush1.bf16.msra.mxu0 0
        %1052 = vmatprep.subr.bf16.mxu0 0
        %1053 = vmatpush1.bf16.msra.mxu0 0
        %1054 = vmatprep.subr.bf16.mxu0 0
        %1055 = vmatpush1.bf16.msra.mxu0 0
        %1056 = vmatprep.subr.bf16.mxu0 0
        %1057 = vmatpush1.bf16.msra.mxu0 0
        %1058 = vmatprep.subr.bf16.mxu0 0
        %1059 = vmatpush1.bf16.msra.mxu0 0
        %1060 = vmatprep.mubr.bf16.mxu0 0
        %1061 = vmatmul.mubr.bf16.gmra.mrb[0].mxu0 %v1002
        %v1062 = vpop.f32.mrb[0].mxu0
        %v1063 = vadd.f32 0.0, %v1062
        %v1064 = vpop.f32.mrb[0].mxu0
        %v1065 = vpop.f32.mrb[0].mxu0
        %v1066 = vadd.f32 0.0, %v1065
        %v1067 = vpop.f32.mrb[0].mxu0
        %1068 = vmatprep.mubr.bf16.mxu0 0
        %1069 = vmatmul.mubr.bf16.gmra.mrb[0].mxu0 %v1005
        %v1070 = vpop.f32.mrb[0].mxu0
        %v1071 = vadd.f32 0.0, %v1070
        %v1072 = vpop.f32.mrb[0].mxu0
        %v1073 = vpop.f32.mrb[0].mxu0
        %v1074 = vadd.f32 0.0, %v1073
        %v1075 = vpop.f32.mrb[0].mxu0
        %1076 = vmatprep.mubr.bf16.mxu0 0
        %1077 = vmatmul.mubr.bf16.gmra.mrb[0].mxu0 %v1008
        %v1078 = vpop.f32.mrb[0].mxu0
        %v1079 = vadd.f32 0.0, %v1078
        %v1080 = vpop.f32.mrb[0].mxu0
        %v1081 = vpop.f32.mrb[0].mxu0
        %v1082 = vadd.f32 0.0, %v1081
        %v1083 = vpop.f32.mrb[0].mxu0
        %1084 = vmatprep.mubr.bf16.mxu0 0
        %1085 = vmatmul.mubr.bf16.gmra.mrb[0].mxu0 %v1011
        %v1086 = vpop.f32.mrb[0].mxu0
        %v1087 = vadd.f32 0.0, %v1086
        %v1088 = vpop.f32.mrb[0].mxu0
        %v1089 = vpop.f32.mrb[0].mxu0
        %v1090 = vadd.f32 0.0, %v1089
        %v1091 = vpop.f32.mrb[0].mxu0
        %1092 = vmatprep.mubr.bf16.mxu0 0
        %1093 = vmatmul.mubr.bf16.gmra.mrb[0].mxu0 %v1014
        %v1094 = vpop.f32.mrb[0].mxu0
        %v1095 = vadd.f32 0.0, %v1094
        %v1096 = vpop.f32.mrb[0].mxu0
        %v1097 = vpop.f32.mrb[0].mxu0
        %v1098 = vadd.f32 0.0, %v1097
        %v1099 = vpop.f32.mrb[0].mxu0
        %1100 = vmatprep.mubr.bf16.mxu0 0
        %1101 = vmatmul.mubr.bf16.gmra.mrb[0].mxu0 %v1017
        %v1102 = vpop.f32.mrb[0].mxu0
        %v1103 = vadd.f32 0.0, %v1102
        %v1104 = vpop.f32.mrb[0].mxu0
        %v1105 = vpop.f32.mrb[0].mxu0
        %v1106 = vadd.f32 0.0, %v1105
        %v1107 = vpop.f32.mrb[0].mxu0
        %1108 = vmatprep.mubr.bf16.mxu0 0
        %1109 = vmatmul.mubr.bf16.gmra.mrb[0].mxu0 %v1020
        %v1110 = vpop.f32.mrb[0].mxu0
        %v1111 = vadd.f32 0.0, %v1110
        %v1112 = vpop.f32.mrb[0].mxu0
        %v1113 = vpop.f32.mrb[0].mxu0
        %v1114 = vadd.f32 0.0, %v1113
        %v1115 = vpop.f32.mrb[0].mxu0
        %1116 = vmatprep.mubr.bf16.mxu0 0
        %1117 = vmatmul.mubr.bf16.gmra.mrb[0].mxu0 %v1023
        %v1118 = vpop.f32.mrb[0].mxu0
        %v1119 = vadd.f32 0.0, %v1118
        %v1120 = vpop.f32.mrb[0].mxu0
        %v1121 = vpop.f32.mrb[0].mxu0
        %v1122 = vadd.f32 0.0, %v1121
        %v1123 = vpop.f32.mrb[0].mxu0
        %1124 = vdwg.mxu0
        %v1125 = vadd.f32 %v959, %v1063
        %v1126 = vadd.f32 %v960, %v1066
        %v1127 = vadd.f32 %v961, %v1071
        %v1128 = vadd.f32 %v962, %v1074
        %v1129 = vadd.f32 %v963, %v1079
        %v1130 = vadd.f32 %v964, %v1082
        %v1131 = vadd.f32 %v965, %v1087
        %v1132 = vadd.f32 %v966, %v1090
        %v1133 = vadd.f32 %v967, %v1095
        %v1134 = vadd.f32 %v968, %v1098
        %v1135 = vadd.f32 %v969, %v1103
        %v1136 = vadd.f32 %v970, %v1106
        %v1137 = vadd.f32 %v971, %v1111
        %v1138 = vadd.f32 %v972, %v1114
        %v1139 = vadd.f32 %v973, %v1119
        %v1140 = vadd.f32 %v974, %v1122
        %1141 = vst [vmem:[#allocation2] sm:$0xff] %v1125
        %1142 = vst [vmem:[#allocation2 + $0x8] sm:$0xff] %v1126
        %1143 = vst [vmem:[#allocation2 + $0x10] sm:$0xff] %v1127
        %1144 = vst [vmem:[#allocation2 + $0x18] sm:$0xff] %v1128
        %1145 = vst [vmem:[#allocation2 + $0x20] sm:$0xff] %v1129
        %1146 = vst [vmem:[#allocation2 + $0x28] sm:$0xff] %v1130
        %1147 = vst [vmem:[#allocation2 + $0x30] sm:$0xff] %v1131
        %1148 = vst [vmem:[#allocation2 + $0x38] sm:$0xff] %v1132
        %1149 = vst [vmem:[#allocation2 + $0x40] sm:$0xff] %v1133
        %1150 = vst [vmem:[#allocation2 + $0x48] sm:$0xff] %v1134
        %1151 = vst [vmem:[#allocation2 + $0x50] sm:$0xff] %v1135
        %1152 = vst [vmem:[#allocation2 + $0x58] sm:$0xff] %v1136
        %1153 = vst [vmem:[#allocation2 + $0x60] sm:$0xff] %v1137
        %1154 = vst [vmem:[#allocation2 + $0x68] sm:$0xff] %v1138
        %1155 = vst [vmem:[#allocation2 + $0x70] sm:$0xff] %v1139
        %1156 = vst [vmem:[#allocation2 + $0x78] sm:$0xff] %v1140
        %s1157 = sadd.s32 %s184, 1
        %s1158 = smul.u32 %s1157, 3
        %s1159 = smul.addr %s1158, 4
        %s1160 = scalar_lea.vmem %s182, %s1159
        %v1161 = vld [vmem:[%s1160] sm:$0xf]
        %v1162 = vld [vmem:[%s1160 + $0x4] sm:$0xf]
        %v1163 = vld [vmem:[%s1160 + $0xc] sm:$0xf]
        %v1164 = vld [vmem:[%s1160 + $0x10] sm:$0xf]
        %v1165 = vld [vmem:[%s1160 + $0x18] sm:$0xf]
        %v1166 = vld [vmem:[%s1160 + $0x1c] sm:$0xf]
        %v1167 = vld [vmem:[%s1160 + $0x24] sm:$0xf]
        %v1168 = vld [vmem:[%s1160 + $0x28] sm:$0xf]
        %v1169 = vld [vmem:[%s1160 + $0x30] sm:$0xf]
        %v1170 = vld [vmem:[%s1160 + $0x34] sm:$0xf]
        %v1171 = vld [vmem:[%s1160 + $0x3c] sm:$0xf]
        %v1172 = vld [vmem:[%s1160 + $0x40] sm:$0xf]
        %v1173 = vld [vmem:[%s1160 + $0x48] sm:$0xf]
        %v1174 = vld [vmem:[%s1160 + $0x4c] sm:$0xf]
        %v1175 = vld [vmem:[%s1160 + $0x54] sm:$0xf]
        %v1176 = vld [vmem:[%s1160 + $0x58] sm:$0xf]
        %v1177 = vld [vmem:[#allocation2] sm:$0xff]
        %v1178 = vld [vmem:[#allocation2 + $0x8] sm:$0xff]
        %v1179 = vld [vmem:[#allocation2 + $0x10] sm:$0xff]
        %v1180 = vld [vmem:[#allocation2 + $0x18] sm:$0xff]
        %v1181 = vld [vmem:[#allocation2 + $0x20] sm:$0xff]
        %v1182 = vld [vmem:[#allocation2 + $0x28] sm:$0xff]
        %v1183 = vld [vmem:[#allocation2 + $0x30] sm:$0xff]
        %v1184 = vld [vmem:[#allocation2 + $0x38] sm:$0xff]
        %v1185 = vld [vmem:[#allocation2 + $0x40] sm:$0xff]
        %v1186 = vld [vmem:[#allocation2 + $0x48] sm:$0xff]
        %v1187 = vld [vmem:[#allocation2 + $0x50] sm:$0xff]
        %v1188 = vld [vmem:[#allocation2 + $0x58] sm:$0xff]
        %v1189 = vld [vmem:[#allocation2 + $0x60] sm:$0xff]
        %v1190 = vld [vmem:[#allocation2 + $0x68] sm:$0xff]
        %v1191 = vld [vmem:[#allocation2 + $0x70] sm:$0xff]
        %v1192 = vld [vmem:[#allocation2 + $0x78] sm:$0xff]
        %s1193 = scalar_lea.vmem %s1, 6
        %v1194 = vld [vmem:[%s1193] sm:$0x3]
        %v1211 = vunpack.c.l.b16 %v1161
        %v1212 = vunpack.c.l.b16 %v1162
        %v1213 = vunpack.c.l.b16 %v1163
        %v1214 = vunpack.c.l.b16 %v1164
        %v1215 = vunpack.c.l.b16 %v1165
        %v1216 = vunpack.c.l.b16 %v1166
        %v1217 = vunpack.c.l.b16 %v1167
        %v1218 = vunpack.c.l.b16 %v1168
        %v1219 = vunpack.c.l.b16 %v1169
        %v1220 = vunpack.c.l.b16 %v1170
        %v1221 = vunpack.c.l.b16 %v1171
        %v1222 = vunpack.c.l.b16 %v1172
        %v1223 = vunpack.c.l.b16 %v1173
        %v1224 = vunpack.c.l.b16 %v1174
        %v1225 = vunpack.c.l.b16 %v1175
        %v1226 = vunpack.c.l.b16 %v1176
        %v1227 = vpack.c.b16 %v1212, %v1211
        %v1228 = vpack.c.b16 %v1214, %v1213
        %v1229 = vpack.c.b16 %v1216, %v1215
        %v1230 = vpack.c.b16 %v1218, %v1217
        %v1231 = vpack.c.b16 %v1220, %v1219
        %v1232 = vpack.c.b16 %v1222, %v1221
        %v1233 = vpack.c.b16 %v1224, %v1223
        %v1234 = vpack.c.b16 %v1226, %v1225
        %v1236 = vsel %vm277, %v1227, 0
        %v1239 = vsel %vm277, %v1228, 0
        %v1242 = vsel %vm277, %v1229, 0
        %v1245 = vsel %vm277, %v1230, 0
        %v1248 = vsel %vm277, %v1231, 0
        %v1251 = vsel %vm277, %v1232, 0
        %v1254 = vsel %vm277, %v1233, 0
        %v1257 = vsel %vm277, %v1234, 0
        %v1260 = vsel %vm302, %v1194, 0
        %1262 = vmatprep.subr.bf16.mxu0 0
        %1263 = vmatpush1.bf16.msra.mxu0 %v1260
        %1264 = vmatprep.subr.bf16.mxu0 0
        %1265 = vmatpush1.bf16.msra.mxu0 0
        %1266 = vmatprep.subr.bf16.mxu0 0
        %1267 = vmatpush1.bf16.msra.mxu0 0
        %1268 = vmatprep.subr.bf16.mxu0 0
        %1269 = vmatpush1.bf16.msra.mxu0 0
        %1270 = vmatprep.subr.bf16.mxu0 0
        %1271 = vmatpush1.bf16.msra.mxu0 0
        %1272 = vmatprep.subr.bf16.mxu0 0
        %1273 = vmatpush1.bf16.msra.mxu0 0
        %1274 = vmatprep.subr.bf16.mxu0 0
        %1275 = vmatpush1.bf16.msra.mxu0 0
        %1276 = vmatprep.subr.bf16.mxu0 0
        %1277 = vmatpush1.bf16.msra.mxu0 0
        %1278 = vmatprep.subr.bf16.mxu0 0
        %1279 = vmatpush1.bf16.msra.mxu0 0
        %1280 = vmatprep.subr.bf16.mxu0 0
        %1281 = vmatpush1.bf16.msra.mxu0 0
        %1282 = vmatprep.subr.bf16.mxu0 0
        %1283 = vmatpush1.bf16.msra.mxu0 0
        %1284 = vmatprep.subr.bf16.mxu0 0
        %1285 = vmatpush1.bf16.msra.mxu0 0
        %1286 = vmatprep.subr.bf16.mxu0 0
        %1287 = vmatpush1.bf16.msra.mxu0 0
        %1288 = vmatprep.subr.bf16.mxu0 0
        %1289 = vmatpush1.bf16.msra.mxu0 0
        %1290 = vmatprep.subr.bf16.mxu0 0
        %1291 = vmatpush1.bf16.msra.mxu0 0
        %1292 = vmatprep.subr.bf16.mxu0 0
        %1293 = vmatpush1.bf16.msra.mxu0 0
        %1294 = vmatprep.mubr.bf16.mxu0 0
        %1295 = vmatmul.mubr.bf16.gmra.mrb[0].mxu0 %v1236
        %v1296 = vpop.f32.mrb[0].mxu0
        %v1297 = vadd.f32 0.0, %v1296
        %v1298 = vpop.f32.mrb[0].mxu0
        %v1299 = vpop.f32.mrb[0].mxu0
        %v1300 = vadd.f32 0.0, %v1299
        %v1301 = vpop.f32.mrb[0].mxu0
        %1302 = vmatprep.mubr.bf16.mxu0 0
        %1303 = vmatmul.mubr.bf16.gmra.mrb[0].mxu0 %v1239
        %v1304 = vpop.f32.mrb[0].mxu0
        %v1305 = vadd.f32 0.0, %v1304
        %v1306 = vpop.f32.mrb[0].mxu0
        %v1307 = vpop.f32.mrb[0].mxu0
        %v1308 = vadd.f32 0.0, %v1307
        %v1309 = vpop.f32.mrb[0].mxu0
        %1310 = vmatprep.mubr.bf16.mxu0 0
        %1311 = vmatmul.mubr.bf16.gmra.mrb[0].mxu0 %v1242
        %v1312 = vpop.f32.mrb[0].mxu0
        %v1313 = vadd.f32 0.0, %v1312
        %v1314 = vpop.f32.mrb[0].mxu0
        %v1315 = vpop.f32.mrb[0].mxu0
        %v1316 = vadd.f32 0.0, %v1315
        %v1317 = vpop.f32.mrb[0].mxu0
        %1318 = vmatprep.mubr.bf16.mxu0 0
        %1319 = vmatmul.mubr.bf16.gmra.mrb[0].mxu0 %v1245
        %v1320 = vpop.f32.mrb[0].mxu0
        %v1321 = vadd.f32 0.0, %v1320
        %v1322 = vpop.f32.mrb[0].mxu0
        %v1323 = vpop.f32.mrb[0].mxu0
        %v1324 = vadd.f32 0.0, %v1323
        %v1325 = vpop.f32.mrb[0].mxu0
        %1326 = vmatprep.mubr.bf16.mxu0 0
        %1327 = vmatmul.mubr.bf16.gmra.mrb[0].mxu0 %v1248
        %v1328 = vpop.f32.mrb[0].mxu0
        %v1329 = vadd.f32 0.0, %v1328
        %v1330 = vpop.f32.mrb[0].mxu0
        %v1331 = vpop.f32.mrb[0].mxu0
        %v1332 = vadd.f32 0.0, %v1331
        %v1333 = vpop.f32.mrb[0].mxu0
        %1334 = vmatprep.mubr.bf16.mxu0 0
        %1335 = vmatmul.mubr.bf16.gmra.mrb[0].mxu0 %v1251
        %v1336 = vpop.f32.mrb[0].mxu0
        %v1337 = vadd.f32 0.0, %v1336
        %v1338 = vpop.f32.mrb[0].mxu0
        %v1339 = vpop.f32.mrb[0].mxu0
        %v1340 = vadd.f32 0.0, %v1339
        %v1341 = vpop.f32.mrb[0].mxu0
        %1342 = vmatprep.mubr.bf16.mxu0 0
        %1343 = vmatmul.mubr.bf16.gmra.mrb[0].mxu0 %v1254
        %v1344 = vpop.f32.mrb[0].mxu0
        %v1345 = vadd.f32 0.0, %v1344
        %v1346 = vpop.f32.mrb[0].mxu0
        %v1347 = vpop.f32.mrb[0].mxu0
        %v1348 = vadd.f32 0.0, %v1347
        %v1349 = vpop.f32.mrb[0].mxu0
        %1350 = vmatprep.mubr.bf16.mxu0 0
        %1351 = vmatmul.mubr.bf16.gmra.mrb[0].mxu0 %v1257
        %v1352 = vpop.f32.mrb[0].mxu0
        %v1353 = vadd.f32 0.0, %v1352
        %v1354 = vpop.f32.mrb[0].mxu0
        %v1355 = vpop.f32.mrb[0].mxu0
        %v1356 = vadd.f32 0.0, %v1355
        %v1357 = vpop.f32.mrb[0].mxu0
        %1358 = vdwg.mxu0
        %v1359 = vadd.f32 %v1177, %v1297
        %v1360 = vadd.f32 %v1178, %v1300
        %v1361 = vadd.f32 %v1179, %v1305
        %v1362 = vadd.f32 %v1180, %v1308
        %v1363 = vadd.f32 %v1181, %v1313
        %v1364 = vadd.f32 %v1182, %v1316
        %v1365 = vadd.f32 %v1183, %v1321
        %v1366 = vadd.f32 %v1184, %v1324
        %v1367 = vadd.f32 %v1185, %v1329
        %v1368 = vadd.f32 %v1186, %v1332
        %v1369 = vadd.f32 %v1187, %v1337
        %v1370 = vadd.f32 %v1188, %v1340
        %v1371 = vadd.f32 %v1189, %v1345
        %v1372 = vadd.f32 %v1190, %v1348
        %v1373 = vadd.f32 %v1191, %v1353
        %v1374 = vadd.f32 %v1192, %v1356
        %1375 = vst [vmem:[#allocation2] sm:$0xff] %v1359
        %1376 = vst [vmem:[#allocation2 + $0x8] sm:$0xff] %v1360
        %1377 = vst [vmem:[#allocation2 + $0x10] sm:$0xff] %v1361
        %1378 = vst [vmem:[#allocation2 + $0x18] sm:$0xff] %v1362
        %1379 = vst [vmem:[#allocation2 + $0x20] sm:$0xff] %v1363
        %1380 = vst [vmem:[#allocation2 + $0x28] sm:$0xff] %v1364
        %1381 = vst [vmem:[#allocation2 + $0x30] sm:$0xff] %v1365
        %1382 = vst [vmem:[#allocation2 + $0x38] sm:$0xff] %v1366
        %1383 = vst [vmem:[#allocation2 + $0x40] sm:$0xff] %v1367
        %1384 = vst [vmem:[#allocation2 + $0x48] sm:$0xff] %v1368
        %1385 = vst [vmem:[#allocation2 + $0x50] sm:$0xff] %v1369
        %1386 = vst [vmem:[#allocation2 + $0x58] sm:$0xff] %v1370
        %1387 = vst [vmem:[#allocation2 + $0x60] sm:$0xff] %v1371
        %1388 = vst [vmem:[#allocation2 + $0x68] sm:$0xff] %v1372
        %1389 = vst [vmem:[#allocation2 + $0x70] sm:$0xff] %v1373
        %1390 = vst [vmem:[#allocation2 + $0x78] sm:$0xff] %v1374
        %v1391 = vld [vmem:[%s1160] sm:$0xf]
        %v1392 = vld [vmem:[%s1160 + $0x4] sm:$0xf]
        %v1393 = vld [vmem:[%s1160 + $0x8] sm:$0x1]
        %v1394 = vld [vmem:[%s1160 + $0xc] sm:$0xf]
        %v1395 = vld [vmem:[%s1160 + $0x10] sm:$0xf]
        %v1396 = vld [vmem:[%s1160 + $0x14] sm:$0x1]
        %v1397 = vld [vmem:[%s1160 + $0x18] sm:$0xf]
        %v1398 = vld [vmem:[%s1160 + $0x1c] sm:$0xf]
        %v1399 = vld [vmem:[%s1160 + $0x20] sm:$0x1]
        %v1400 = vld [vmem:[%s1160 + $0x24] sm:$0xf]
        %v1401 = vld [vmem:[%s1160 + $0x28] sm:$0xf]
        %v1402 = vld [vmem:[%s1160 + $0x2c] sm:$0x1]
        %v1403 = vld [vmem:[%s1160 + $0x30] sm:$0xf]
        %v1404 = vld [vmem:[%s1160 + $0x34] sm:$0xf]
        %v1405 = vld [vmem:[%s1160 + $0x38] sm:$0x1]
        %v1406 = vld [vmem:[%s1160 + $0x3c] sm:$0xf]
        %v1407 = vld [vmem:[%s1160 + $0x40] sm:$0xf]
        %v1408 = vld [vmem:[%s1160 + $0x44] sm:$0x1]
        %v1409 = vld [vmem:[%s1160 + $0x48] sm:$0xf]
        %v1410 = vld [vmem:[%s1160 + $0x4c] sm:$0xf]
        %v1411 = vld [vmem:[%s1160 + $0x50] sm:$0x1]
        %v1412 = vld [vmem:[%s1160 + $0x54] sm:$0xf]
        %v1413 = vld [vmem:[%s1160 + $0x58] sm:$0xf]
        %v1414 = vld [vmem:[%s1160 + $0x5c] sm:$0x1]
        %v1416 = vshrl.u32 %v1391, 16
        %v1418 = vrot.slane %v1416, 4
        %v1419 = vshll.u32 %v1391, 16
        %v1421 = vrot.slane %v1419, 5
        %v1422 = vor.u32 %v1418, %v1421
        %v1423 = vrot.slane %v1422, 4
        %v1425 = vshll.u32 %v1392, 16
        %v1427 = vrot.slane %v1425, 5
        %v1428 = vsel %vm461, %v1423, %v1427
        %v1429 = vshrl.u32 %v1392, 16
        %v1431 = vrot.slane %v1429, 4
        %v1432 = vor.u32 %v1431, %v1427
        %v1433 = vrot.slane %v1432, 4
        %v1435 = vshll.u32 %v1393, 16
        %v1437 = vrot.slane %v1435, 5
        %v1438 = vsel %vm461, %v1433, %v1437
        %v1440 = vshrl.u32 %v1394, 16
        %v1442 = vrot.slane %v1440, 4
        %v1443 = vshll.u32 %v1394, 16
        %v1445 = vrot.slane %v1443, 5
        %v1446 = vor.u32 %v1442, %v1445
        %v1447 = vrot.slane %v1446, 4
        %v1449 = vshll.u32 %v1395, 16
        %v1451 = vrot.slane %v1449, 5
        %v1452 = vsel %vm461, %v1447, %v1451
        %v1453 = vshrl.u32 %v1395, 16
        %v1455 = vrot.slane %v1453, 4
        %v1456 = vor.u32 %v1455, %v1451
        %v1457 = vrot.slane %v1456, 4
        %v1459 = vshll.u32 %v1396, 16
        %v1461 = vrot.slane %v1459, 5
        %v1462 = vsel %vm461, %v1457, %v1461
        %v1464 = vshrl.u32 %v1397, 16
        %v1466 = vrot.slane %v1464, 4
        %v1467 = vshll.u32 %v1397, 16
        %v1469 = vrot.slane %v1467, 5
        %v1470 = vor.u32 %v1466, %v1469
        %v1471 = vrot.slane %v1470, 4
        %v1473 = vshll.u32 %v1398, 16
        %v1475 = vrot.slane %v1473, 5
        %v1476 = vsel %vm461, %v1471, %v1475
        %v1477 = vshrl.u32 %v1398, 16
        %v1479 = vrot.slane %v1477, 4
        %v1480 = vor.u32 %v1479, %v1475
        %v1481 = vrot.slane %v1480, 4
        %v1483 = vshll.u32 %v1399, 16
        %v1485 = vrot.slane %v1483, 5
        %v1486 = vsel %vm461, %v1481, %v1485
        %v1488 = vshrl.u32 %v1400, 16
        %v1490 = vrot.slane %v1488, 4
        %v1491 = vshll.u32 %v1400, 16
        %v1493 = vrot.slane %v1491, 5
        %v1494 = vor.u32 %v1490, %v1493
        %v1495 = vrot.slane %v1494, 4
        %v1497 = vshll.u32 %v1401, 16
        %v1499 = vrot.slane %v1497, 5
        %v1500 = vsel %vm461, %v1495, %v1499
        %v1501 = vshrl.u32 %v1401, 16
        %v1503 = vrot.slane %v1501, 4
        %v1504 = vor.u32 %v1503, %v1499
        %v1505 = vrot.slane %v1504, 4
        %v1507 = vshll.u32 %v1402, 16
        %v1509 = vrot.slane %v1507, 5
        %v1510 = vsel %vm461, %v1505, %v1509
        %v1512 = vshrl.u32 %v1403, 16
        %v1514 = vrot.slane %v1512, 4
        %v1515 = vshll.u32 %v1403, 16
        %v1517 = vrot.slane %v1515, 5
        %v1518 = vor.u32 %v1514, %v1517
        %v1519 = vrot.slane %v1518, 4
        %v1521 = vshll.u32 %v1404, 16
        %v1523 = vrot.slane %v1521, 5
        %v1524 = vsel %vm461, %v1519, %v1523
        %v1525 = vshrl.u32 %v1404, 16
        %v1527 = vrot.slane %v1525, 4
        %v1528 = vor.u32 %v1527, %v1523
        %v1529 = vrot.slane %v1528, 4
        %v1531 = vshll.u32 %v1405, 16
        %v1533 = vrot.slane %v1531, 5
        %v1534 = vsel %vm461, %v1529, %v1533
        %v1536 = vshrl.u32 %v1406, 16
        %v1538 = vrot.slane %v1536, 4
        %v1539 = vshll.u32 %v1406, 16
        %v1541 = vrot.slane %v1539, 5
        %v1542 = vor.u32 %v1538, %v1541
        %v1543 = vrot.slane %v1542, 4
        %v1545 = vshll.u32 %v1407, 16
        %v1547 = vrot.slane %v1545, 5
        %v1548 = vsel %vm461, %v1543, %v1547
        %v1549 = vshrl.u32 %v1407, 16
        %v1551 = vrot.slane %v1549, 4
        %v1552 = vor.u32 %v1551, %v1547
        %v1553 = vrot.slane %v1552, 4
        %v1555 = vshll.u32 %v1408, 16
        %v1557 = vrot.slane %v1555, 5
        %v1558 = vsel %vm461, %v1553, %v1557
        %v1560 = vshrl.u32 %v1409, 16
        %v1562 = vrot.slane %v1560, 4
        %v1563 = vshll.u32 %v1409, 16
        %v1565 = vrot.slane %v1563, 5
        %v1566 = vor.u32 %v1562, %v1565
        %v1567 = vrot.slane %v1566, 4
        %v1569 = vshll.u32 %v1410, 16
        %v1571 = vrot.slane %v1569, 5
        %v1572 = vsel %vm461, %v1567, %v1571
        %v1573 = vshrl.u32 %v1410, 16
        %v1575 = vrot.slane %v1573, 4
        %v1576 = vor.u32 %v1575, %v1571
        %v1577 = vrot.slane %v1576, 4
        %v1579 = vshll.u32 %v1411, 16
        %v1581 = vrot.slane %v1579, 5
        %v1582 = vsel %vm461, %v1577, %v1581
        %v1584 = vshrl.u32 %v1412, 16
        %v1586 = vrot.slane %v1584, 4
        %v1587 = vshll.u32 %v1412, 16
        %v1589 = vrot.slane %v1587, 5
        %v1590 = vor.u32 %v1586, %v1589
        %v1591 = vrot.slane %v1590, 4
        %v1593 = vshll.u32 %v1413, 16
        %v1595 = vrot.slane %v1593, 5
        %v1596 = vsel %vm461, %v1591, %v1595
        %v1597 = vshrl.u32 %v1413, 16
        %v1599 = vrot.slane %v1597, 4
        %v1600 = vor.u32 %v1599, %v1595
        %v1601 = vrot.slane %v1600, 4
        %v1603 = vshll.u32 %v1414, 16
        %v1605 = vrot.slane %v1603, 5
        %v1606 = vsel %vm461, %v1601, %v1605
        %v1607 = vld [vmem:[#allocation2] sm:$0xff]
        %v1608 = vld [vmem:[#allocation2 + $0x8] sm:$0xff]
        %v1609 = vld [vmem:[#allocation2 + $0x10] sm:$0xff]
        %v1610 = vld [vmem:[#allocation2 + $0x18] sm:$0xff]
        %v1611 = vld [vmem:[#allocation2 + $0x20] sm:$0xff]
        %v1612 = vld [vmem:[#allocation2 + $0x28] sm:$0xff]
        %v1613 = vld [vmem:[#allocation2 + $0x30] sm:$0xff]
        %v1614 = vld [vmem:[#allocation2 + $0x38] sm:$0xff]
        %v1615 = vld [vmem:[#allocation2 + $0x40] sm:$0xff]
        %v1616 = vld [vmem:[#allocation2 + $0x48] sm:$0xff]
        %v1617 = vld [vmem:[#allocation2 + $0x50] sm:$0xff]
        %v1618 = vld [vmem:[#allocation2 + $0x58] sm:$0xff]
        %v1619 = vld [vmem:[#allocation2 + $0x60] sm:$0xff]
        %v1620 = vld [vmem:[#allocation2 + $0x68] sm:$0xff]
        %v1621 = vld [vmem:[#allocation2 + $0x70] sm:$0xff]
        %v1622 = vld [vmem:[#allocation2 + $0x78] sm:$0xff]
        %s1623 = scalar_lea.vmem %s1, 8
        %v1624 = vld [vmem:[%s1623] sm:$0x3]
        %v1625 = vunpack.c.l.b16 %v1428
        %v1626 = vunpack.c.l.b16 %v1438
        %v1627 = vunpack.c.l.b16 %v1452
        %v1628 = vunpack.c.l.b16 %v1462
        %v1629 = vunpack.c.l.b16 %v1476
        %v1630 = vunpack.c.l.b16 %v1486
        %v1631 = vunpack.c.l.b16 %v1500
        %v1632 = vunpack.c.l.b16 %v1510
        %v1633 = vunpack.c.l.b16 %v1524
        %v1634 = vunpack.c.l.b16 %v1534
        %v1635 = vunpack.c.l.b16 %v1548
        %v1636 = vunpack.c.l.b16 %v1558
        %v1637 = vunpack.c.l.b16 %v1572
        %v1638 = vunpack.c.l.b16 %v1582
        %v1639 = vunpack.c.l.b16 %v1596
        %v1640 = vunpack.c.l.b16 %v1606
        %v1641 = vpack.c.b16 %v1626, %v1625
        %v1642 = vpack.c.b16 %v1628, %v1627
        %v1643 = vpack.c.b16 %v1630, %v1629
        %v1644 = vpack.c.b16 %v1632, %v1631
        %v1645 = vpack.c.b16 %v1634, %v1633
        %v1646 = vpack.c.b16 %v1636, %v1635
        %v1647 = vpack.c.b16 %v1638, %v1637
        %v1648 = vpack.c.b16 %v1640, %v1639
        %v1650 = vsel %vm277, %v1641, 0
        %v1653 = vsel %vm277, %v1642, 0
        %v1656 = vsel %vm277, %v1643, 0
        %v1659 = vsel %vm277, %v1644, 0
        %v1662 = vsel %vm277, %v1645, 0
        %v1665 = vsel %vm277, %v1646, 0
        %v1668 = vsel %vm277, %v1647, 0
        %v1671 = vsel %vm277, %v1648, 0
        %v1674 = vsel %vm302, %v1624, 0
        %1676 = vmatprep.subr.bf16.mxu0 0
        %1677 = vmatpush1.bf16.msra.mxu0 %v1674
        %1678 = vmatprep.subr.bf16.mxu0 0
        %1679 = vmatpush1.bf16.msra.mxu0 0
        %1680 = vmatprep.subr.bf16.mxu0 0
        %1681 = vmatpush1.bf16.msra.mxu0 0
        %1682 = vmatprep.subr.bf16.mxu0 0
        %1683 = vmatpush1.bf16.msra.mxu0 0
        %1684 = vmatprep.subr.bf16.mxu0 0
        %1685 = vmatpush1.bf16.msra.mxu0 0
        %1686 = vmatprep.subr.bf16.mxu0 0
        %1687 = vmatpush1.bf16.msra.mxu0 0
        %1688 = vmatprep.subr.bf16.mxu0 0
        %1689 = vmatpush1.bf16.msra.mxu0 0
        %1690 = vmatprep.subr.bf16.mxu0 0
        %1691 = vmatpush1.bf16.msra.mxu0 0
        %1692 = vmatprep.subr.bf16.mxu0 0
        %1693 = vmatpush1.bf16.msra.mxu0 0
        %1694 = vmatprep.subr.bf16.mxu0 0
        %1695 = vmatpush1.bf16.msra.mxu0 0
        %1696 = vmatprep.subr.bf16.mxu0 0
        %1697 = vmatpush1.bf16.msra.mxu0 0
        %1698 = vmatprep.subr.bf16.mxu0 0
        %1699 = vmatpush1.bf16.msra.mxu0 0
        %1700 = vmatprep.subr.bf16.mxu0 0
        %1701 = vmatpush1.bf16.msra.mxu0 0
        %1702 = vmatprep.subr.bf16.mxu0 0
        %1703 = vmatpush1.bf16.msra.mxu0 0
        %1704 = vmatprep.subr.bf16.mxu0 0
        %1705 = vmatpush1.bf16.msra.mxu0 0
        %1706 = vmatprep.subr.bf16.mxu0 0
        %1707 = vmatpush1.bf16.msra.mxu0 0
        %1708 = vmatprep.mubr.bf16.mxu0 0
        %1709 = vmatmul.mubr.bf16.gmra.mrb[0].mxu0 %v1650
        %v1710 = vpop.f32.mrb[0].mxu0
        %v1711 = vadd.f32 0.0, %v1710
        %v1712 = vpop.f32.mrb[0].mxu0
        %v1713 = vpop.f32.mrb[0].mxu0
        %v1714 = vadd.f32 0.0, %v1713
        %v1715 = vpop.f32.mrb[0].mxu0
        %1716 = vmatprep.mubr.bf16.mxu0 0
        %1717 = vmatmul.mubr.bf16.gmra.mrb[0].mxu0 %v1653
        %v1718 = vpop.f32.mrb[0].mxu0
        %v1719 = vadd.f32 0.0, %v1718
        %v1720 = vpop.f32.mrb[0].mxu0
        %v1721 = vpop.f32.mrb[0].mxu0
        %v1722 = vadd.f32 0.0, %v1721
        %v1723 = vpop.f32.mrb[0].mxu0
        %1724 = vmatprep.mubr.bf16.mxu0 0
        %1725 = vmatmul.mubr.bf16.gmra.mrb[0].mxu0 %v1656
        %v1726 = vpop.f32.mrb[0].mxu0
        %v1727 = vadd.f32 0.0, %v1726
        %v1728 = vpop.f32.mrb[0].mxu0
        %v1729 = vpop.f32.mrb[0].mxu0
        %v1730 = vadd.f32 0.0, %v1729
        %v1731 = vpop.f32.mrb[0].mxu0
        %1732 = vmatprep.mubr.bf16.mxu0 0
        %1733 = vmatmul.mubr.bf16.gmra.mrb[0].mxu0 %v1659
        %v1734 = vpop.f32.mrb[0].mxu0
        %v1735 = vadd.f32 0.0, %v1734
        %v1736 = vpop.f32.mrb[0].mxu0
        %v1737 = vpop.f32.mrb[0].mxu0
        %v1738 = vadd.f32 0.0, %v1737
        %v1739 = vpop.f32.mrb[0].mxu0
        %1740 = vmatprep.mubr.bf16.mxu0 0
        %1741 = vmatmul.mubr.bf16.gmra.mrb[0].mxu0 %v1662
        %v1742 = vpop.f32.mrb[0].mxu0
        %v1743 = vadd.f32 0.0, %v1742
        %v1744 = vpop.f32.mrb[0].mxu0
        %v1745 = vpop.f32.mrb[0].mxu0
        %v1746 = vadd.f32 0.0, %v1745
        %v1747 = vpop.f32.mrb[0].mxu0
        %1748 = vmatprep.mubr.bf16.mxu0 0
        %1749 = vmatmul.mubr.bf16.gmra.mrb[0].mxu0 %v1665
        %v1750 = vpop.f32.mrb[0].mxu0
        %v1751 = vadd.f32 0.0, %v1750
        %v1752 = vpop.f32.mrb[0].mxu0
        %v1753 = vpop.f32.mrb[0].mxu0
        %v1754 = vadd.f32 0.0, %v1753
        %v1755 = vpop.f32.mrb[0].mxu0
        %1756 = vmatprep.mubr.bf16.mxu0 0
        %1757 = vmatmul.mubr.bf16.gmra.mrb[0].mxu0 %v1668
        %v1758 = vpop.f32.mrb[0].mxu0
        %v1759 = vadd.f32 0.0, %v1758
        %v1760 = vpop.f32.mrb[0].mxu0
        %v1761 = vpop.f32.mrb[0].mxu0
        %v1762 = vadd.f32 0.0, %v1761
        %v1763 = vpop.f32.mrb[0].mxu0
        %1764 = vmatprep.mubr.bf16.mxu0 0
        %1765 = vmatmul.mubr.bf16.gmra.mrb[0].mxu0 %v1671
        %v1766 = vpop.f32.mrb[0].mxu0
        %v1767 = vadd.f32 0.0, %v1766
        %v1768 = vpop.f32.mrb[0].mxu0
        %v1769 = vpop.f32.mrb[0].mxu0
        %v1770 = vadd.f32 0.0, %v1769
        %v1771 = vpop.f32.mrb[0].mxu0
        %1772 = vdwg.mxu0
        %v1773 = vadd.f32 %v1607, %v1711
        %v1774 = vadd.f32 %v1608, %v1714
        %v1775 = vadd.f32 %v1609, %v1719
        %v1776 = vadd.f32 %v1610, %v1722
        %v1777 = vadd.f32 %v1611, %v1727
        %v1778 = vadd.f32 %v1612, %v1730
        %v1779 = vadd.f32 %v1613, %v1735
        %v1780 = vadd.f32 %v1614, %v1738
        %v1781 = vadd.f32 %v1615, %v1743
        %v1782 = vadd.f32 %v1616, %v1746
        %v1783 = vadd.f32 %v1617, %v1751
        %v1784 = vadd.f32 %v1618, %v1754
        %v1785 = vadd.f32 %v1619, %v1759
        %v1786 = vadd.f32 %v1620, %v1762
        %v1787 = vadd.f32 %v1621, %v1767
        %v1788 = vadd.f32 %v1622, %v1770
        %1789 = vst [vmem:[#allocation2] sm:$0xff] %v1773
        %1790 = vst [vmem:[#allocation2 + $0x8] sm:$0xff] %v1774
        %1791 = vst [vmem:[#allocation2 + $0x10] sm:$0xff] %v1775
        %1792 = vst [vmem:[#allocation2 + $0x18] sm:$0xff] %v1776
        %1793 = vst [vmem:[#allocation2 + $0x20] sm:$0xff] %v1777
        %1794 = vst [vmem:[#allocation2 + $0x28] sm:$0xff] %v1778
        %1795 = vst [vmem:[#allocation2 + $0x30] sm:$0xff] %v1779
        %1796 = vst [vmem:[#allocation2 + $0x38] sm:$0xff] %v1780
        %1797 = vst [vmem:[#allocation2 + $0x40] sm:$0xff] %v1781
        %1798 = vst [vmem:[#allocation2 + $0x48] sm:$0xff] %v1782
        %1799 = vst [vmem:[#allocation2 + $0x50] sm:$0xff] %v1783
        %1800 = vst [vmem:[#allocation2 + $0x58] sm:$0xff] %v1784
        %1801 = vst [vmem:[#allocation2 + $0x60] sm:$0xff] %v1785
        %1802 = vst [vmem:[#allocation2 + $0x68] sm:$0xff] %v1786
        %1803 = vst [vmem:[#allocation2 + $0x70] sm:$0xff] %v1787
        %1804 = vst [vmem:[#allocation2 + $0x78] sm:$0xff] %v1788
        %v1805 = vld [vmem:[%s1160] sm:$0xe]
        %v1806 = vld [vmem:[%s1160 + $0x4] sm:$0xf]
        %v1807 = vld [vmem:[%s1160 + $0x8] sm:$0x1]
        %v1808 = vld [vmem:[%s1160 + $0xc] sm:$0xe]
        %v1809 = vld [vmem:[%s1160 + $0x10] sm:$0xf]
        %v1810 = vld [vmem:[%s1160 + $0x14] sm:$0x1]
        %v1811 = vld [vmem:[%s1160 + $0x18] sm:$0xe]
        %v1812 = vld [vmem:[%s1160 + $0x1c] sm:$0xf]
        %v1813 = vld [vmem:[%s1160 + $0x20] sm:$0x1]
        %v1814 = vld [vmem:[%s1160 + $0x24] sm:$0xe]
        %v1815 = vld [vmem:[%s1160 + $0x28] sm:$0xf]
        %v1816 = vld [vmem:[%s1160 + $0x2c] sm:$0x1]
        %v1817 = vld [vmem:[%s1160 + $0x30] sm:$0xe]
        %v1818 = vld [vmem:[%s1160 + $0x34] sm:$0xf]
        %v1819 = vld [vmem:[%s1160 + $0x38] sm:$0x1]
        %v1820 = vld [vmem:[%s1160 + $0x3c] sm:$0xe]
        %v1821 = vld [vmem:[%s1160 + $0x40] sm:$0xf]
        %v1822 = vld [vmem:[%s1160 + $0x44] sm:$0x1]
        %v1823 = vld [vmem:[%s1160 + $0x48] sm:$0xe]
        %v1824 = vld [vmem:[%s1160 + $0x4c] sm:$0xf]
        %v1825 = vld [vmem:[%s1160 + $0x50] sm:$0x1]
        %v1826 = vld [vmem:[%s1160 + $0x54] sm:$0xe]
        %v1827 = vld [vmem:[%s1160 + $0x58] sm:$0xf]
        %v1828 = vld [vmem:[%s1160 + $0x5c] sm:$0x1]
        %v1853 = vrot.slane %v1805, 5
        %v1854 = vrot.slane %v1853, 4
        %v1855 = vrot.slane %v1806, 5
        %v1856 = vsel %vm902, %v1854, %v1855
        %v1857 = vrot.slane %v1855, 4
        %v1858 = vrot.slane %v1807, 5
        %v1859 = vsel %vm902, %v1857, %v1858
        %v1860 = vrot.slane %v1808, 5
        %v1861 = vrot.slane %v1860, 4
        %v1862 = vrot.slane %v1809, 5
        %v1863 = vsel %vm902, %v1861, %v1862
        %v1864 = vrot.slane %v1862, 4
        %v1865 = vrot.slane %v1810, 5
        %v1866 = vsel %vm902, %v1864, %v1865
        %v1867 = vrot.slane %v1811, 5
        %v1868 = vrot.slane %v1867, 4
        %v1869 = vrot.slane %v1812, 5
        %v1870 = vsel %vm902, %v1868, %v1869
        %v1871 = vrot.slane %v1869, 4
        %v1872 = vrot.slane %v1813, 5
        %v1873 = vsel %vm902, %v1871, %v1872
        %v1874 = vrot.slane %v1814, 5
        %v1875 = vrot.slane %v1874, 4
        %v1876 = vrot.slane %v1815, 5
        %v1877 = vsel %vm902, %v1875, %v1876
        %v1878 = vrot.slane %v1876, 4
        %v1879 = vrot.slane %v1816, 5
        %v1880 = vsel %vm902, %v1878, %v1879
        %v1881 = vrot.slane %v1817, 5
        %v1882 = vrot.slane %v1881, 4
        %v1883 = vrot.slane %v1818, 5
        %v1884 = vsel %vm902, %v1882, %v1883
        %v1885 = vrot.slane %v1883, 4
        %v1886 = vrot.slane %v1819, 5
        %v1887 = vsel %vm902, %v1885, %v1886
        %v1888 = vrot.slane %v1820, 5
        %v1889 = vrot.slane %v1888, 4
        %v1890 = vrot.slane %v1821, 5
        %v1891 = vsel %vm902, %v1889, %v1890
        %v1892 = vrot.slane %v1890, 4
        %v1893 = vrot.slane %v1822, 5
        %v1894 = vsel %vm902, %v1892, %v1893
        %v1895 = vrot.slane %v1823, 5
        %v1896 = vrot.slane %v1895, 4
        %v1897 = vrot.slane %v1824, 5
        %v1898 = vsel %vm902, %v1896, %v1897
        %v1899 = vrot.slane %v1897, 4
        %v1900 = vrot.slane %v1825, 5
        %v1901 = vsel %vm902, %v1899, %v1900
        %v1902 = vrot.slane %v1826, 5
        %v1903 = vrot.slane %v1902, 4
        %v1904 = vrot.slane %v1827, 5
        %v1905 = vsel %vm902, %v1903, %v1904
        %v1906 = vrot.slane %v1904, 4
        %v1907 = vrot.slane %v1828, 5
        %v1908 = vsel %vm902, %v1906, %v1907
        %v1909 = vld [vmem:[#allocation2] sm:$0xff]
        %v1910 = vld [vmem:[#allocation2 + $0x8] sm:$0xff]
        %v1911 = vld [vmem:[#allocation2 + $0x10] sm:$0xff]
        %v1912 = vld [vmem:[#allocation2 + $0x18] sm:$0xff]
        %v1913 = vld [vmem:[#allocation2 + $0x20] sm:$0xff]
        %v1914 = vld [vmem:[#allocation2 + $0x28] sm:$0xff]
        %v1915 = vld [vmem:[#allocation2 + $0x30] sm:$0xff]
        %v1916 = vld [vmem:[#allocation2 + $0x38] sm:$0xff]
        %v1917 = vld [vmem:[#allocation2 + $0x40] sm:$0xff]
        %v1918 = vld [vmem:[#allocation2 + $0x48] sm:$0xff]
        %v1919 = vld [vmem:[#allocation2 + $0x50] sm:$0xff]
        %v1920 = vld [vmem:[#allocation2 + $0x58] sm:$0xff]
        %v1921 = vld [vmem:[#allocation2 + $0x60] sm:$0xff]
        %v1922 = vld [vmem:[#allocation2 + $0x68] sm:$0xff]
        %v1923 = vld [vmem:[#allocation2 + $0x70] sm:$0xff]
        %v1924 = vld [vmem:[#allocation2 + $0x78] sm:$0xff]
        %s1925 = scalar_lea.vmem %s1, 10
        %v1926 = vld [vmem:[%s1925] sm:$0x3]
        %v1927 = vunpack.c.l.b16 %v1856
        %v1928 = vunpack.c.l.b16 %v1859
        %v1929 = vunpack.c.l.b16 %v1863
        %v1930 = vunpack.c.l.b16 %v1866
        %v1931 = vunpack.c.l.b16 %v1870
        %v1932 = vunpack.c.l.b16 %v1873
        %v1933 = vunpack.c.l.b16 %v1877
        %v1934 = vunpack.c.l.b16 %v1880
        %v1935 = vunpack.c.l.b16 %v1884
        %v1936 = vunpack.c.l.b16 %v1887
        %v1937 = vunpack.c.l.b16 %v1891
        %v1938 = vunpack.c.l.b16 %v1894
        %v1939 = vunpack.c.l.b16 %v1898
        %v1940 = vunpack.c.l.b16 %v1901
        %v1941 = vunpack.c.l.b16 %v1905
        %v1942 = vunpack.c.l.b16 %v1908
        %v1943 = vpack.c.b16 %v1928, %v1927
        %v1944 = vpack.c.b16 %v1930, %v1929
        %v1945 = vpack.c.b16 %v1932, %v1931
        %v1946 = vpack.c.b16 %v1934, %v1933
        %v1947 = vpack.c.b16 %v1936, %v1935
        %v1948 = vpack.c.b16 %v1938, %v1937
        %v1949 = vpack.c.b16 %v1940, %v1939
        %v1950 = vpack.c.b16 %v1942, %v1941
        %v1952 = vsel %vm277, %v1943, 0
        %v1955 = vsel %vm277, %v1944, 0
        %v1958 = vsel %vm277, %v1945, 0
        %v1961 = vsel %vm277, %v1946, 0
        %v1964 = vsel %vm277, %v1947, 0
        %v1967 = vsel %vm277, %v1948, 0
        %v1970 = vsel %vm277, %v1949, 0
        %v1973 = vsel %vm277, %v1950, 0
        %v1976 = vsel %vm302, %v1926, 0
        %1978 = vmatprep.subr.bf16.mxu0 0
        %1979 = vmatpush1.bf16.msra.mxu0 %v1976
        %1980 = vmatprep.subr.bf16.mxu0 0
        %1981 = vmatpush1.bf16.msra.mxu0 0
        %1982 = vmatprep.subr.bf16.mxu0 0
        %1983 = vmatpush1.bf16.msra.mxu0 0
        %1984 = vmatprep.subr.bf16.mxu0 0
        %1985 = vmatpush1.bf16.msra.mxu0 0
        %1986 = vmatprep.subr.bf16.mxu0 0
        %1987 = vmatpush1.bf16.msra.mxu0 0
        %1988 = vmatprep.subr.bf16.mxu0 0
        %1989 = vmatpush1.bf16.msra.mxu0 0
        %1990 = vmatprep.subr.bf16.mxu0 0
        %1991 = vmatpush1.bf16.msra.mxu0 0
        %1992 = vmatprep.subr.bf16.mxu0 0
        %1993 = vmatpush1.bf16.msra.mxu0 0
        %1994 = vmatprep.subr.bf16.mxu0 0
        %1995 = vmatpush1.bf16.msra.mxu0 0
        %1996 = vmatprep.subr.bf16.mxu0 0
        %1997 = vmatpush1.bf16.msra.mxu0 0
        %1998 = vmatprep.subr.bf16.mxu0 0
        %1999 = vmatpush1.bf16.msra.mxu0 0
        %2000 = vmatprep.subr.bf16.mxu0 0
        %2001 = vmatpush1.bf16.msra.mxu0 0
        %2002 = vmatprep.subr.bf16.mxu0 0
        %2003 = vmatpush1.bf16.msra.mxu0 0
        %2004 = vmatprep.subr.bf16.mxu0 0
        %2005 = vmatpush1.bf16.msra.mxu0 0
        %2006 = vmatprep.subr.bf16.mxu0 0
        %2007 = vmatpush1.bf16.msra.mxu0 0
        %2008 = vmatprep.subr.bf16.mxu0 0
        %2009 = vmatpush1.bf16.msra.mxu0 0
        %2010 = vmatprep.mubr.bf16.mxu0 0
        %2011 = vmatmul.mubr.bf16.gmra.mrb[0].mxu0 %v1952
        %v2012 = vpop.f32.mrb[0].mxu0
        %v2013 = vadd.f32 0.0, %v2012
        %v2014 = vpop.f32.mrb[0].mxu0
        %v2015 = vpop.f32.mrb[0].mxu0
        %v2016 = vadd.f32 0.0, %v2015
        %v2017 = vpop.f32.mrb[0].mxu0
        %2018 = vmatprep.mubr.bf16.mxu0 0
        %2019 = vmatmul.mubr.bf16.gmra.mrb[0].mxu0 %v1955
        %v2020 = vpop.f32.mrb[0].mxu0
        %v2021 = vadd.f32 0.0, %v2020
        %v2022 = vpop.f32.mrb[0].mxu0
        %v2023 = vpop.f32.mrb[0].mxu0
        %v2024 = vadd.f32 0.0, %v2023
        %v2025 = vpop.f32.mrb[0].mxu0
        %2026 = vmatprep.mubr.bf16.mxu0 0
        %2027 = vmatmul.mubr.bf16.gmra.mrb[0].mxu0 %v1958
        %v2028 = vpop.f32.mrb[0].mxu0
        %v2029 = vadd.f32 0.0, %v2028
        %v2030 = vpop.f32.mrb[0].mxu0
        %v2031 = vpop.f32.mrb[0].mxu0
        %v2032 = vadd.f32 0.0, %v2031
        %v2033 = vpop.f32.mrb[0].mxu0
        %2034 = vmatprep.mubr.bf16.mxu0 0
        %2035 = vmatmul.mubr.bf16.gmra.mrb[0].mxu0 %v1961
        %v2036 = vpop.f32.mrb[0].mxu0
        %v2037 = vadd.f32 0.0, %v2036
        %v2038 = vpop.f32.mrb[0].mxu0
        %v2039 = vpop.f32.mrb[0].mxu0
        %v2040 = vadd.f32 0.0, %v2039
        %v2041 = vpop.f32.mrb[0].mxu0
        %2042 = vmatprep.mubr.bf16.mxu0 0
        %2043 = vmatmul.mubr.bf16.gmra.mrb[0].mxu0 %v1964
        %v2044 = vpop.f32.mrb[0].mxu0
        %v2045 = vadd.f32 0.0, %v2044
        %v2046 = vpop.f32.mrb[0].mxu0
        %v2047 = vpop.f32.mrb[0].mxu0
        %v2048 = vadd.f32 0.0, %v2047
        %v2049 = vpop.f32.mrb[0].mxu0
        %2050 = vmatprep.mubr.bf16.mxu0 0
        %2051 = vmatmul.mubr.bf16.gmra.mrb[0].mxu0 %v1967
        %v2052 = vpop.f32.mrb[0].mxu0
        %v2053 = vadd.f32 0.0, %v2052
        %v2054 = vpop.f32.mrb[0].mxu0
        %v2055 = vpop.f32.mrb[0].mxu0
        %v2056 = vadd.f32 0.0, %v2055
        %v2057 = vpop.f32.mrb[0].mxu0
        %2058 = vmatprep.mubr.bf16.mxu0 0
        %2059 = vmatmul.mubr.bf16.gmra.mrb[0].mxu0 %v1970
        %v2060 = vpop.f32.mrb[0].mxu0
        %v2061 = vadd.f32 0.0, %v2060
        %v2062 = vpop.f32.mrb[0].mxu0
        %v2063 = vpop.f32.mrb[0].mxu0
        %v2064 = vadd.f32 0.0, %v2063
        %v2065 = vpop.f32.mrb[0].mxu0
        %2066 = vmatprep.mubr.bf16.mxu0 0
        %2067 = vmatmul.mubr.bf16.gmra.mrb[0].mxu0 %v1973
        %v2068 = vpop.f32.mrb[0].mxu0
        %v2069 = vadd.f32 0.0, %v2068
        %v2070 = vpop.f32.mrb[0].mxu0
        %v2071 = vpop.f32.mrb[0].mxu0
        %v2072 = vadd.f32 0.0, %v2071
        %v2073 = vpop.f32.mrb[0].mxu0
        %2074 = vdwg.mxu0
        %v2075 = vadd.f32 %v1909, %v2013
        %v2076 = vadd.f32 %v1910, %v2016
        %v2077 = vadd.f32 %v1911, %v2021
        %v2078 = vadd.f32 %v1912, %v2024
        %v2079 = vadd.f32 %v1913, %v2029
        %v2080 = vadd.f32 %v1914, %v2032
        %v2081 = vadd.f32 %v1915, %v2037
        %v2082 = vadd.f32 %v1916, %v2040
        %v2083 = vadd.f32 %v1917, %v2045
        %v2084 = vadd.f32 %v1918, %v2048
        %v2085 = vadd.f32 %v1919, %v2053
        %v2086 = vadd.f32 %v1920, %v2056
        %v2087 = vadd.f32 %v1921, %v2061
        %v2088 = vadd.f32 %v1922, %v2064
        %v2089 = vadd.f32 %v1923, %v2069
        %v2090 = vadd.f32 %v1924, %v2072
        %2091 = vst [vmem:[#allocation2] sm:$0xff] %v2075
        %2092 = vst [vmem:[#allocation2 + $0x8] sm:$0xff] %v2076
        %2093 = vst [vmem:[#allocation2 + $0x10] sm:$0xff] %v2077
        %2094 = vst [vmem:[#allocation2 + $0x18] sm:$0xff] %v2078
        %2095 = vst [vmem:[#allocation2 + $0x20] sm:$0xff] %v2079
        %2096 = vst [vmem:[#allocation2 + $0x28] sm:$0xff] %v2080
        %2097 = vst [vmem:[#allocation2 + $0x30] sm:$0xff] %v2081
        %2098 = vst [vmem:[#allocation2 + $0x38] sm:$0xff] %v2082
        %2099 = vst [vmem:[#allocation2 + $0x40] sm:$0xff] %v2083
        %2100 = vst [vmem:[#allocation2 + $0x48] sm:$0xff] %v2084
        %2101 = vst [vmem:[#allocation2 + $0x50] sm:$0xff] %v2085
        %2102 = vst [vmem:[#allocation2 + $0x58] sm:$0xff] %v2086
        %2103 = vst [vmem:[#allocation2 + $0x60] sm:$0xff] %v2087
        %2104 = vst [vmem:[#allocation2 + $0x68] sm:$0xff] %v2088
        %2105 = vst [vmem:[#allocation2 + $0x70] sm:$0xff] %v2089
        %2106 = vst [vmem:[#allocation2 + $0x78] sm:$0xff] %v2090
        %s2107 = sadd.s32 %s184, 2
        %s2108 = smul.u32 %s2107, 3
        %s2109 = smul.addr %s2108, 4
        %s2110 = scalar_lea.vmem %s182, %s2109
        %v2111 = vld [vmem:[%s2110] sm:$0xf]
        %v2112 = vld [vmem:[%s2110 + $0x4] sm:$0xf]
        %v2113 = vld [vmem:[%s2110 + $0xc] sm:$0xf]
        %v2114 = vld [vmem:[%s2110 + $0x10] sm:$0xf]
        %v2115 = vld [vmem:[%s2110 + $0x18] sm:$0xf]
        %v2116 = vld [vmem:[%s2110 + $0x1c] sm:$0xf]
        %v2117 = vld [vmem:[%s2110 + $0x24] sm:$0xf]
        %v2118 = vld [vmem:[%s2110 + $0x28] sm:$0xf]
        %v2119 = vld [vmem:[%s2110 + $0x30] sm:$0xf]
        %v2120 = vld [vmem:[%s2110 + $0x34] sm:$0xf]
        %v2121 = vld [vmem:[%s2110 + $0x3c] sm:$0xf]
        %v2122 = vld [vmem:[%s2110 + $0x40] sm:$0xf]
        %v2123 = vld [vmem:[%s2110 + $0x48] sm:$0xf]
        %v2124 = vld [vmem:[%s2110 + $0x4c] sm:$0xf]
        %v2125 = vld [vmem:[%s2110 + $0x54] sm:$0xf]
        %v2126 = vld [vmem:[%s2110 + $0x58] sm:$0xf]
        %v2127 = vld [vmem:[#allocation2] sm:$0xff]
        %v2128 = vld [vmem:[#allocation2 + $0x8] sm:$0xff]
        %v2129 = vld [vmem:[#allocation2 + $0x10] sm:$0xff]
        %v2130 = vld [vmem:[#allocation2 + $0x18] sm:$0xff]
        %v2131 = vld [vmem:[#allocation2 + $0x20] sm:$0xff]
        %v2132 = vld [vmem:[#allocation2 + $0x28] sm:$0xff]
        %v2133 = vld [vmem:[#allocation2 + $0x30] sm:$0xff]
        %v2134 = vld [vmem:[#allocation2 + $0x38] sm:$0xff]
        %v2135 = vld [vmem:[#allocation2 + $0x40] sm:$0xff]
        %v2136 = vld [vmem:[#allocation2 + $0x48] sm:$0xff]
        %v2137 = vld [vmem:[#allocation2 + $0x50] sm:$0xff]
        %v2138 = vld [vmem:[#allocation2 + $0x58] sm:$0xff]
        %v2139 = vld [vmem:[#allocation2 + $0x60] sm:$0xff]
        %v2140 = vld [vmem:[#allocation2 + $0x68] sm:$0xff]
        %v2141 = vld [vmem:[#allocation2 + $0x70] sm:$0xff]
        %v2142 = vld [vmem:[#allocation2 + $0x78] sm:$0xff]
        %s2143 = scalar_lea.vmem %s1, 12
        %v2144 = vld [vmem:[%s2143] sm:$0x3]
        %v2161 = vunpack.c.l.b16 %v2111
        %v2162 = vunpack.c.l.b16 %v2112
        %v2163 = vunpack.c.l.b16 %v2113
        %v2164 = vunpack.c.l.b16 %v2114
        %v2165 = vunpack.c.l.b16 %v2115
        %v2166 = vunpack.c.l.b16 %v2116
        %v2167 = vunpack.c.l.b16 %v2117
        %v2168 = vunpack.c.l.b16 %v2118
        %v2169 = vunpack.c.l.b16 %v2119
        %v2170 = vunpack.c.l.b16 %v2120
        %v2171 = vunpack.c.l.b16 %v2121
        %v2172 = vunpack.c.l.b16 %v2122
        %v2173 = vunpack.c.l.b16 %v2123
        %v2174 = vunpack.c.l.b16 %v2124
        %v2175 = vunpack.c.l.b16 %v2125
        %v2176 = vunpack.c.l.b16 %v2126
        %v2177 = vpack.c.b16 %v2162, %v2161
        %v2178 = vpack.c.b16 %v2164, %v2163
        %v2179 = vpack.c.b16 %v2166, %v2165
        %v2180 = vpack.c.b16 %v2168, %v2167
        %v2181 = vpack.c.b16 %v2170, %v2169
        %v2182 = vpack.c.b16 %v2172, %v2171
        %v2183 = vpack.c.b16 %v2174, %v2173
        %v2184 = vpack.c.b16 %v2176, %v2175
        %v2186 = vsel %vm277, %v2177, 0
        %v2189 = vsel %vm277, %v2178, 0
        %v2192 = vsel %vm277, %v2179, 0
        %v2195 = vsel %vm277, %v2180, 0
        %v2198 = vsel %vm277, %v2181, 0
        %v2201 = vsel %vm277, %v2182, 0
        %v2204 = vsel %vm277, %v2183, 0
        %v2207 = vsel %vm277, %v2184, 0
        %v2210 = vsel %vm302, %v2144, 0
        %2212 = vmatprep.subr.bf16.mxu0 0
        %2213 = vmatpush1.bf16.msra.mxu0 %v2210
        %2214 = vmatprep.subr.bf16.mxu0 0
        %2215 = vmatpush1.bf16.msra.mxu0 0
        %2216 = vmatprep.subr.bf16.mxu0 0
        %2217 = vmatpush1.bf16.msra.mxu0 0
        %2218 = vmatprep.subr.bf16.mxu0 0
        %2219 = vmatpush1.bf16.msra.mxu0 0
        %2220 = vmatprep.subr.bf16.mxu0 0
        %2221 = vmatpush1.bf16.msra.mxu0 0
        %2222 = vmatprep.subr.bf16.mxu0 0
        %2223 = vmatpush1.bf16.msra.mxu0 0
        %2224 = vmatprep.subr.bf16.mxu0 0
        %2225 = vmatpush1.bf16.msra.mxu0 0
        %2226 = vmatprep.subr.bf16.mxu0 0
        %2227 = vmatpush1.bf16.msra.mxu0 0
        %2228 = vmatprep.subr.bf16.mxu0 0
        %2229 = vmatpush1.bf16.msra.mxu0 0
        %2230 = vmatprep.subr.bf16.mxu0 0
        %2231 = vmatpush1.bf16.msra.mxu0 0
        %2232 = vmatprep.subr.bf16.mxu0 0
        %2233 = vmatpush1.bf16.msra.mxu0 0
        %2234 = vmatprep.subr.bf16.mxu0 0
        %2235 = vmatpush1.bf16.msra.mxu0 0
        %2236 = vmatprep.subr.bf16.mxu0 0
        %2237 = vmatpush1.bf16.msra.mxu0 0
        %2238 = vmatprep.subr.bf16.mxu0 0
        %2239 = vmatpush1.bf16.msra.mxu0 0
        %2240 = vmatprep.subr.bf16.mxu0 0
        %2241 = vmatpush1.bf16.msra.mxu0 0
        %2242 = vmatprep.subr.bf16.mxu0 0
        %2243 = vmatpush1.bf16.msra.mxu0 0
        %2244 = vmatprep.mubr.bf16.mxu0 0
        %2245 = vmatmul.mubr.bf16.gmra.mrb[0].mxu0 %v2186
        %v2246 = vpop.f32.mrb[0].mxu0
        %v2247 = vadd.f32 0.0, %v2246
        %v2248 = vpop.f32.mrb[0].mxu0
        %v2249 = vpop.f32.mrb[0].mxu0
        %v2250 = vadd.f32 0.0, %v2249
        %v2251 = vpop.f32.mrb[0].mxu0
        %2252 = vmatprep.mubr.bf16.mxu0 0
        %2253 = vmatmul.mubr.bf16.gmra.mrb[0].mxu0 %v2189
        %v2254 = vpop.f32.mrb[0].mxu0
        %v2255 = vadd.f32 0.0, %v2254
        %v2256 = vpop.f32.mrb[0].mxu0
        %v2257 = vpop.f32.mrb[0].mxu0
        %v2258 = vadd.f32 0.0, %v2257
        %v2259 = vpop.f32.mrb[0].mxu0
        %2260 = vmatprep.mubr.bf16.mxu0 0
        %2261 = vmatmul.mubr.bf16.gmra.mrb[0].mxu0 %v2192
        %v2262 = vpop.f32.mrb[0].mxu0
        %v2263 = vadd.f32 0.0, %v2262
        %v2264 = vpop.f32.mrb[0].mxu0
        %v2265 = vpop.f32.mrb[0].mxu0
        %v2266 = vadd.f32 0.0, %v2265
        %v2267 = vpop.f32.mrb[0].mxu0
        %2268 = vmatprep.mubr.bf16.mxu0 0
        %2269 = vmatmul.mubr.bf16.gmra.mrb[0].mxu0 %v2195
        %v2270 = vpop.f32.mrb[0].mxu0
        %v2271 = vadd.f32 0.0, %v2270
        %v2272 = vpop.f32.mrb[0].mxu0
        %v2273 = vpop.f32.mrb[0].mxu0
        %v2274 = vadd.f32 0.0, %v2273
        %v2275 = vpop.f32.mrb[0].mxu0
        %2276 = vmatprep.mubr.bf16.mxu0 0
        %2277 = vmatmul.mubr.bf16.gmra.mrb[0].mxu0 %v2198
        %v2278 = vpop.f32.mrb[0].mxu0
        %v2279 = vadd.f32 0.0, %v2278
        %v2280 = vpop.f32.mrb[0].mxu0
        %v2281 = vpop.f32.mrb[0].mxu0
        %v2282 = vadd.f32 0.0, %v2281
        %v2283 = vpop.f32.mrb[0].mxu0
        %2284 = vmatprep.mubr.bf16.mxu0 0
        %2285 = vmatmul.mubr.bf16.gmra.mrb[0].mxu0 %v2201
        %v2286 = vpop.f32.mrb[0].mxu0
        %v2287 = vadd.f32 0.0, %v2286
        %v2288 = vpop.f32.mrb[0].mxu0
        %v2289 = vpop.f32.mrb[0].mxu0
        %v2290 = vadd.f32 0.0, %v2289
        %v2291 = vpop.f32.mrb[0].mxu0
        %2292 = vmatprep.mubr.bf16.mxu0 0
        %2293 = vmatmul.mubr.bf16.gmra.mrb[0].mxu0 %v2204
        %v2294 = vpop.f32.mrb[0].mxu0
        %v2295 = vadd.f32 0.0, %v2294
        %v2296 = vpop.f32.mrb[0].mxu0
        %v2297 = vpop.f32.mrb[0].mxu0
        %v2298 = vadd.f32 0.0, %v2297
        %v2299 = vpop.f32.mrb[0].mxu0
        %2300 = vmatprep.mubr.bf16.mxu0 0
        %2301 = vmatmul.mubr.bf16.gmra.mrb[0].mxu0 %v2207
        %v2302 = vpop.f32.mrb[0].mxu0
        %v2303 = vadd.f32 0.0, %v2302
        %v2304 = vpop.f32.mrb[0].mxu0
        %v2305 = vpop.f32.mrb[0].mxu0
        %v2306 = vadd.f32 0.0, %v2305
        %v2307 = vpop.f32.mrb[0].mxu0
        %2308 = vdwg.mxu0
        %v2309 = vadd.f32 %v2127, %v2247
        %v2310 = vadd.f32 %v2128, %v2250
        %v2311 = vadd.f32 %v2129, %v2255
        %v2312 = vadd.f32 %v2130, %v2258
        %v2313 = vadd.f32 %v2131, %v2263
        %v2314 = vadd.f32 %v2132, %v2266
        %v2315 = vadd.f32 %v2133, %v2271
        %v2316 = vadd.f32 %v2134, %v2274
        %v2317 = vadd.f32 %v2135, %v2279
        %v2318 = vadd.f32 %v2136, %v2282
        %v2319 = vadd.f32 %v2137, %v2287
        %v2320 = vadd.f32 %v2138, %v2290
        %v2321 = vadd.f32 %v2139, %v2295
        %v2322 = vadd.f32 %v2140, %v2298
        %v2323 = vadd.f32 %v2141, %v2303
        %v2324 = vadd.f32 %v2142, %v2306
        %2325 = vst [vmem:[#allocation2] sm:$0xff] %v2309
        %2326 = vst [vmem:[#allocation2 + $0x8] sm:$0xff] %v2310
        %2327 = vst [vmem:[#allocation2 + $0x10] sm:$0xff] %v2311
        %2328 = vst [vmem:[#allocation2 + $0x18] sm:$0xff] %v2312
        %2329 = vst [vmem:[#allocation2 + $0x20] sm:$0xff] %v2313
        %2330 = vst [vmem:[#allocation2 + $0x28] sm:$0xff] %v2314
        %2331 = vst [vmem:[#allocation2 + $0x30] sm:$0xff] %v2315
        %2332 = vst [vmem:[#allocation2 + $0x38] sm:$0xff] %v2316
        %2333 = vst [vmem:[#allocation2 + $0x40] sm:$0xff] %v2317
        %2334 = vst [vmem:[#allocation2 + $0x48] sm:$0xff] %v2318
        %2335 = vst [vmem:[#allocation2 + $0x50] sm:$0xff] %v2319
        %2336 = vst [vmem:[#allocation2 + $0x58] sm:$0xff] %v2320
        %2337 = vst [vmem:[#allocation2 + $0x60] sm:$0xff] %v2321
        %2338 = vst [vmem:[#allocation2 + $0x68] sm:$0xff] %v2322
        %2339 = vst [vmem:[#allocation2 + $0x70] sm:$0xff] %v2323
        %2340 = vst [vmem:[#allocation2 + $0x78] sm:$0xff] %v2324
        %v2341 = vld [vmem:[%s2110] sm:$0xf]
        %v2342 = vld [vmem:[%s2110 + $0x4] sm:$0xf]
        %v2343 = vld [vmem:[%s2110 + $0x8] sm:$0x1]
        %v2344 = vld [vmem:[%s2110 + $0xc] sm:$0xf]
        %v2345 = vld [vmem:[%s2110 + $0x10] sm:$0xf]
        %v2346 = vld [vmem:[%s2110 + $0x14] sm:$0x1]
        %v2347 = vld [vmem:[%s2110 + $0x18] sm:$0xf]
        %v2348 = vld [vmem:[%s2110 + $0x1c] sm:$0xf]
        %v2349 = vld [vmem:[%s2110 + $0x20] sm:$0x1]
        %v2350 = vld [vmem:[%s2110 + $0x24] sm:$0xf]
        %v2351 = vld [vmem:[%s2110 + $0x28] sm:$0xf]
        %v2352 = vld [vmem:[%s2110 + $0x2c] sm:$0x1]
        %v2353 = vld [vmem:[%s2110 + $0x30] sm:$0xf]
        %v2354 = vld [vmem:[%s2110 + $0x34] sm:$0xf]
        %v2355 = vld [vmem:[%s2110 + $0x38] sm:$0x1]
        %v2356 = vld [vmem:[%s2110 + $0x3c] sm:$0xf]
        %v2357 = vld [vmem:[%s2110 + $0x40] sm:$0xf]
        %v2358 = vld [vmem:[%s2110 + $0x44] sm:$0x1]
        %v2359 = vld [vmem:[%s2110 + $0x48] sm:$0xf]
        %v2360 = vld [vmem:[%s2110 + $0x4c] sm:$0xf]
        %v2361 = vld [vmem:[%s2110 + $0x50] sm:$0x1]
        %v2362 = vld [vmem:[%s2110 + $0x54] sm:$0xf]
        %v2363 = vld [vmem:[%s2110 + $0x58] sm:$0xf]
        %v2364 = vld [vmem:[%s2110 + $0x5c] sm:$0x1]
        %v2366 = vshrl.u32 %v2341, 16
        %v2368 = vrot.slane %v2366, 4
        %v2369 = vshll.u32 %v2341, 16
        %v2371 = vrot.slane %v2369, 5
        %v2372 = vor.u32 %v2368, %v2371
        %v2373 = vrot.slane %v2372, 4
        %v2375 = vshll.u32 %v2342, 16
        %v2377 = vrot.slane %v2375, 5
        %v2378 = vsel %vm461, %v2373, %v2377
        %v2379 = vshrl.u32 %v2342, 16
        %v2381 = vrot.slane %v2379, 4
        %v2382 = vor.u32 %v2381, %v2377
        %v2383 = vrot.slane %v2382, 4
        %v2385 = vshll.u32 %v2343, 16
        %v2387 = vrot.slane %v2385, 5
        %v2388 = vsel %vm461, %v2383, %v2387
        %v2390 = vshrl.u32 %v2344, 16
        %v2392 = vrot.slane %v2390, 4
        %v2393 = vshll.u32 %v2344, 16
        %v2395 = vrot.slane %v2393, 5
        %v2396 = vor.u32 %v2392, %v2395
        %v2397 = vrot.slane %v2396, 4
        %v2399 = vshll.u32 %v2345, 16
        %v2401 = vrot.slane %v2399, 5
        %v2402 = vsel %vm461, %v2397, %v2401
        %v2403 = vshrl.u32 %v2345, 16
        %v2405 = vrot.slane %v2403, 4
        %v2406 = vor.u32 %v2405, %v2401
        %v2407 = vrot.slane %v2406, 4
        %v2409 = vshll.u32 %v2346, 16
        %v2411 = vrot.slane %v2409, 5
        %v2412 = vsel %vm461, %v2407, %v2411
        %v2414 = vshrl.u32 %v2347, 16
        %v2416 = vrot.slane %v2414, 4
        %v2417 = vshll.u32 %v2347, 16
        %v2419 = vrot.slane %v2417, 5
        %v2420 = vor.u32 %v2416, %v2419
        %v2421 = vrot.slane %v2420, 4
        %v2423 = vshll.u32 %v2348, 16
        %v2425 = vrot.slane %v2423, 5
        %v2426 = vsel %vm461, %v2421, %v2425
        %v2427 = vshrl.u32 %v2348, 16
        %v2429 = vrot.slane %v2427, 4
        %v2430 = vor.u32 %v2429, %v2425
        %v2431 = vrot.slane %v2430, 4
        %v2433 = vshll.u32 %v2349, 16
        %v2435 = vrot.slane %v2433, 5
        %v2436 = vsel %vm461, %v2431, %v2435
        %v2438 = vshrl.u32 %v2350, 16
        %v2440 = vrot.slane %v2438, 4
        %v2441 = vshll.u32 %v2350, 16
        %v2443 = vrot.slane %v2441, 5
        %v2444 = vor.u32 %v2440, %v2443
        %v2445 = vrot.slane %v2444, 4
        %v2447 = vshll.u32 %v2351, 16
        %v2449 = vrot.slane %v2447, 5
        %v2450 = vsel %vm461, %v2445, %v2449
        %v2451 = vshrl.u32 %v2351, 16
        %v2453 = vrot.slane %v2451, 4
        %v2454 = vor.u32 %v2453, %v2449
        %v2455 = vrot.slane %v2454, 4
        %v2457 = vshll.u32 %v2352, 16
        %v2459 = vrot.slane %v2457, 5
        %v2460 = vsel %vm461, %v2455, %v2459
        %v2462 = vshrl.u32 %v2353, 16
        %v2464 = vrot.slane %v2462, 4
        %v2465 = vshll.u32 %v2353, 16
        %v2467 = vrot.slane %v2465, 5
        %v2468 = vor.u32 %v2464, %v2467
        %v2469 = vrot.slane %v2468, 4
        %v2471 = vshll.u32 %v2354, 16
        %v2473 = vrot.slane %v2471, 5
        %v2474 = vsel %vm461, %v2469, %v2473
        %v2475 = vshrl.u32 %v2354, 16
        %v2477 = vrot.slane %v2475, 4
        %v2478 = vor.u32 %v2477, %v2473
        %v2479 = vrot.slane %v2478, 4
        %v2481 = vshll.u32 %v2355, 16
        %v2483 = vrot.slane %v2481, 5
        %v2484 = vsel %vm461, %v2479, %v2483
        %v2486 = vshrl.u32 %v2356, 16
        %v2488 = vrot.slane %v2486, 4
        %v2489 = vshll.u32 %v2356, 16
        %v2491 = vrot.slane %v2489, 5
        %v2492 = vor.u32 %v2488, %v2491
        %v2493 = vrot.slane %v2492, 4
        %v2495 = vshll.u32 %v2357, 16
        %v2497 = vrot.slane %v2495, 5
        %v2498 = vsel %vm461, %v2493, %v2497
        %v2499 = vshrl.u32 %v2357, 16
        %v2501 = vrot.slane %v2499, 4
        %v2502 = vor.u32 %v2501, %v2497
        %v2503 = vrot.slane %v2502, 4
        %v2505 = vshll.u32 %v2358, 16
        %v2507 = vrot.slane %v2505, 5
        %v2508 = vsel %vm461, %v2503, %v2507
        %v2510 = vshrl.u32 %v2359, 16
        %v2512 = vrot.slane %v2510, 4
        %v2513 = vshll.u32 %v2359, 16
        %v2515 = vrot.slane %v2513, 5
        %v2516 = vor.u32 %v2512, %v2515
        %v2517 = vrot.slane %v2516, 4
        %v2519 = vshll.u32 %v2360, 16
        %v2521 = vrot.slane %v2519, 5
        %v2522 = vsel %vm461, %v2517, %v2521
        %v2523 = vshrl.u32 %v2360, 16
        %v2525 = vrot.slane %v2523, 4
        %v2526 = vor.u32 %v2525, %v2521
        %v2527 = vrot.slane %v2526, 4
        %v2529 = vshll.u32 %v2361, 16
        %v2531 = vrot.slane %v2529, 5
        %v2532 = vsel %vm461, %v2527, %v2531
        %v2534 = vshrl.u32 %v2362, 16
        %v2536 = vrot.slane %v2534, 4
        %v2537 = vshll.u32 %v2362, 16
        %v2539 = vrot.slane %v2537, 5
        %v2540 = vor.u32 %v2536, %v2539
        %v2541 = vrot.slane %v2540, 4
        %v2543 = vshll.u32 %v2363, 16
        %v2545 = vrot.slane %v2543, 5
        %v2546 = vsel %vm461, %v2541, %v2545
        %v2547 = vshrl.u32 %v2363, 16
        %v2549 = vrot.slane %v2547, 4
        %v2550 = vor.u32 %v2549, %v2545
        %v2551 = vrot.slane %v2550, 4
        %v2553 = vshll.u32 %v2364, 16
        %v2555 = vrot.slane %v2553, 5
        %v2556 = vsel %vm461, %v2551, %v2555
        %v2557 = vld [vmem:[#allocation2] sm:$0xff]
        %v2558 = vld [vmem:[#allocation2 + $0x8] sm:$0xff]
        %v2559 = vld [vmem:[#allocation2 + $0x10] sm:$0xff]
        %v2560 = vld [vmem:[#allocation2 + $0x18] sm:$0xff]
        %v2561 = vld [vmem:[#allocation2 + $0x20] sm:$0xff]
        %v2562 = vld [vmem:[#allocation2 + $0x28] sm:$0xff]
        %v2563 = vld [vmem:[#allocation2 + $0x30] sm:$0xff]
        %v2564 = vld [vmem:[#allocation2 + $0x38] sm:$0xff]
        %v2565 = vld [vmem:[#allocation2 + $0x40] sm:$0xff]
        %v2566 = vld [vmem:[#allocation2 + $0x48] sm:$0xff]
        %v2567 = vld [vmem:[#allocation2 + $0x50] sm:$0xff]
        %v2568 = vld [vmem:[#allocation2 + $0x58] sm:$0xff]
        %v2569 = vld [vmem:[#allocation2 + $0x60] sm:$0xff]
        %v2570 = vld [vmem:[#allocation2 + $0x68] sm:$0xff]
        %v2571 = vld [vmem:[#allocation2 + $0x70] sm:$0xff]
        %v2572 = vld [vmem:[#allocation2 + $0x78] sm:$0xff]
        %s2573 = scalar_lea.vmem %s1, 14
        %v2574 = vld [vmem:[%s2573] sm:$0x3]
        %v2575 = vunpack.c.l.b16 %v2378
        %v2576 = vunpack.c.l.b16 %v2388
        %v2577 = vunpack.c.l.b16 %v2402
        %v2578 = vunpack.c.l.b16 %v2412
        %v2579 = vunpack.c.l.b16 %v2426
        %v2580 = vunpack.c.l.b16 %v2436
        %v2581 = vunpack.c.l.b16 %v2450
        %v2582 = vunpack.c.l.b16 %v2460
        %v2583 = vunpack.c.l.b16 %v2474
        %v2584 = vunpack.c.l.b16 %v2484
        %v2585 = vunpack.c.l.b16 %v2498
        %v2586 = vunpack.c.l.b16 %v2508
        %v2587 = vunpack.c.l.b16 %v2522
        %v2588 = vunpack.c.l.b16 %v2532
        %v2589 = vunpack.c.l.b16 %v2546
        %v2590 = vunpack.c.l.b16 %v2556
        %v2591 = vpack.c.b16 %v2576, %v2575
        %v2592 = vpack.c.b16 %v2578, %v2577
        %v2593 = vpack.c.b16 %v2580, %v2579
        %v2594 = vpack.c.b16 %v2582, %v2581
        %v2595 = vpack.c.b16 %v2584, %v2583
        %v2596 = vpack.c.b16 %v2586, %v2585
        %v2597 = vpack.c.b16 %v2588, %v2587
        %v2598 = vpack.c.b16 %v2590, %v2589
        %v2600 = vsel %vm277, %v2591, 0
        %v2603 = vsel %vm277, %v2592, 0
        %v2606 = vsel %vm277, %v2593, 0
        %v2609 = vsel %vm277, %v2594, 0
        %v2612 = vsel %vm277, %v2595, 0
        %v2615 = vsel %vm277, %v2596, 0
        %v2618 = vsel %vm277, %v2597, 0
        %v2621 = vsel %vm277, %v2598, 0
        %v2624 = vsel %vm302, %v2574, 0
        %2626 = vmatprep.subr.bf16.mxu0 0
        %2627 = vmatpush1.bf16.msra.mxu0 %v2624
        %2628 = vmatprep.subr.bf16.mxu0 0
        %2629 = vmatpush1.bf16.msra.mxu0 0
        %2630 = vmatprep.subr.bf16.mxu0 0
        %2631 = vmatpush1.bf16.msra.mxu0 0
        %2632 = vmatprep.subr.bf16.mxu0 0
        %2633 = vmatpush1.bf16.msra.mxu0 0
        %2634 = vmatprep.subr.bf16.mxu0 0
        %2635 = vmatpush1.bf16.msra.mxu0 0
        %2636 = vmatprep.subr.bf16.mxu0 0
        %2637 = vmatpush1.bf16.msra.mxu0 0
        %2638 = vmatprep.subr.bf16.mxu0 0
        %2639 = vmatpush1.bf16.msra.mxu0 0
        %2640 = vmatprep.subr.bf16.mxu0 0
        %2641 = vmatpush1.bf16.msra.mxu0 0
        %2642 = vmatprep.subr.bf16.mxu0 0
        %2643 = vmatpush1.bf16.msra.mxu0 0
        %2644 = vmatprep.subr.bf16.mxu0 0
        %2645 = vmatpush1.bf16.msra.mxu0 0
        %2646 = vmatprep.subr.bf16.mxu0 0
        %2647 = vmatpush1.bf16.msra.mxu0 0
        %2648 = vmatprep.subr.bf16.mxu0 0
        %2649 = vmatpush1.bf16.msra.mxu0 0
        %2650 = vmatprep.subr.bf16.mxu0 0
        %2651 = vmatpush1.bf16.msra.mxu0 0
        %2652 = vmatprep.subr.bf16.mxu0 0
        %2653 = vmatpush1.bf16.msra.mxu0 0
        %2654 = vmatprep.subr.bf16.mxu0 0
        %2655 = vmatpush1.bf16.msra.mxu0 0
        %2656 = vmatprep.subr.bf16.mxu0 0
        %2657 = vmatpush1.bf16.msra.mxu0 0
        %2658 = vmatprep.mubr.bf16.mxu0 0
        %2659 = vmatmul.mubr.bf16.gmra.mrb[0].mxu0 %v2600
        %v2660 = vpop.f32.mrb[0].mxu0
        %v2661 = vadd.f32 0.0, %v2660
        %v2662 = vpop.f32.mrb[0].mxu0
        %v2663 = vpop.f32.mrb[0].mxu0
        %v2664 = vadd.f32 0.0, %v2663
        %v2665 = vpop.f32.mrb[0].mxu0
        %2666 = vmatprep.mubr.bf16.mxu0 0
        %2667 = vmatmul.mubr.bf16.gmra.mrb[0].mxu0 %v2603
        %v2668 = vpop.f32.mrb[0].mxu0
        %v2669 = vadd.f32 0.0, %v2668
        %v2670 = vpop.f32.mrb[0].mxu0
        %v2671 = vpop.f32.mrb[0].mxu0
        %v2672 = vadd.f32 0.0, %v2671
        %v2673 = vpop.f32.mrb[0].mxu0
        %2674 = vmatprep.mubr.bf16.mxu0 0
        %2675 = vmatmul.mubr.bf16.gmra.mrb[0].mxu0 %v2606
        %v2676 = vpop.f32.mrb[0].mxu0
        %v2677 = vadd.f32 0.0, %v2676
        %v2678 = vpop.f32.mrb[0].mxu0
        %v2679 = vpop.f32.mrb[0].mxu0
        %v2680 = vadd.f32 0.0, %v2679
        %v2681 = vpop.f32.mrb[0].mxu0
        %2682 = vmatprep.mubr.bf16.mxu0 0
        %2683 = vmatmul.mubr.bf16.gmra.mrb[0].mxu0 %v2609
        %v2684 = vpop.f32.mrb[0].mxu0
        %v2685 = vadd.f32 0.0, %v2684
        %v2686 = vpop.f32.mrb[0].mxu0
        %v2687 = vpop.f32.mrb[0].mxu0
        %v2688 = vadd.f32 0.0, %v2687
        %v2689 = vpop.f32.mrb[0].mxu0
        %2690 = vmatprep.mubr.bf16.mxu0 0
        %2691 = vmatmul.mubr.bf16.gmra.mrb[0].mxu0 %v2612
        %v2692 = vpop.f32.mrb[0].mxu0
        %v2693 = vadd.f32 0.0, %v2692
        %v2694 = vpop.f32.mrb[0].mxu0
        %v2695 = vpop.f32.mrb[0].mxu0
        %v2696 = vadd.f32 0.0, %v2695
        %v2697 = vpop.f32.mrb[0].mxu0
        %2698 = vmatprep.mubr.bf16.mxu0 0
        %2699 = vmatmul.mubr.bf16.gmra.mrb[0].mxu0 %v2615
        %v2700 = vpop.f32.mrb[0].mxu0
        %v2701 = vadd.f32 0.0, %v2700
        %v2702 = vpop.f32.mrb[0].mxu0
        %v2703 = vpop.f32.mrb[0].mxu0
        %v2704 = vadd.f32 0.0, %v2703
        %v2705 = vpop.f32.mrb[0].mxu0
        %2706 = vmatprep.mubr.bf16.mxu0 0
        %2707 = vmatmul.mubr.bf16.gmra.mrb[0].mxu0 %v2618
        %v2708 = vpop.f32.mrb[0].mxu0
        %v2709 = vadd.f32 0.0, %v2708
        %v2710 = vpop.f32.mrb[0].mxu0
        %v2711 = vpop.f32.mrb[0].mxu0
        %v2712 = vadd.f32 0.0, %v2711
        %v2713 = vpop.f32.mrb[0].mxu0
        %2714 = vmatprep.mubr.bf16.mxu0 0
        %2715 = vmatmul.mubr.bf16.gmra.mrb[0].mxu0 %v2621
        %v2716 = vpop.f32.mrb[0].mxu0
        %v2717 = vadd.f32 0.0, %v2716
        %v2718 = vpop.f32.mrb[0].mxu0
        %v2719 = vpop.f32.mrb[0].mxu0
        %v2720 = vadd.f32 0.0, %v2719
        %v2721 = vpop.f32.mrb[0].mxu0
        %2722 = vdwg.mxu0
        %v2723 = vadd.f32 %v2557, %v2661
        %v2724 = vadd.f32 %v2558, %v2664
        %v2725 = vadd.f32 %v2559, %v2669
        %v2726 = vadd.f32 %v2560, %v2672
        %v2727 = vadd.f32 %v2561, %v2677
        %v2728 = vadd.f32 %v2562, %v2680
        %v2729 = vadd.f32 %v2563, %v2685
        %v2730 = vadd.f32 %v2564, %v2688
        %v2731 = vadd.f32 %v2565, %v2693
        %v2732 = vadd.f32 %v2566, %v2696
        %v2733 = vadd.f32 %v2567, %v2701
        %v2734 = vadd.f32 %v2568, %v2704
        %v2735 = vadd.f32 %v2569, %v2709
        %v2736 = vadd.f32 %v2570, %v2712
        %v2737 = vadd.f32 %v2571, %v2717
        %v2738 = vadd.f32 %v2572, %v2720
        %2739 = vst [vmem:[#allocation2] sm:$0xff] %v2723
        %2740 = vst [vmem:[#allocation2 + $0x8] sm:$0xff] %v2724
        %2741 = vst [vmem:[#allocation2 + $0x10] sm:$0xff] %v2725
        %2742 = vst [vmem:[#allocation2 + $0x18] sm:$0xff] %v2726
        %2743 = vst [vmem:[#allocation2 + $0x20] sm:$0xff] %v2727
        %2744 = vst [vmem:[#allocation2 + $0x28] sm:$0xff] %v2728
        %2745 = vst [vmem:[#allocation2 + $0x30] sm:$0xff] %v2729
        %2746 = vst [vmem:[#allocation2 + $0x38] sm:$0xff] %v2730
        %2747 = vst [vmem:[#allocation2 + $0x40] sm:$0xff] %v2731
        %2748 = vst [vmem:[#allocation2 + $0x48] sm:$0xff] %v2732
        %2749 = vst [vmem:[#allocation2 + $0x50] sm:$0xff] %v2733
        %2750 = vst [vmem:[#allocation2 + $0x58] sm:$0xff] %v2734
        %2751 = vst [vmem:[#allocation2 + $0x60] sm:$0xff] %v2735
        %2752 = vst [vmem:[#allocation2 + $0x68] sm:$0xff] %v2736
        %2753 = vst [vmem:[#allocation2 + $0x70] sm:$0xff] %v2737
        %2754 = vst [vmem:[#allocation2 + $0x78] sm:$0xff] %v2738
        %v2755 = vld [vmem:[%s2110] sm:$0xe]
        %v2756 = vld [vmem:[%s2110 + $0x4] sm:$0xf]
        %v2757 = vld [vmem:[%s2110 + $0x8] sm:$0x1]
        %v2758 = vld [vmem:[%s2110 + $0xc] sm:$0xe]
        %v2759 = vld [vmem:[%s2110 + $0x10] sm:$0xf]
        %v2760 = vld [vmem:[%s2110 + $0x14] sm:$0x1]
        %v2761 = vld [vmem:[%s2110 + $0x18] sm:$0xe]
        %v2762 = vld [vmem:[%s2110 + $0x1c] sm:$0xf]
        %v2763 = vld [vmem:[%s2110 + $0x20] sm:$0x1]
        %v2764 = vld [vmem:[%s2110 + $0x24] sm:$0xe]
        %v2765 = vld [vmem:[%s2110 + $0x28] sm:$0xf]
        %v2766 = vld [vmem:[%s2110 + $0x2c] sm:$0x1]
        %v2767 = vld [vmem:[%s2110 + $0x30] sm:$0xe]
        %v2768 = vld [vmem:[%s2110 + $0x34] sm:$0xf]
        %v2769 = vld [vmem:[%s2110 + $0x38] sm:$0x1]
        %v2770 = vld [vmem:[%s2110 + $0x3c] sm:$0xe]
        %v2771 = vld [vmem:[%s2110 + $0x40] sm:$0xf]
        %v2772 = vld [vmem:[%s2110 + $0x44] sm:$0x1]
        %v2773 = vld [vmem:[%s2110 + $0x48] sm:$0xe]
        %v2774 = vld [vmem:[%s2110 + $0x4c] sm:$0xf]
        %v2775 = vld [vmem:[%s2110 + $0x50] sm:$0x1]
        %v2776 = vld [vmem:[%s2110 + $0x54] sm:$0xe]
        %v2777 = vld [vmem:[%s2110 + $0x58] sm:$0xf]
        %v2778 = vld [vmem:[%s2110 + $0x5c] sm:$0x1]
        %v2803 = vrot.slane %v2755, 5
        %v2804 = vrot.slane %v2803, 4
        %v2805 = vrot.slane %v2756, 5
        %v2806 = vsel %vm902, %v2804, %v2805
        %v2807 = vrot.slane %v2805, 4
        %v2808 = vrot.slane %v2757, 5
        %v2809 = vsel %vm902, %v2807, %v2808
        %v2810 = vrot.slane %v2758, 5
        %v2811 = vrot.slane %v2810, 4
        %v2812 = vrot.slane %v2759, 5
        %v2813 = vsel %vm902, %v2811, %v2812
        %v2814 = vrot.slane %v2812, 4
        %v2815 = vrot.slane %v2760, 5
        %v2816 = vsel %vm902, %v2814, %v2815
        %v2817 = vrot.slane %v2761, 5
        %v2818 = vrot.slane %v2817, 4
        %v2819 = vrot.slane %v2762, 5
        %v2820 = vsel %vm902, %v2818, %v2819
        %v2821 = vrot.slane %v2819, 4
        %v2822 = vrot.slane %v2763, 5
        %v2823 = vsel %vm902, %v2821, %v2822
        %v2824 = vrot.slane %v2764, 5
        %v2825 = vrot.slane %v2824, 4
        %v2826 = vrot.slane %v2765, 5
        %v2827 = vsel %vm902, %v2825, %v2826
        %v2828 = vrot.slane %v2826, 4
        %v2829 = vrot.slane %v2766, 5
        %v2830 = vsel %vm902, %v2828, %v2829
        %v2831 = vrot.slane %v2767, 5
        %v2832 = vrot.slane %v2831, 4
        %v2833 = vrot.slane %v2768, 5
        %v2834 = vsel %vm902, %v2832, %v2833
        %v2835 = vrot.slane %v2833, 4
        %v2836 = vrot.slane %v2769, 5
        %v2837 = vsel %vm902, %v2835, %v2836
        %v2838 = vrot.slane %v2770, 5
        %v2839 = vrot.slane %v2838, 4
        %v2840 = vrot.slane %v2771, 5
        %v2841 = vsel %vm902, %v2839, %v2840
        %v2842 = vrot.slane %v2840, 4
        %v2843 = vrot.slane %v2772, 5
        %v2844 = vsel %vm902, %v2842, %v2843
        %v2845 = vrot.slane %v2773, 5
        %v2846 = vrot.slane %v2845, 4
        %v2847 = vrot.slane %v2774, 5
        %v2848 = vsel %vm902, %v2846, %v2847
        %v2849 = vrot.slane %v2847, 4
        %v2850 = vrot.slane %v2775, 5
        %v2851 = vsel %vm902, %v2849, %v2850
        %v2852 = vrot.slane %v2776, 5
        %v2853 = vrot.slane %v2852, 4
        %v2854 = vrot.slane %v2777, 5
        %v2855 = vsel %vm902, %v2853, %v2854
        %v2856 = vrot.slane %v2854, 4
        %v2857 = vrot.slane %v2778, 5
        %v2858 = vsel %vm902, %v2856, %v2857
        %v2859 = vld [vmem:[#allocation2] sm:$0xff]
        %v2860 = vld [vmem:[#allocation2 + $0x8] sm:$0xff]
        %v2861 = vld [vmem:[#allocation2 + $0x10] sm:$0xff]
        %v2862 = vld [vmem:[#allocation2 + $0x18] sm:$0xff]
        %v2863 = vld [vmem:[#allocation2 + $0x20] sm:$0xff]
        %v2864 = vld [vmem:[#allocation2 + $0x28] sm:$0xff]
        %v2865 = vld [vmem:[#allocation2 + $0x30] sm:$0xff]
        %v2866 = vld [vmem:[#allocation2 + $0x38] sm:$0xff]
        %v2867 = vld [vmem:[#allocation2 + $0x40] sm:$0xff]
        %v2868 = vld [vmem:[#allocation2 + $0x48] sm:$0xff]
        %v2869 = vld [vmem:[#allocation2 + $0x50] sm:$0xff]
        %v2870 = vld [vmem:[#allocation2 + $0x58] sm:$0xff]
        %v2871 = vld [vmem:[#allocation2 + $0x60] sm:$0xff]
        %v2872 = vld [vmem:[#allocation2 + $0x68] sm:$0xff]
        %v2873 = vld [vmem:[#allocation2 + $0x70] sm:$0xff]
        %v2874 = vld [vmem:[#allocation2 + $0x78] sm:$0xff]
        %s2875 = scalar_lea.vmem %s1, 16
        %v2876 = vld [vmem:[%s2875] sm:$0x3]
        %v2877 = vunpack.c.l.b16 %v2806
        %v2878 = vunpack.c.l.b16 %v2809
        %v2879 = vunpack.c.l.b16 %v2813
        %v2880 = vunpack.c.l.b16 %v2816
        %v2881 = vunpack.c.l.b16 %v2820
        %v2882 = vunpack.c.l.b16 %v2823
        %v2883 = vunpack.c.l.b16 %v2827
        %v2884 = vunpack.c.l.b16 %v2830
        %v2885 = vunpack.c.l.b16 %v2834
        %v2886 = vunpack.c.l.b16 %v2837
        %v2887 = vunpack.c.l.b16 %v2841
        %v2888 = vunpack.c.l.b16 %v2844
        %v2889 = vunpack.c.l.b16 %v2848
        %v2890 = vunpack.c.l.b16 %v2851
        %v2891 = vunpack.c.l.b16 %v2855
        %v2892 = vunpack.c.l.b16 %v2858
        %v2893 = vpack.c.b16 %v2878, %v2877
        %v2894 = vpack.c.b16 %v2880, %v2879
        %v2895 = vpack.c.b16 %v2882, %v2881
        %v2896 = vpack.c.b16 %v2884, %v2883
        %v2897 = vpack.c.b16 %v2886, %v2885
        %v2898 = vpack.c.b16 %v2888, %v2887
        %v2899 = vpack.c.b16 %v2890, %v2889
        %v2900 = vpack.c.b16 %v2892, %v2891
        %v2902 = vsel %vm277, %v2893, 0
        %v2905 = vsel %vm277, %v2894, 0
        %v2908 = vsel %vm277, %v2895, 0
        %v2911 = vsel %vm277, %v2896, 0
        %v2914 = vsel %vm277, %v2897, 0
        %v2917 = vsel %vm277, %v2898, 0
        %v2920 = vsel %vm277, %v2899, 0
        %v2923 = vsel %vm277, %v2900, 0
        %v2926 = vsel %vm302, %v2876, 0
        %2928 = vmatprep.subr.bf16.mxu0 0
        %2929 = vmatpush1.bf16.msra.mxu0 %v2926
        %2930 = vmatprep.subr.bf16.mxu0 0
        %2931 = vmatpush1.bf16.msra.mxu0 0
        %2932 = vmatprep.subr.bf16.mxu0 0
        %2933 = vmatpush1.bf16.msra.mxu0 0
        %2934 = vmatprep.subr.bf16.mxu0 0
        %2935 = vmatpush1.bf16.msra.mxu0 0
        %2936 = vmatprep.subr.bf16.mxu0 0
        %2937 = vmatpush1.bf16.msra.mxu0 0
        %2938 = vmatprep.subr.bf16.mxu0 0
        %2939 = vmatpush1.bf16.msra.mxu0 0
        %2940 = vmatprep.subr.bf16.mxu0 0
        %2941 = vmatpush1.bf16.msra.mxu0 0
        %2942 = vmatprep.subr.bf16.mxu0 0
        %2943 = vmatpush1.bf16.msra.mxu0 0
        %2944 = vmatprep.subr.bf16.mxu0 0
        %2945 = vmatpush1.bf16.msra.mxu0 0
        %2946 = vmatprep.subr.bf16.mxu0 0
        %2947 = vmatpush1.bf16.msra.mxu0 0
        %2948 = vmatprep.subr.bf16.mxu0 0
        %2949 = vmatpush1.bf16.msra.mxu0 0
        %2950 = vmatprep.subr.bf16.mxu0 0
        %2951 = vmatpush1.bf16.msra.mxu0 0
        %2952 = vmatprep.subr.bf16.mxu0 0
        %2953 = vmatpush1.bf16.msra.mxu0 0
        %2954 = vmatprep.subr.bf16.mxu0 0
        %2955 = vmatpush1.bf16.msra.mxu0 0
        %2956 = vmatprep.subr.bf16.mxu0 0
        %2957 = vmatpush1.bf16.msra.mxu0 0
        %2958 = vmatprep.subr.bf16.mxu0 0
        %2959 = vmatpush1.bf16.msra.mxu0 0
        %2960 = vmatprep.mubr.bf16.mxu0 0
        %2961 = vmatmul.mubr.bf16.gmra.mrb[0].mxu0 %v2902
        %v2962 = vpop.f32.mrb[0].mxu0
        %v2963 = vadd.f32 0.0, %v2962
        %v2964 = vpop.f32.mrb[0].mxu0
        %v2965 = vpop.f32.mrb[0].mxu0
        %v2966 = vadd.f32 0.0, %v2965
        %v2967 = vpop.f32.mrb[0].mxu0
        %2968 = vmatprep.mubr.bf16.mxu0 0
        %2969 = vmatmul.mubr.bf16.gmra.mrb[0].mxu0 %v2905
        %v2970 = vpop.f32.mrb[0].mxu0
        %v2971 = vadd.f32 0.0, %v2970
        %v2972 = vpop.f32.mrb[0].mxu0
        %v2973 = vpop.f32.mrb[0].mxu0
        %v2974 = vadd.f32 0.0, %v2973
        %v2975 = vpop.f32.mrb[0].mxu0
        %2976 = vmatprep.mubr.bf16.mxu0 0
        %2977 = vmatmul.mubr.bf16.gmra.mrb[0].mxu0 %v2908
        %v2978 = vpop.f32.mrb[0].mxu0
        %v2979 = vadd.f32 0.0, %v2978
        %v2980 = vpop.f32.mrb[0].mxu0
        %v2981 = vpop.f32.mrb[0].mxu0
        %v2982 = vadd.f32 0.0, %v2981
        %v2983 = vpop.f32.mrb[0].mxu0
        %2984 = vmatprep.mubr.bf16.mxu0 0
        %2985 = vmatmul.mubr.bf16.gmra.mrb[0].mxu0 %v2911
        %v2986 = vpop.f32.mrb[0].mxu0
        %v2987 = vadd.f32 0.0, %v2986
        %v2988 = vpop.f32.mrb[0].mxu0
        %v2989 = vpop.f32.mrb[0].mxu0
        %v2990 = vadd.f32 0.0, %v2989
        %v2991 = vpop.f32.mrb[0].mxu0
        %2992 = vmatprep.mubr.bf16.mxu0 0
        %2993 = vmatmul.mubr.bf16.gmra.mrb[0].mxu0 %v2914
        %v2994 = vpop.f32.mrb[0].mxu0
        %v2995 = vadd.f32 0.0, %v2994
        %v2996 = vpop.f32.mrb[0].mxu0
        %v2997 = vpop.f32.mrb[0].mxu0
        %v2998 = vadd.f32 0.0, %v2997
        %v2999 = vpop.f32.mrb[0].mxu0
        %3000 = vmatprep.mubr.bf16.mxu0 0
        %3001 = vmatmul.mubr.bf16.gmra.mrb[0].mxu0 %v2917
        %v3002 = vpop.f32.mrb[0].mxu0
        %v3003 = vadd.f32 0.0, %v3002
        %v3004 = vpop.f32.mrb[0].mxu0
        %v3005 = vpop.f32.mrb[0].mxu0
        %v3006 = vadd.f32 0.0, %v3005
        %v3007 = vpop.f32.mrb[0].mxu0
        %3008 = vmatprep.mubr.bf16.mxu0 0
        %3009 = vmatmul.mubr.bf16.gmra.mrb[0].mxu0 %v2920
        %v3010 = vpop.f32.mrb[0].mxu0
        %v3011 = vadd.f32 0.0, %v3010
        %v3012 = vpop.f32.mrb[0].mxu0
        %v3013 = vpop.f32.mrb[0].mxu0
        %v3014 = vadd.f32 0.0, %v3013
        %v3015 = vpop.f32.mrb[0].mxu0
        %3016 = vmatprep.mubr.bf16.mxu0 0
        %3017 = vmatmul.mubr.bf16.gmra.mrb[0].mxu0 %v2923
        %v3018 = vpop.f32.mrb[0].mxu0
        %v3019 = vadd.f32 0.0, %v3018
        %v3020 = vpop.f32.mrb[0].mxu0
        %v3021 = vpop.f32.mrb[0].mxu0
        %v3022 = vadd.f32 0.0, %v3021
        %v3023 = vpop.f32.mrb[0].mxu0
        %3024 = vdwg.mxu0
        %v3025 = vadd.f32 %v2859, %v2963
        %v3026 = vadd.f32 %v2860, %v2966
        %v3027 = vadd.f32 %v2861, %v2971
        %v3028 = vadd.f32 %v2862, %v2974
        %v3029 = vadd.f32 %v2863, %v2979
        %v3030 = vadd.f32 %v2864, %v2982
        %v3031 = vadd.f32 %v2865, %v2987
        %v3032 = vadd.f32 %v2866, %v2990
        %v3033 = vadd.f32 %v2867, %v2995
        %v3034 = vadd.f32 %v2868, %v2998
        %v3035 = vadd.f32 %v2869, %v3003
        %v3036 = vadd.f32 %v2870, %v3006
        %v3037 = vadd.f32 %v2871, %v3011
        %v3038 = vadd.f32 %v2872, %v3014
        %v3039 = vadd.f32 %v2873, %v3019
        %v3040 = vadd.f32 %v2874, %v3022
        %3041 = vst [vmem:[#allocation2] sm:$0xff] %v3025
        %3042 = vst [vmem:[#allocation2 + $0x8] sm:$0xff] %v3026
        %3043 = vst [vmem:[#allocation2 + $0x10] sm:$0xff] %v3027
        %3044 = vst [vmem:[#allocation2 + $0x18] sm:$0xff] %v3028
        %3045 = vst [vmem:[#allocation2 + $0x20] sm:$0xff] %v3029
        %3046 = vst [vmem:[#allocation2 + $0x28] sm:$0xff] %v3030
        %3047 = vst [vmem:[#allocation2 + $0x30] sm:$0xff] %v3031
        %3048 = vst [vmem:[#allocation2 + $0x38] sm:$0xff] %v3032
        %3049 = vst [vmem:[#allocation2 + $0x40] sm:$0xff] %v3033
        %3050 = vst [vmem:[#allocation2 + $0x48] sm:$0xff] %v3034
        %3051 = vst [vmem:[#allocation2 + $0x50] sm:$0xff] %v3035
        %3052 = vst [vmem:[#allocation2 + $0x58] sm:$0xff] %v3036
        %3053 = vst [vmem:[#allocation2 + $0x60] sm:$0xff] %v3037
        %3054 = vst [vmem:[#allocation2 + $0x68] sm:$0xff] %v3038
        %3055 = vst [vmem:[#allocation2 + $0x70] sm:$0xff] %v3039
        %3056 = vst [vmem:[#allocation2 + $0x78] sm:$0xff] %v3040
        %v3057 = vld [vmem:[#allocation2] sm:$0xff]
        %v3058 = vld [vmem:[#allocation2 + $0x8] sm:$0xff]
        %v3059 = vld [vmem:[#allocation2 + $0x10] sm:$0xff]
        %v3060 = vld [vmem:[#allocation2 + $0x18] sm:$0xff]
        %v3061 = vld [vmem:[#allocation2 + $0x20] sm:$0xff]
        %v3062 = vld [vmem:[#allocation2 + $0x28] sm:$0xff]
        %v3063 = vld [vmem:[#allocation2 + $0x30] sm:$0xff]
        %v3064 = vld [vmem:[#allocation2 + $0x38] sm:$0xff]
        %v3065 = vld [vmem:[#allocation2 + $0x40] sm:$0xff]
        %v3066 = vld [vmem:[#allocation2 + $0x48] sm:$0xff]
        %v3067 = vld [vmem:[#allocation2 + $0x50] sm:$0xff]
        %v3068 = vld [vmem:[#allocation2 + $0x58] sm:$0xff]
        %v3069 = vld [vmem:[#allocation2 + $0x60] sm:$0xff]
        %v3070 = vld [vmem:[#allocation2 + $0x68] sm:$0xff]
        %v3071 = vld [vmem:[#allocation2 + $0x70] sm:$0xff]
        %v3072 = vld [vmem:[#allocation2 + $0x78] sm:$0xff]
        %v3073 = vld [vmem:[%s2] sm:$0x1]
        %v3075 = vlaneseq
        %v3076 = vshrl.u32 %v3075, 7
        %v3077 = vsub.s32 0, %v3076
        %v3078 = vrot.slane %v3073, %v3077
        %v3080 = vadd.f32 %v3057, %v3078
        %v3081 = vadd.f32 %v3058, %v3078
        %v3082 = vadd.f32 %v3059, %v3078
        %v3083 = vadd.f32 %v3060, %v3078
        %v3084 = vadd.f32 %v3061, %v3078
        %v3085 = vadd.f32 %v3062, %v3078
        %v3086 = vadd.f32 %v3063, %v3078
        %v3087 = vadd.f32 %v3064, %v3078
        %v3088 = vadd.f32 %v3065, %v3078
        %v3089 = vadd.f32 %v3066, %v3078
        %v3090 = vadd.f32 %v3067, %v3078
        %v3091 = vadd.f32 %v3068, %v3078
        %v3092 = vadd.f32 %v3069, %v3078
        %v3093 = vadd.f32 %v3070, %v3078
        %v3094 = vadd.f32 %v3071, %v3078
        %v3095 = vadd.f32 %v3072, %v3078
        %3096 = vst [vmem:[%s177] sm:$0xff] %v3080
        %3097 = vst [vmem:[%s177 + $0x8] sm:$0xff] %v3081
        %3098 = vst [vmem:[%s177 + $0x10] sm:$0xff] %v3082
        %3099 = vst [vmem:[%s177 + $0x18] sm:$0xff] %v3083
        %3100 = vst [vmem:[%s177 + $0x20] sm:$0xff] %v3084
        %3101 = vst [vmem:[%s177 + $0x28] sm:$0xff] %v3085
        %3102 = vst [vmem:[%s177 + $0x30] sm:$0xff] %v3086
        %3103 = vst [vmem:[%s177 + $0x38] sm:$0xff] %v3087
        %3104 = vst [vmem:[%s177 + $0x40] sm:$0xff] %v3088
        %3105 = vst [vmem:[%s177 + $0x48] sm:$0xff] %v3089
        %3106 = vst [vmem:[%s177 + $0x50] sm:$0xff] %v3090
        %3107 = vst [vmem:[%s177 + $0x58] sm:$0xff] %v3091
        %3108 = vst [vmem:[%s177 + $0x60] sm:$0xff] %v3092
        %3109 = vst [vmem:[%s177 + $0x68] sm:$0xff] %v3093
        %3110 = vst [vmem:[%s177 + $0x70] sm:$0xff] %v3094
        %3111 = vst [vmem:[%s177 + $0x78] sm:$0xff] %v3095
        %s3112 = sand.u32 %s107, 1
        %s3113 = scalar_lea.sflag [#allocation4], %s3112
        %s3114 = sand.u32 %s107, 1
        %s3115 = smul.addr %s3114, 128
        %s3116 = scalar_lea.vmem [#allocation3], %s3115
        // Predicated region
        $region33: #{tpu_custom_call.1} parent=31 // pred_check
          %p3117 = pneg %p117
        $region34: #{tpu_custom_call.1} parent=31 // pred_check_branch
          %3119 = sbr.rel (%p3117) target = $region36
        $region35: #{tpu_custom_call.1} parent=31 // pred_region
          %s3121 = ssub.s32 2048, 2048
          %3122 = vsyncadd %s3113, %s3121
          %s3123 = smul.addr %s22, 16
          %s3124 = smul.addr %s21, 32
          %s3125 = sadd.s32 %s3123, %s3124
          %s3126 = smul.addr %s3125, 128
          %s3127 = scalar_lea.hbm %s3, %s3126
          %s3128 = sshll.u32 %s3116, 4
          %s3129 = int_to_ptr.vmem [resolvable:$true] %s3128
          %3134 = dma.vmem_to_hbm [thread:$0]  %s3129, 2048, %s3127, %s3113, 128, 128, 8
        $region36: #{tpu_custom_call.1} parent=31 // pred_fallthru
          _
      $region32: #{tpu_custom_call.1} parent=5 // pred_fallthru
        _
      %p3135 = scmp.le.s32.totalorder 2, %s12
      // Predicated region
      $region37: #{tpu_custom_call.1} parent=5 // pred_check
        %p3136 = pneg %p3135
      $region38: #{tpu_custom_call.1} parent=5 // pred_check_branch
        %3138 = sbr.rel (%p3136) target = $region40
      $region39: #{tpu_custom_call.1} parent=5 // pred_region
        %s3139 = ssub.s32 %s12, 2
        // Predicated region
        $region41: #{tpu_custom_call.1} parent=39 // pred_check
          %p3140 = pneg %p123
        $region42: #{tpu_custom_call.1} parent=39 // pred_check_branch
          %3142 = sbr.rel (%p3140) target = $region44
        $region43: #{tpu_custom_call.1} parent=39 // pred_region
          %s3143 = sand.u32 %s108, 1
          %s3144 = scalar_lea.sflag [#allocation4], %s3143
          %s3145 = sand.u32 %s108, 1
          %s3146 = smul.addr %s3145, 128
          %s3147 = scalar_lea.vmem [#allocation3], %s3146
          %3148 = dma.done %s3144, 2048
        $region44: #{tpu_custom_call.1} parent=39 // pred_fallthru
          _
      $region40: #{tpu_custom_call.1} parent=5 // pred_fallthru
        _
    $region6: #{tpu_custom_call.1} parent=1 // loop_footer
      %s16 = sadd.s32 1, %s12
    $region7: #{tpu_custom_call.1} parent=1 // loop_footer_branch
      %11 = sbr.rel target = $region3
    $region8: #{tpu_custom_call.1} parent=1 // loop_exit
      _
    %3149 = vsyncpa [#allocation4], 1
    %s3150 = scalar_lea.sflag [#allocation4], 1
    %3151 = vsyncpa %s3150, 1

</llo_original>
